<compile_context>
chip_gen: v7x
topology: tpu7x:2x2x1
jax: 0.10.0
libtpu: 0.0.40
codegen_flags: <defaults>
</compile_context>

<pallas_src>
import functools

import jax
import jax.numpy as jnp
from jax.experimental import pallas as pl
from jax.experimental.pallas import tpu as pltpu


def _deepset_kernel(x_ref, mcol_ref, sel_ref,
                    w1, b1, w2, b2, w3, b3, w4, b4,
                    p1t, c1t, p2t, c2t, p3t, c3t, p4c, c4s,
                    out_ref, *, compute_dtype):
    """One batch tile.

    x_ref   : (TB*N, Din)  flattened set elements of this batch tile
    mcol_ref: (TB*N, 1)    per-element mask (0/1), flattened like x
    sel_ref : (TB, TB*N)   constant 0/1 block-diagonal pooling matrix (resident)
    rho weights: wk (.., R), bk (1, R)               -- act on (TB*N, ..)
    phi weights: pkt (P, ..), ckt (P, 1) transposed  -- act on (.., TB)
    p4c (P, 1), c4s (1, 1)                           -- final layer as a reduction
    out_ref : (1, TB)      sigmoid probabilities, batch on the lane axis
    """
    cdt = compute_dtype
    f32 = jnp.float32

    # ---- rho MLP on TB*N rows (MXU hot path) ----
    x = x_ref[...].astype(cdt)
    h = jnp.maximum(jnp.dot(x, w1[...], preferred_element_type=f32) + b1[...], 0.0)
    h = jnp.maximum(jnp.dot(h.astype(cdt), w2[...], preferred_element_type=f32) + b2[...], 0.0)
    h = jnp.maximum(jnp.dot(h.astype(cdt), w3[...], preferred_element_type=f32) + b3[...], 0.0)
    h = jnp.dot(h.astype(cdt), w4[...], preferred_element_type=f32) + b4[...]

    # ---- masked sum-pool over the set axis, folded into one MXU matmul ----
    hm = h * mcol_ref[...]                                           # (TB*N, R)  VPU
    pooled = jnp.dot(sel_ref[...], hm, preferred_element_type=f32)   # (TB, R)    MXU
    pooled_t = pooled.T                                              # (R, TB): batch -> lanes

    # ---- phi MLP, transposed so the batch stays on the lane axis ----
    g = jnp.maximum(jnp.dot(p1t[...], pooled_t.astype(cdt),
                            preferred_element_type=f32) + c1t[...], 0.0)
    g = jnp.maximum(jnp.dot(p2t[...], g.astype(cdt),
                            preferred_element_type=f32) + c2t[...], 0.0)
    g = jnp.maximum(jnp.dot(p3t[...], g.astype(cdt),
                            preferred_element_type=f32) + c3t[...], 0.0)

    # final P -> 1 layer as multiply + cross-sublane reduction (no 1-lane MXU matmul)
    logits = jnp.sum(g * p4c[...], axis=0, keepdims=True) + c4s[...]   # (1, TB)
    out_ref[...] = jax.nn.sigmoid(logits).astype(out_ref.dtype)        # lane-dense store


def deepset_forward(x, mask, params, *, tile_b=128, compute_dtype=jnp.float32):
    """x: (B, N, Din) f32, mask: (B, N) {0,1}, params: 16 arrays, weights stored (in, out)."""
    assert tile_b % 128 == 0, "tile_b must be a multiple of 128 (lane-dense output blocks)"
    B, N, Din = x.shape
    (w1, b1, w2, b2, w3, b3, w4, b4,
     p1, c1, p2, c2, p3, c3, p4, c4) = params

    TB = tile_b
    B_pad = ((B + TB - 1) // TB) * TB
    G = B_pad // TB

    # Pad the batch (padded rows get mask 0 and are sliced off) and flatten the set axis
    # in the wrapper: free metadata reshapes on HBM, no in-kernel relayouts.
    if B_pad != B:
        x = jnp.pad(x, ((0, B_pad - B), (0, 0), (0, 0)))
        mask = jnp.pad(mask, ((0, B_pad - B), (0, 0)))
    x_flat = x.reshape(B_pad * N, Din).astype(jnp.float32)
    m_col = mask.reshape(B_pad * N, 1).astype(jnp.float32)

    # Constant block-diagonal pooling matrix: sel[b, b*N + n] = 1 (same for every tile).
    sel = (jnp.arange(TB * N, dtype=jnp.int32) // N
           == jnp.arange(TB, dtype=jnp.int32)[:, None]).astype(jnp.float32)  # (TB, TB*N)

    cdt = compute_dtype
    kernel_params = [
        w1.astype(cdt), b1, w2.astype(cdt), b2, w3.astype(cdt), b3, w4.astype(cdt), b4,
        p1.T.astype(cdt), c1.reshape(-1, 1),   # phi weights transposed, biases as columns
        p2.T.astype(cdt), c2.reshape(-1, 1),
        p3.T.astype(cdt), c3.reshape(-1, 1),
        p4.reshape(-1, 1), c4.reshape(1, 1),
    ]

    in_specs = [
        pl.BlockSpec((TB * N, Din), lambda i: (i, 0)),   # x tile (pipelined over the grid)
        pl.BlockSpec((TB * N, 1), lambda i: (i, 0)),     # mask tile
        pl.BlockSpec((TB, TB * N), lambda i: (0, 0)),    # sel: constant block -> resident
    ] + [pl.BlockSpec(p.shape, lambda i: (0, 0)) for p in kernel_params]  # weights resident

    out = pl.pallas_call(
        functools.partial(_deepset_kernel, compute_dtype=cdt),
        out_shape=jax.ShapeDtypeStruct((1, B_pad), jnp.float32),
        grid_spec=pltpu.PrefetchScalarGridSpec(
            num_scalar_prefetch=0,
            grid=(G,),
            in_specs=in_specs,
            out_specs=pl.BlockSpec((1, TB), lambda i: (0, i)),   # lane-dense (1, TB) blocks
        ),
        compiler_params=pltpu.CompilerParams(
            dimension_semantics=("parallel",),
            vmem_limit_bytes=32 * 1024 * 1024,
        ),
    )(x_flat, m_col, sel, *kernel_params)

    return out[0, :B].reshape(B, 1)


def init_params(key, input_dim, rho_size, phi_size):
    """Deterministic init mimicking nn.Linear default (uniform +- 1/sqrt(fan_in)).
    Weights stored as (in, out)."""
    dims = [
        (input_dim, rho_size), (rho_size, rho_size), (rho_size, rho_size), (rho_size, rho_size),
        (rho_size, phi_size), (phi_size, phi_size), (phi_size, phi_size), (phi_size, 1),
    ]
    params = []
    for (din, dout) in dims:
        key, kw, kb = jax.random.split(key, 3)
        bound = 1.0 / jnp.sqrt(din)
        w = jax.random.uniform(kw, (din, dout), jnp.float32, -bound, bound)
        b = jax.random.uniform(kb, (1, dout), jnp.float32, -bound, bound)
        params += [w, b]
    return params


def deepset_reference(x, mask, params):
    (w1, b1, w2, b2, w3, b3, w4, b4,
     p1, c1, p2, c2, p3, c3, p4, c4) = params
    h = jnp.maximum(x @ w1 + b1, 0.0)
    h = jnp.maximum(h @ w2 + b2, 0.0)
    h = jnp.maximum(h @ w3 + b3, 0.0)
    h = h @ w4 + b4
    pooled = jnp.sum(h * mask[:, :, None], axis=1)
    g = jnp.maximum(pooled @ p1 + c1, 0.0)
    g = jnp.maximum(g @ p2 + c2, 0.0)
    g = jnp.maximum(g @ p3 + c3, 0.0)
    return jax.nn.sigmoid(g @ p4 + c4)


if __name__ == "__main__":
    INPUT_DIM, RHO_SIZE, PHI_SIZE, N = 16, 32, 32, 8

    key = jax.random.PRNGKey(0)
    kp, kd = jax.random.split(key)
    params = init_params(kp, INPUT_DIM, RHO_SIZE, PHI_SIZE)

    for B in (2, 300):   # G=1 (padded single tile) and G=3 (multi-step grid)
        kd, kx, km = jax.random.split(kd, 3)
        x = jax.random.normal(kx, (B, N, INPUT_DIM), jnp.float32)
        mask = (jax.random.uniform(km, (B, N)) > 0.3).astype(jnp.float32)

        out = jax.block_until_ready(deepset_forward(x, mask, params))
        ref = deepset_reference(x, mask, params)
        assert out.shape == (B, 1)
        assert bool(jnp.all(jnp.isfinite(out)))
        assert jnp.allclose(out, ref, atol=5e-5, rtol=5e-5), (
            f"B={B}: max abs err {float(jnp.max(jnp.abs(out - ref)))}")

    print("KERNEL_OK")
</pallas_src>

<mosaic_0001>
module attributes {stable_mosaic.version = 11 : i64} {
  func.func @_deepset_kernel(%arg0: i32, %arg1: memref<1024x16xf32, #tpu.memory_space<vmem>>, %arg2: memref<1024x1xf32, #tpu.memory_space<vmem>>, %arg3: memref<128x1024xf32, #tpu.memory_space<vmem>>, %arg4: memref<16x32xf32, #tpu.memory_space<vmem>>, %arg5: memref<1x32xf32, #tpu.memory_space<vmem>>, %arg6: memref<32x32xf32, #tpu.memory_space<vmem>>, %arg7: memref<1x32xf32, #tpu.memory_space<vmem>>, %arg8: memref<32x32xf32, #tpu.memory_space<vmem>>, %arg9: memref<1x32xf32, #tpu.memory_space<vmem>>, %arg10: memref<32x32xf32, #tpu.memory_space<vmem>>, %arg11: memref<1x32xf32, #tpu.memory_space<vmem>>, %arg12: memref<32x32xf32, #tpu.memory_space<vmem>>, %arg13: memref<32x1xf32, #tpu.memory_space<vmem>>, %arg14: memref<32x32xf32, #tpu.memory_space<vmem>>, %arg15: memref<32x1xf32, #tpu.memory_space<vmem>>, %arg16: memref<32x32xf32, #tpu.memory_space<vmem>>, %arg17: memref<32x1xf32, #tpu.memory_space<vmem>>, %arg18: memref<32x1xf32, #tpu.memory_space<vmem>>, %arg19: memref<1x1xf32, #tpu.memory_space<vmem>>, %arg20: memref<1x128xf32, #tpu.memory_space<vmem>>) attributes {dimension_semantics = [#tpu.dimension_semantics<parallel>], iteration_bounds = array<i64: 1>, scalar_prefetch = 0 : i64, scratch_operands = 0 : i64, tpu.core_type = #tpu.core_type<tc>, window_params = [{transform_indices = @transform_0, window_bounds = array<i64: 1024, 16>}, {transform_indices = @transform_1, window_bounds = array<i64: 1024, 1>}, {pipeline_mode = #tpu.pipeline_mode<synchronous>, transform_indices = @transform_2, window_bounds = array<i64: 128, 1024>}, {pipeline_mode = #tpu.pipeline_mode<synchronous>, transform_indices = @transform_3, window_bounds = array<i64: 16, 32>}, {pipeline_mode = #tpu.pipeline_mode<synchronous>, transform_indices = @transform_4, window_bounds = array<i64: 1, 32>}, {pipeline_mode = #tpu.pipeline_mode<synchronous>, transform_indices = @transform_5, window_bounds = array<i64: 32, 32>}, {pipeline_mode = #tpu.pipeline_mode<synchronous>, transform_indices = @transform_6, window_bounds = array<i64: 1, 32>}, {pipeline_mode = #tpu.pipeline_mode<synchronous>, transform_indices = @transform_7, window_bounds = array<i64: 32, 32>}, {pipeline_mode = #tpu.pipeline_mode<synchronous>, transform_indices = @transform_8, window_bounds = array<i64: 1, 32>}, {pipeline_mode = #tpu.pipeline_mode<synchronous>, transform_indices = @transform_9, window_bounds = array<i64: 32, 32>}, {pipeline_mode = #tpu.pipeline_mode<synchronous>, transform_indices = @transform_10, window_bounds = array<i64: 1, 32>}, {pipeline_mode = #tpu.pipeline_mode<synchronous>, transform_indices = @transform_11, window_bounds = array<i64: 32, 32>}, {pipeline_mode = #tpu.pipeline_mode<synchronous>, transform_indices = @transform_12, window_bounds = array<i64: 32, 1>}, {pipeline_mode = #tpu.pipeline_mode<synchronous>, transform_indices = @transform_13, window_bounds = array<i64: 32, 32>}, {pipeline_mode = #tpu.pipeline_mode<synchronous>, transform_indices = @transform_14, window_bounds = array<i64: 32, 1>}, {pipeline_mode = #tpu.pipeline_mode<synchronous>, transform_indices = @transform_15, window_bounds = array<i64: 32, 32>}, {pipeline_mode = #tpu.pipeline_mode<synchronous>, transform_indices = @transform_16, window_bounds = array<i64: 32, 1>}, {pipeline_mode = #tpu.pipeline_mode<synchronous>, transform_indices = @transform_17, window_bounds = array<i64: 32, 1>}, {pipeline_mode = #tpu.pipeline_mode<synchronous>, transform_indices = @transform_18, window_bounds = array<i64: 1, 1>}, {transform_indices = @transform_19, window_bounds = array<i64: 1, 128>}]} {
    %c0 = arith.constant 0 : index
    %c0_0 = arith.constant 0 : index
    %0 = vector.load %arg1[%c0, %c0_0] : memref<1024x16xf32, #tpu.memory_space<vmem>>, vector<1024x16xf32>
    %c0_1 = arith.constant 0 : index
    %c0_2 = arith.constant 0 : index
    %1 = vector.load %arg4[%c0_1, %c0_2] : memref<16x32xf32, #tpu.memory_space<vmem>>, vector<16x32xf32>
    %cst = arith.constant dense<0.000000e+00> : vector<1024x32xf32>
    %2 = tpu.matmul %0, %1, %cst {dimension_numbers = #tpu.dot_dimension_numbers<[1], [0], [0], [1], [0, 0, 1, 1], [], []>} : vector<1024x16xf32>, vector<16x32xf32>, vector<1024x32xf32> -> vector<1024x32xf32>
    %c0_3 = arith.constant 0 : index
    %c0_4 = arith.constant 0 : index
    %3 = vector.load %arg5[%c0_3, %c0_4] : memref<1x32xf32, #tpu.memory_space<vmem>>, vector<1x32xf32>
    %4 = vector.broadcast %3 : vector<1x32xf32> to vector<1024x32xf32>
    %5 = arith.addf %2, %4 : vector<1024x32xf32>
    %cst_5 = arith.constant 0.000000e+00 : f32
    %6 = vector.broadcast %cst_5 : f32 to vector<1024x32xf32>
    %7 = arith.maximumf %5, %6 : vector<1024x32xf32>
    %c0_6 = arith.constant 0 : index
    %c0_7 = arith.constant 0 : index
    %8 = vector.load %arg6[%c0_6, %c0_7] : memref<32x32xf32, #tpu.memory_space<vmem>>, vector<32x32xf32>
    %cst_8 = arith.constant dense<0.000000e+00> : vector<1024x32xf32>
    %9 = tpu.matmul %7, %8, %cst_8 {dimension_numbers = #tpu.dot_dimension_numbers<[1], [0], [0], [1], [0, 0, 1, 1], [], []>} : vector<1024x32xf32>, vector<32x32xf32>, vector<1024x32xf32> -> vector<1024x32xf32>
    %c0_9 = arith.constant 0 : index
    %c0_10 = arith.constant 0 : index
    %10 = vector.load %arg7[%c0_9, %c0_10] : memref<1x32xf32, #tpu.memory_space<vmem>>, vector<1x32xf32>
    %11 = vector.broadcast %10 : vector<1x32xf32> to vector<1024x32xf32>
    %12 = arith.addf %9, %11 : vector<1024x32xf32>
    %cst_11 = arith.constant 0.000000e+00 : f32
    %13 = vector.broadcast %cst_11 : f32 to vector<1024x32xf32>
    %14 = arith.maximumf %12, %13 : vector<1024x32xf32>
    %c0_12 = arith.constant 0 : index
    %c0_13 = arith.constant 0 : index
    %15 = vector.load %arg8[%c0_12, %c0_13] : memref<32x32xf32, #tpu.memory_space<vmem>>, vector<32x32xf32>
    %cst_14 = arith.constant dense<0.000000e+00> : vector<1024x32xf32>
    %16 = tpu.matmul %14, %15, %cst_14 {dimension_numbers = #tpu.dot_dimension_numbers<[1], [0], [0], [1], [0, 0, 1, 1], [], []>} : vector<1024x32xf32>, vector<32x32xf32>, vector<1024x32xf32> -> vector<1024x32xf32>
    %c0_15 = arith.constant 0 : index
    %c0_16 = arith.constant 0 : index
    %17 = vector.load %arg9[%c0_15, %c0_16] : memref<1x32xf32, #tpu.memory_space<vmem>>, vector<1x32xf32>
    %18 = vector.broadcast %17 : vector<1x32xf32> to vector<1024x32xf32>
    %19 = arith.addf %16, %18 : vector<1024x32xf32>
    %cst_17 = arith.constant 0.000000e+00 : f32
    %20 = vector.broadcast %cst_17 : f32 to vector<1024x32xf32>
    %21 = arith.maximumf %19, %20 : vector<1024x32xf32>
    %c0_18 = arith.constant 0 : index
    %c0_19 = arith.constant 0 : index
    %22 = vector.load %arg10[%c0_18, %c0_19] : memref<32x32xf32, #tpu.memory_space<vmem>>, vector<32x32xf32>
    %cst_20 = arith.constant dense<0.000000e+00> : vector<1024x32xf32>
    %23 = tpu.matmul %21, %22, %cst_20 {dimension_numbers = #tpu.dot_dimension_numbers<[1], [0], [0], [1], [0, 0, 1, 1], [], []>} : vector<1024x32xf32>, vector<32x32xf32>, vector<1024x32xf32> -> vector<1024x32xf32>
    %c0_21 = arith.constant 0 : index
    %c0_22 = arith.constant 0 : index
    %24 = vector.load %arg11[%c0_21, %c0_22] : memref<1x32xf32, #tpu.memory_space<vmem>>, vector<1x32xf32>
    %25 = vector.broadcast %24 : vector<1x32xf32> to vector<1024x32xf32>
    %26 = arith.addf %23, %25 : vector<1024x32xf32>
    %c0_23 = arith.constant 0 : index
    %c0_24 = arith.constant 0 : index
    %27 = vector.load %arg2[%c0_23, %c0_24] : memref<1024x1xf32, #tpu.memory_space<vmem>>, vector<1024x1xf32>
    %28 = vector.broadcast %27 : vector<1024x1xf32> to vector<1024x32xf32>
    %29 = arith.mulf %26, %28 : vector<1024x32xf32>
    %c0_25 = arith.constant 0 : index
    %c0_26 = arith.constant 0 : index
    %30 = vector.load %arg3[%c0_25, %c0_26] : memref<128x1024xf32, #tpu.memory_space<vmem>>, vector<128x1024xf32>
    %cst_27 = arith.constant dense<0.000000e+00> : vector<128x32xf32>
    %31 = tpu.matmul %30, %29, %cst_27 {dimension_numbers = #tpu.dot_dimension_numbers<[1], [0], [0], [1], [0, 0, 1, 1], [], []>} : vector<128x1024xf32>, vector<1024x32xf32>, vector<128x32xf32> -> vector<128x32xf32>
    %32 = tpu.transpose %31, [1, 0] : vector<128x32xf32> -> vector<32x128xf32>
    %c0_28 = arith.constant 0 : index
    %c0_29 = arith.constant 0 : index
    %33 = vector.load %arg12[%c0_28, %c0_29] : memref<32x32xf32, #tpu.memory_space<vmem>>, vector<32x32xf32>
    %cst_30 = arith.constant dense<0.000000e+00> : vector<32x128xf32>
    %34 = tpu.matmul %33, %32, %cst_30 {dimension_numbers = #tpu.dot_dimension_numbers<[1], [0], [0], [1], [0, 0, 1, 1], [], []>} : vector<32x32xf32>, vector<32x128xf32>, vector<32x128xf32> -> vector<32x128xf32>
    %c0_31 = arith.constant 0 : index
    %c0_32 = arith.constant 0 : index
    %35 = vector.load %arg13[%c0_31, %c0_32] : memref<32x1xf32, #tpu.memory_space<vmem>>, vector<32x1xf32>
    %36 = vector.broadcast %35 : vector<32x1xf32> to vector<32x128xf32>
    %37 = arith.addf %34, %36 : vector<32x128xf32>
    %cst_33 = arith.constant 0.000000e+00 : f32
    %38 = vector.broadcast %cst_33 : f32 to vector<32x128xf32>
    %39 = arith.maximumf %37, %38 : vector<32x128xf32>
    %c0_34 = arith.constant 0 : index
    %c0_35 = arith.constant 0 : index
    %40 = vector.load %arg14[%c0_34, %c0_35] : memref<32x32xf32, #tpu.memory_space<vmem>>, vector<32x32xf32>
    %cst_36 = arith.constant dense<0.000000e+00> : vector<32x128xf32>
    %41 = tpu.matmul %40, %39, %cst_36 {dimension_numbers = #tpu.dot_dimension_numbers<[1], [0], [0], [1], [0, 0, 1, 1], [], []>} : vector<32x32xf32>, vector<32x128xf32>, vector<32x128xf32> -> vector<32x128xf32>
    %c0_37 = arith.constant 0 : index
    %c0_38 = arith.constant 0 : index
    %42 = vector.load %arg15[%c0_37, %c0_38] : memref<32x1xf32, #tpu.memory_space<vmem>>, vector<32x1xf32>
    %43 = vector.broadcast %42 : vector<32x1xf32> to vector<32x128xf32>
    %44 = arith.addf %41, %43 : vector<32x128xf32>
    %cst_39 = arith.constant 0.000000e+00 : f32
    %45 = vector.broadcast %cst_39 : f32 to vector<32x128xf32>
    %46 = arith.maximumf %44, %45 : vector<32x128xf32>
    %c0_40 = arith.constant 0 : index
    %c0_41 = arith.constant 0 : index
    %47 = vector.load %arg16[%c0_40, %c0_41] : memref<32x32xf32, #tpu.memory_space<vmem>>, vector<32x32xf32>
    %cst_42 = arith.constant dense<0.000000e+00> : vector<32x128xf32>
    %48 = tpu.matmul %47, %46, %cst_42 {dimension_numbers = #tpu.dot_dimension_numbers<[1], [0], [0], [1], [0, 0, 1, 1], [], []>} : vector<32x32xf32>, vector<32x128xf32>, vector<32x128xf32> -> vector<32x128xf32>
    %c0_43 = arith.constant 0 : index
    %c0_44 = arith.constant 0 : index
    %49 = vector.load %arg17[%c0_43, %c0_44] : memref<32x1xf32, #tpu.memory_space<vmem>>, vector<32x1xf32>
    %50 = vector.broadcast %49 : vector<32x1xf32> to vector<32x128xf32>
    %51 = arith.addf %48, %50 : vector<32x128xf32>
    %cst_45 = arith.constant 0.000000e+00 : f32
    %52 = vector.broadcast %cst_45 : f32 to vector<32x128xf32>
    %53 = arith.maximumf %51, %52 : vector<32x128xf32>
    %c0_46 = arith.constant 0 : index
    %c0_47 = arith.constant 0 : index
    %54 = vector.load %arg18[%c0_46, %c0_47] : memref<32x1xf32, #tpu.memory_space<vmem>>, vector<32x1xf32>
    %55 = vector.broadcast %54 : vector<32x1xf32> to vector<32x128xf32>
    %56 = arith.mulf %53, %55 : vector<32x128xf32>
    %cst_48 = arith.constant dense<0.000000e+00> : vector<128xf32>
    %57 = vector.multi_reduction <add>, %56, %cst_48 [0] : vector<32x128xf32> to vector<128xf32>
    %58 = vector.shape_cast %57 : vector<128xf32> to vector<1x128xf32>
    %c0_49 = arith.constant 0 : index
    %c0_50 = arith.constant 0 : index
    %59 = vector.load %arg19[%c0_49, %c0_50] : memref<1x1xf32, #tpu.memory_space<vmem>>, vector<1x1xf32>
    %60 = vector.broadcast %59 : vector<1x1xf32> to vector<1x128xf32>
    %61 = arith.addf %58, %60 : vector<1x128xf32>
    %62 = arith.negf %61 : vector<1x128xf32>
    %63 = math.exp %62 : vector<1x128xf32>
    %cst_51 = arith.constant 1.000000e+00 : f32
    %64 = vector.broadcast %cst_51 : f32 to vector<1x128xf32>
    %65 = arith.addf %64, %63 : vector<1x128xf32>
    %66 = arith.divf %64, %65 : vector<1x128xf32>
    %c0_52 = arith.constant 0 : index
    %c0_53 = arith.constant 0 : index
    %67 = vector.load %arg20[%c0_52, %c0_53] : memref<1x128xf32, #tpu.memory_space<vmem>>, vector<1x128xf32>
    tpu.vector_store %arg20[%c0_52, %c0_53], %66 {strides = array<i32>} : memref<1x128xf32, #tpu.memory_space<vmem>>, vector<1x128xf32>,
    return
  }
  func.func @transform_0(%arg0: i32) -> (i32, i32) {
    %c0_i32 = arith.constant 0 : i32
    %c0_i32_0 = arith.constant 0 : i32
    return %arg0, %c0_i32 : i32, i32
  }
  func.func @transform_1(%arg0: i32) -> (i32, i32) {
    %c0_i32 = arith.constant 0 : i32
    %c0_i32_0 = arith.constant 0 : i32
    return %arg0, %c0_i32 : i32, i32
  }
  func.func @transform_2(%arg0: i32) -> (i32, i32) {
    %c0_i32 = arith.constant 0 : i32
    %c0_i32_0 = arith.constant 0 : i32
    %c0_i32_1 = arith.constant 0 : i32
    return %c0_i32, %c0_i32_0 : i32, i32
  }
  func.func @transform_3(%arg0: i32) -> (i32, i32) {
    %c0_i32 = arith.constant 0 : i32
    %c0_i32_0 = arith.constant 0 : i32
    %c0_i32_1 = arith.constant 0 : i32
    return %c0_i32, %c0_i32_0 : i32, i32
  }
  func.func @transform_4(%arg0: i32) -> (i32, i32) {
    %c0_i32 = arith.constant 0 : i32
    %c0_i32_0 = arith.constant 0 : i32
    %c0_i32_1 = arith.constant 0 : i32
    return %c0_i32, %c0_i32_0 : i32, i32
  }
  func.func @transform_5(%arg0: i32) -> (i32, i32) {
    %c0_i32 = arith.constant 0 : i32
    %c0_i32_0 = arith.constant 0 : i32
    %c0_i32_1 = arith.constant 0 : i32
    return %c0_i32, %c0_i32_0 : i32, i32
  }
  func.func @transform_6(%arg0: i32) -> (i32, i32) {
    %c0_i32 = arith.constant 0 : i32
    %c0_i32_0 = arith.constant 0 : i32
    %c0_i32_1 = arith.constant 0 : i32
    return %c0_i32, %c0_i32_0 : i32, i32
  }
  func.func @transform_7(%arg0: i32) -> (i32, i32) {
    %c0_i32 = arith.constant 0 : i32
    %c0_i32_0 = arith.constant 0 : i32
    %c0_i32_1 = arith.constant 0 : i32
    return %c0_i32, %c0_i32_0 : i32, i32
  }
  func.func @transform_8(%arg0: i32) -> (i32, i32) {
    %c0_i32 = arith.constant 0 : i32
    %c0_i32_0 = arith.constant 0 : i32
    %c0_i32_1 = arith.constant 0 : i32
    return %c0_i32, %c0_i32_0 : i32, i32
  }
  func.func @transform_9(%arg0: i32) -> (i32, i32) {
    %c0_i32 = arith.constant 0 : i32
    %c0_i32_0 = arith.constant 0 : i32
    %c0_i32_1 = arith.constant 0 : i32
    return %c0_i32, %c0_i32_0 : i32, i32
  }
  func.func @transform_10(%arg0: i32) -> (i32, i32) {
    %c0_i32 = arith.constant 0 : i32
    %c0_i32_0 = arith.constant 0 : i32
    %c0_i32_1 = arith.constant 0 : i32
    return %c0_i32, %c0_i32_0 : i32, i32
  }
  func.func @transform_11(%arg0: i32) -> (i32, i32) {
    %c0_i32 = arith.constant 0 : i32
    %c0_i32_0 = arith.constant 0 : i32
    %c0_i32_1 = arith.constant 0 : i32
    return %c0_i32, %c0_i32_0 : i32, i32
  }
  func.func @transform_12(%arg0: i32) -> (i32, i32) {
    %c0_i32 = arith.constant 0 : i32
    %c0_i32_0 = arith.constant 0 : i32
    %c0_i32_1 = arith.constant 0 : i32
    return %c0_i32, %c0_i32_0 : i32, i32
  }
  func.func @transform_13(%arg0: i32) -> (i32, i32) {
    %c0_i32 = arith.constant 0 : i32
    %c0_i32_0 = arith.constant 0 : i32
    %c0_i32_1 = arith.constant 0 : i32
    return %c0_i32, %c0_i32_0 : i32, i32
  }
  func.func @transform_14(%arg0: i32) -> (i32, i32) {
    %c0_i32 = arith.constant 0 : i32
    %c0_i32_0 = arith.constant 0 : i32
    %c0_i32_1 = arith.constant 0 : i32
    return %c0_i32, %c0_i32_0 : i32, i32
  }
  func.func @transform_15(%arg0: i32) -> (i32, i32) {
    %c0_i32 = arith.constant 0 : i32
    %c0_i32_0 = arith.constant 0 : i32
    %c0_i32_1 = arith.constant 0 : i32
    return %c0_i32, %c0_i32_0 : i32, i32
  }
  func.func @transform_16(%arg0: i32) -> (i32, i32) {
    %c0_i32 = arith.constant 0 : i32
    %c0_i32_0 = arith.constant 0 : i32
    %c0_i32_1 = arith.constant 0 : i32
    return %c0_i32, %c0_i32_0 : i32, i32
  }
  func.func @transform_17(%arg0: i32) -> (i32, i32) {
    %c0_i32 = arith.constant 0 : i32
    %c0_i32_0 = arith.constant 0 : i32
    %c0_i32_1 = arith.constant 0 : i32
    return %c0_i32, %c0_i32_0 : i32, i32
  }
  func.func @transform_18(%arg0: i32) -> (i32, i32) {
    %c0_i32 = arith.constant 0 : i32
    %c0_i32_0 = arith.constant 0 : i32
    %c0_i32_1 = arith.constant 0 : i32
    return %c0_i32, %c0_i32_0 : i32, i32
  }
  func.func @transform_19(%arg0: i32) -> (i32, i32) {
    %c0_i32 = arith.constant 0 : i32
    %c0_i32_0 = arith.constant 0 : i32
    return %c0_i32, %arg0 : i32, i32
  }
}

</mosaic_0001>

<llo_original>
// kernel: tpu_custom_call.1
$region0: #{tpu_custom_call.1}
  #allocation0 [shape = 'u32[]', space=smem, size = 0x4, offset = 0x4, fixed_abs, tag = 'smem constant byte address 0x4 - core index']
  #allocation1 [shape = 'u32[144,128]{1,0:T(1,128)}', space=vmem, size = 0x12000, scoped, tag = 'internal scratch']
  #allocation2 [shape = 'f32[1,1]{1,0:T(1,128)S(1)}', space=vmem, size = 0x200, scoped, tag = 'scoped memory for tpu_custom_call.1']
  %s0 = inlined_call_operand.vmem [shape: f32[1024,16], index: 0, kind: input, shape index: {}]
  %s1 = inlined_call_operand.vmem [shape: f32[1024,1], index: 1, kind: input, shape index: {}]
  %s2 = inlined_call_operand.vmem [shape: f32[128,1024], index: 2, kind: input, shape index: {}]
  %s3 = inlined_call_operand.vmem [shape: f32[16,32], index: 3, kind: input, shape index: {}]
  %s4 = inlined_call_operand.vmem [shape: f32[1,32], index: 4, kind: input, shape index: {}]
  %s5 = inlined_call_operand.vmem [shape: f32[32,32], index: 5, kind: input, shape index: {}]
  %s6 = inlined_call_operand.vmem [shape: f32[1,32], index: 6, kind: input, shape index: {}]
  %s7 = inlined_call_operand.vmem [shape: f32[32,32], index: 7, kind: input, shape index: {}]
  %s8 = inlined_call_operand.vmem [shape: f32[1,32], index: 8, kind: input, shape index: {}]
  %s9 = inlined_call_operand.vmem [shape: f32[32,32], index: 9, kind: input, shape index: {}]
  %s10 = inlined_call_operand.vmem [shape: f32[1,32], index: 10, kind: input, shape index: {}]
  %s11 = inlined_call_operand.vmem [shape: f32[32,32], index: 11, kind: input, shape index: {}]
  %s12 = inlined_call_operand.vmem [shape: f32[32,1], index: 12, kind: input, shape index: {}]
  %s13 = inlined_call_operand.vmem [shape: f32[32,32], index: 13, kind: input, shape index: {}]
  %s14 = inlined_call_operand.vmem [shape: f32[32,1], index: 14, kind: input, shape index: {}]
  %s15 = inlined_call_operand.vmem [shape: f32[32,32], index: 15, kind: input, shape index: {}]
  %s16 = inlined_call_operand.vmem [shape: f32[32,1], index: 16, kind: input, shape index: {}]
  %s17 = inlined_call_operand.vmem [shape: f32[32,1], index: 17, kind: input, shape index: {}]
  %s18 = inlined_call_operand.<no memory space> [shape: f32[1,1], index: 18, kind: input, shape index: {}]
  %s19 = inlined_call_operand.hbm [shape: f32[1,128], index: 19, kind: output, shape index: {}]
  %s20 = sld [smem:[#allocation0]]
  $region86: #{tpu_custom_call.1} parent=0
    _
  %s22 = ssub.s32 1, %s20
  %s23 = scalar_select 0, %s22, %s20
  %v24 = vstv %s18
  %25 = vst [vmem:[#allocation2] sm:$0x1] %v24
  $region1: #{tpu_custom_call.1} parent=0
    #allocation3 [shape = 'u8[512]{0}', space=vmem, size = 0x400, scoped, tag = 'output window, operand 0, single buffered']
    #allocation4 [shape = 's32[1]{0}', space=sflag, size = 0x4, scoped, tag = 'scoped memory for tpu_custom_call.1']
    %26 = vsyncpa [#allocation4], 0
    // Predicated region
    $region2: #{tpu_custom_call.1} parent=1 // pred_check
      _
    $region3: #{tpu_custom_call.1} parent=1 // pred_check_branch
      %28 = sbr.rel (0) target = $region5
    $region4: #{tpu_custom_call.1} parent=1 // pred_region
      _
    $region5: #{tpu_custom_call.1} parent=1 // pred_fallthru
      _
    // Predicated region
    $region6: #{tpu_custom_call.1} parent=1 // pred_check
      _
    $region7: #{tpu_custom_call.1} parent=1 // pred_check_branch
      %30 = sbr.rel (0) target = $region9
    $region8: #{tpu_custom_call.1} parent=1 // pred_region
      _
    $region9: #{tpu_custom_call.1} parent=1 // pred_fallthru
      _
    // Predicated region
    $region10: #{tpu_custom_call.1} parent=1 // pred_check
      _
    $region11: #{tpu_custom_call.1} parent=1 // pred_check_branch
      %32 = sbr.rel (0) target = $region13
    $region12: #{tpu_custom_call.1} parent=1 // pred_region
      _
    $region13: #{tpu_custom_call.1} parent=1 // pred_fallthru
      _
    // Predicated region
    $region14: #{tpu_custom_call.1} parent=1 // pred_check
      _
    $region15: #{tpu_custom_call.1} parent=1 // pred_check_branch
      %34 = sbr.rel (0) target = $region17
    $region16: #{tpu_custom_call.1} parent=1 // pred_region
      _
    $region17: #{tpu_custom_call.1} parent=1 // pred_fallthru
      _
    // Predicated region
    $region18: #{tpu_custom_call.1} parent=1 // pred_check
      _
    $region19: #{tpu_custom_call.1} parent=1 // pred_check_branch
      %36 = sbr.rel (0) target = $region21
    $region20: #{tpu_custom_call.1} parent=1 // pred_region
      _
    $region21: #{tpu_custom_call.1} parent=1 // pred_fallthru
      _
    // Predicated region
    $region22: #{tpu_custom_call.1} parent=1 // pred_check
      _
    $region23: #{tpu_custom_call.1} parent=1 // pred_check_branch
      %38 = sbr.rel (0) target = $region25
    $region24: #{tpu_custom_call.1} parent=1 // pred_region
      _
    $region25: #{tpu_custom_call.1} parent=1 // pred_fallthru
      _
    // Predicated region
    $region26: #{tpu_custom_call.1} parent=1 // pred_check
      _
    $region27: #{tpu_custom_call.1} parent=1 // pred_check_branch
      %40 = sbr.rel (0) target = $region29
    $region28: #{tpu_custom_call.1} parent=1 // pred_region
      _
    $region29: #{tpu_custom_call.1} parent=1 // pred_fallthru
      _
    // Predicated region
    $region30: #{tpu_custom_call.1} parent=1 // pred_check
      _
    $region31: #{tpu_custom_call.1} parent=1 // pred_check_branch
      %42 = sbr.rel (0) target = $region33
    $region32: #{tpu_custom_call.1} parent=1 // pred_region
      _
    $region33: #{tpu_custom_call.1} parent=1 // pred_fallthru
      _
    // Predicated region
    $region34: #{tpu_custom_call.1} parent=1 // pred_check
      _
    $region35: #{tpu_custom_call.1} parent=1 // pred_check_branch
      %44 = sbr.rel (0) target = $region37
    $region36: #{tpu_custom_call.1} parent=1 // pred_region
      _
    $region37: #{tpu_custom_call.1} parent=1 // pred_fallthru
      _
    // Predicated region
    $region38: #{tpu_custom_call.1} parent=1 // pred_check
      _
    $region39: #{tpu_custom_call.1} parent=1 // pred_check_branch
      %46 = sbr.rel (0) target = $region41
    $region40: #{tpu_custom_call.1} parent=1 // pred_region
      _
    $region41: #{tpu_custom_call.1} parent=1 // pred_fallthru
      _
    // Predicated region
    $region42: #{tpu_custom_call.1} parent=1 // pred_check
      _
    $region43: #{tpu_custom_call.1} parent=1 // pred_check_branch
      %48 = sbr.rel (0) target = $region45
    $region44: #{tpu_custom_call.1} parent=1 // pred_region
      _
    $region45: #{tpu_custom_call.1} parent=1 // pred_fallthru
      _
    // Predicated region
    $region46: #{tpu_custom_call.1} parent=1 // pred_check
      _
    $region47: #{tpu_custom_call.1} parent=1 // pred_check_branch
      %50 = sbr.rel (0) target = $region49
    $region48: #{tpu_custom_call.1} parent=1 // pred_region
      _
    $region49: #{tpu_custom_call.1} parent=1 // pred_fallthru
      _
    // Predicated region
    $region50: #{tpu_custom_call.1} parent=1 // pred_check
      _
    $region51: #{tpu_custom_call.1} parent=1 // pred_check_branch
      %52 = sbr.rel (0) target = $region53
    $region52: #{tpu_custom_call.1} parent=1 // pred_region
      _
    $region53: #{tpu_custom_call.1} parent=1 // pred_fallthru
      _
    // Predicated region
    $region54: #{tpu_custom_call.1} parent=1 // pred_check
      _
    $region55: #{tpu_custom_call.1} parent=1 // pred_check_branch
      %54 = sbr.rel (0) target = $region57
    $region56: #{tpu_custom_call.1} parent=1 // pred_region
      _
    $region57: #{tpu_custom_call.1} parent=1 // pred_fallthru
      _
    // Predicated region
    $region58: #{tpu_custom_call.1} parent=1 // pred_check
      _
    $region59: #{tpu_custom_call.1} parent=1 // pred_check_branch
      %56 = sbr.rel (0) target = $region61
    $region60: #{tpu_custom_call.1} parent=1 // pred_region
      _
    $region61: #{tpu_custom_call.1} parent=1 // pred_fallthru
      _
    // Predicated region
    $region62: #{tpu_custom_call.1} parent=1 // pred_check
      _
    $region63: #{tpu_custom_call.1} parent=1 // pred_check_branch
      %58 = sbr.rel (0) target = $region65
    $region64: #{tpu_custom_call.1} parent=1 // pred_region
      _
    $region65: #{tpu_custom_call.1} parent=1 // pred_fallthru
      _
    // Predicated region
    $region66: #{tpu_custom_call.1} parent=1 // pred_check
      _
    $region67: #{tpu_custom_call.1} parent=1 // pred_check_branch
      %60 = sbr.rel (0) target = $region69
    $region68: #{tpu_custom_call.1} parent=1 // pred_region
      _
    $region69: #{tpu_custom_call.1} parent=1 // pred_fallthru
      _
    // Predicated region
    $region70: #{tpu_custom_call.1} parent=1 // pred_check
      _
    $region71: #{tpu_custom_call.1} parent=1 // pred_check_branch
      %62 = sbr.rel (0) target = $region73
    $region72: #{tpu_custom_call.1} parent=1 // pred_region
      _
    $region73: #{tpu_custom_call.1} parent=1 // pred_fallthru
      _
    // Predicated region
    $region74: #{tpu_custom_call.1} parent=1 // pred_check
      _
    $region75: #{tpu_custom_call.1} parent=1 // pred_check_branch
      %64 = sbr.rel (0) target = $region77
    $region76: #{tpu_custom_call.1} parent=1 // pred_region
      _
    $region77: #{tpu_custom_call.1} parent=1 // pred_fallthru
      _
    %v65 = vld [vmem:[%s0] sm:$0xff]
    %v66 = vld [vmem:[%s0 + $0x8] sm:$0xff]
    %v67 = vld [vmem:[%s0 + $0x10] sm:$0xff]
    %v68 = vld [vmem:[%s0 + $0x18] sm:$0xff]
    %v69 = vld [vmem:[%s0 + $0x20] sm:$0xff]
    %v70 = vld [vmem:[%s0 + $0x28] sm:$0xff]
    %v71 = vld [vmem:[%s0 + $0x30] sm:$0xff]
    %v72 = vld [vmem:[%s0 + $0x38] sm:$0xff]
    %v73 = vld [vmem:[%s0 + $0x40] sm:$0xff]
    %v74 = vld [vmem:[%s0 + $0x48] sm:$0xff]
    %v75 = vld [vmem:[%s0 + $0x50] sm:$0xff]
    %v76 = vld [vmem:[%s0 + $0x58] sm:$0xff]
    %v77 = vld [vmem:[%s0 + $0x60] sm:$0xff]
    %v78 = vld [vmem:[%s0 + $0x68] sm:$0xff]
    %v79 = vld [vmem:[%s0 + $0x70] sm:$0xff]
    %v80 = vld [vmem:[%s0 + $0x78] sm:$0xff]
    %v81 = vld [vmem:[%s0 + $0x80] sm:$0xff]
    %v82 = vld [vmem:[%s0 + $0x88] sm:$0xff]
    %v83 = vld [vmem:[%s0 + $0x90] sm:$0xff]
    %v84 = vld [vmem:[%s0 + $0x98] sm:$0xff]
    %v85 = vld [vmem:[%s0 + $0xa0] sm:$0xff]
    %v86 = vld [vmem:[%s0 + $0xa8] sm:$0xff]
    %v87 = vld [vmem:[%s0 + $0xb0] sm:$0xff]
    %v88 = vld [vmem:[%s0 + $0xb8] sm:$0xff]
    %v89 = vld [vmem:[%s0 + $0xc0] sm:$0xff]
    %v90 = vld [vmem:[%s0 + $0xc8] sm:$0xff]
    %v91 = vld [vmem:[%s0 + $0xd0] sm:$0xff]
    %v92 = vld [vmem:[%s0 + $0xd8] sm:$0xff]
    %v93 = vld [vmem:[%s0 + $0xe0] sm:$0xff]
    %v94 = vld [vmem:[%s0 + $0xe8] sm:$0xff]
    %v95 = vld [vmem:[%s0 + $0xf0] sm:$0xff]
    %v96 = vld [vmem:[%s0 + $0xf8] sm:$0xff]
    %v97 = vld [vmem:[%s0 + $0x100] sm:$0xff]
    %v98 = vld [vmem:[%s0 + $0x108] sm:$0xff]
    %v99 = vld [vmem:[%s0 + $0x110] sm:$0xff]
    %v100 = vld [vmem:[%s0 + $0x118] sm:$0xff]
    %v101 = vld [vmem:[%s0 + $0x120] sm:$0xff]
    %v102 = vld [vmem:[%s0 + $0x128] sm:$0xff]
    %v103 = vld [vmem:[%s0 + $0x130] sm:$0xff]
    %v104 = vld [vmem:[%s0 + $0x138] sm:$0xff]
    %v105 = vld [vmem:[%s0 + $0x140] sm:$0xff]
    %v106 = vld [vmem:[%s0 + $0x148] sm:$0xff]
    %v107 = vld [vmem:[%s0 + $0x150] sm:$0xff]
    %v108 = vld [vmem:[%s0 + $0x158] sm:$0xff]
    %v109 = vld [vmem:[%s0 + $0x160] sm:$0xff]
    %v110 = vld [vmem:[%s0 + $0x168] sm:$0xff]
    %v111 = vld [vmem:[%s0 + $0x170] sm:$0xff]
    %v112 = vld [vmem:[%s0 + $0x178] sm:$0xff]
    %v113 = vld [vmem:[%s0 + $0x180] sm:$0xff]
    %v114 = vld [vmem:[%s0 + $0x188] sm:$0xff]
    %v115 = vld [vmem:[%s0 + $0x190] sm:$0xff]
    %v116 = vld [vmem:[%s0 + $0x198] sm:$0xff]
    %v117 = vld [vmem:[%s0 + $0x1a0] sm:$0xff]
    %v118 = vld [vmem:[%s0 + $0x1a8] sm:$0xff]
    %v119 = vld [vmem:[%s0 + $0x1b0] sm:$0xff]
    %v120 = vld [vmem:[%s0 + $0x1b8] sm:$0xff]
    %v121 = vld [vmem:[%s0 + $0x1c0] sm:$0xff]
    %v122 = vld [vmem:[%s0 + $0x1c8] sm:$0xff]
    %v123 = vld [vmem:[%s0 + $0x1d0] sm:$0xff]
    %v124 = vld [vmem:[%s0 + $0x1d8] sm:$0xff]
    %v125 = vld [vmem:[%s0 + $0x1e0] sm:$0xff]
    %v126 = vld [vmem:[%s0 + $0x1e8] sm:$0xff]
    %v127 = vld [vmem:[%s0 + $0x1f0] sm:$0xff]
    %v128 = vld [vmem:[%s0 + $0x1f8] sm:$0xff]
    %v129 = vld [vmem:[%s0 + $0x200] sm:$0xff]
    %v130 = vld [vmem:[%s0 + $0x208] sm:$0xff]
    %v131 = vld [vmem:[%s0 + $0x210] sm:$0xff]
    %v132 = vld [vmem:[%s0 + $0x218] sm:$0xff]
    %v133 = vld [vmem:[%s0 + $0x220] sm:$0xff]
    %v134 = vld [vmem:[%s0 + $0x228] sm:$0xff]
    %v135 = vld [vmem:[%s0 + $0x230] sm:$0xff]
    %v136 = vld [vmem:[%s0 + $0x238] sm:$0xff]
    %v137 = vld [vmem:[%s0 + $0x240] sm:$0xff]
    %v138 = vld [vmem:[%s0 + $0x248] sm:$0xff]
    %v139 = vld [vmem:[%s0 + $0x250] sm:$0xff]
    %v140 = vld [vmem:[%s0 + $0x258] sm:$0xff]
    %v141 = vld [vmem:[%s0 + $0x260] sm:$0xff]
    %v142 = vld [vmem:[%s0 + $0x268] sm:$0xff]
    %v143 = vld [vmem:[%s0 + $0x270] sm:$0xff]
    %v144 = vld [vmem:[%s0 + $0x278] sm:$0xff]
    %v145 = vld [vmem:[%s0 + $0x280] sm:$0xff]
    %v146 = vld [vmem:[%s0 + $0x288] sm:$0xff]
    %v147 = vld [vmem:[%s0 + $0x290] sm:$0xff]
    %v148 = vld [vmem:[%s0 + $0x298] sm:$0xff]
    %v149 = vld [vmem:[%s0 + $0x2a0] sm:$0xff]
    %v150 = vld [vmem:[%s0 + $0x2a8] sm:$0xff]
    %v151 = vld [vmem:[%s0 + $0x2b0] sm:$0xff]
    %v152 = vld [vmem:[%s0 + $0x2b8] sm:$0xff]
    %v153 = vld [vmem:[%s0 + $0x2c0] sm:$0xff]
    %v154 = vld [vmem:[%s0 + $0x2c8] sm:$0xff]
    %v155 = vld [vmem:[%s0 + $0x2d0] sm:$0xff]
    %v156 = vld [vmem:[%s0 + $0x2d8] sm:$0xff]
    %v157 = vld [vmem:[%s0 + $0x2e0] sm:$0xff]
    %v158 = vld [vmem:[%s0 + $0x2e8] sm:$0xff]
    %v159 = vld [vmem:[%s0 + $0x2f0] sm:$0xff]
    %v160 = vld [vmem:[%s0 + $0x2f8] sm:$0xff]
    %v161 = vld [vmem:[%s0 + $0x300] sm:$0xff]
    %v162 = vld [vmem:[%s0 + $0x308] sm:$0xff]
    %v163 = vld [vmem:[%s0 + $0x310] sm:$0xff]
    %v164 = vld [vmem:[%s0 + $0x318] sm:$0xff]
    %v165 = vld [vmem:[%s0 + $0x320] sm:$0xff]
    %v166 = vld [vmem:[%s0 + $0x328] sm:$0xff]
    %v167 = vld [vmem:[%s0 + $0x330] sm:$0xff]
    %v168 = vld [vmem:[%s0 + $0x338] sm:$0xff]
    %v169 = vld [vmem:[%s0 + $0x340] sm:$0xff]
    %v170 = vld [vmem:[%s0 + $0x348] sm:$0xff]
    %v171 = vld [vmem:[%s0 + $0x350] sm:$0xff]
    %v172 = vld [vmem:[%s0 + $0x358] sm:$0xff]
    %v173 = vld [vmem:[%s0 + $0x360] sm:$0xff]
    %v174 = vld [vmem:[%s0 + $0x368] sm:$0xff]
    %v175 = vld [vmem:[%s0 + $0x370] sm:$0xff]
    %v176 = vld [vmem:[%s0 + $0x378] sm:$0xff]
    %v177 = vld [vmem:[%s0 + $0x380] sm:$0xff]
    %v178 = vld [vmem:[%s0 + $0x388] sm:$0xff]
    %v179 = vld [vmem:[%s0 + $0x390] sm:$0xff]
    %v180 = vld [vmem:[%s0 + $0x398] sm:$0xff]
    %v181 = vld [vmem:[%s0 + $0x3a0] sm:$0xff]
    %v182 = vld [vmem:[%s0 + $0x3a8] sm:$0xff]
    %v183 = vld [vmem:[%s0 + $0x3b0] sm:$0xff]
    %v184 = vld [vmem:[%s0 + $0x3b8] sm:$0xff]
    %v185 = vld [vmem:[%s0 + $0x3c0] sm:$0xff]
    %v186 = vld [vmem:[%s0 + $0x3c8] sm:$0xff]
    %v187 = vld [vmem:[%s0 + $0x3d0] sm:$0xff]
    %v188 = vld [vmem:[%s0 + $0x3d8] sm:$0xff]
    %v189 = vld [vmem:[%s0 + $0x3e0] sm:$0xff]
    %v190 = vld [vmem:[%s0 + $0x3e8] sm:$0xff]
    %v191 = vld [vmem:[%s0 + $0x3f0] sm:$0xff]
    %v192 = vld [vmem:[%s0 + $0x3f8] sm:$0xff]
    %v193 = vld [vmem:[%s3] sm:$0xff]
    %v194 = vld [vmem:[%s3 + $0x8] sm:$0xff]
    %v195 = vld [vmem:[%s4] sm:$0x1]
    %v197 = vlaneseq
    %v198 = vshrl.u32 %v197, 7
    %v199 = vsub.s32 0, %v198
    %v200 = vrot.slane %v195, %v199
    %vm202 = vcmask 130048
    %v204 = vsel %vm202, %v65, 0
    %v207 = vsel %vm202, %v66, 0
    %v210 = vsel %vm202, %v67, 0
    %v213 = vsel %vm202, %v68, 0
    %v216 = vsel %vm202, %v69, 0
    %v219 = vsel %vm202, %v70, 0
    %v222 = vsel %vm202, %v71, 0
    %v225 = vsel %vm202, %v72, 0
    %v228 = vsel %vm202, %v73, 0
    %v231 = vsel %vm202, %v74, 0
    %v234 = vsel %vm202, %v75, 0
    %v237 = vsel %vm202, %v76, 0
    %v240 = vsel %vm202, %v77, 0
    %v243 = vsel %vm202, %v78, 0
    %v246 = vsel %vm202, %v79, 0
    %v249 = vsel %vm202, %v80, 0
    %v252 = vsel %vm202, %v81, 0
    %v255 = vsel %vm202, %v82, 0
    %v258 = vsel %vm202, %v83, 0
    %v261 = vsel %vm202, %v84, 0
    %v264 = vsel %vm202, %v85, 0
    %v267 = vsel %vm202, %v86, 0
    %v270 = vsel %vm202, %v87, 0
    %v273 = vsel %vm202, %v88, 0
    %v276 = vsel %vm202, %v89, 0
    %v279 = vsel %vm202, %v90, 0
    %v282 = vsel %vm202, %v91, 0
    %v285 = vsel %vm202, %v92, 0
    %v288 = vsel %vm202, %v93, 0
    %v291 = vsel %vm202, %v94, 0
    %v294 = vsel %vm202, %v95, 0
    %v297 = vsel %vm202, %v96, 0
    %v300 = vsel %vm202, %v97, 0
    %v303 = vsel %vm202, %v98, 0
    %v306 = vsel %vm202, %v99, 0
    %v309 = vsel %vm202, %v100, 0
    %v312 = vsel %vm202, %v101, 0
    %v315 = vsel %vm202, %v102, 0
    %v318 = vsel %vm202, %v103, 0
    %v321 = vsel %vm202, %v104, 0
    %v324 = vsel %vm202, %v105, 0
    %v327 = vsel %vm202, %v106, 0
    %v330 = vsel %vm202, %v107, 0
    %v333 = vsel %vm202, %v108, 0
    %v336 = vsel %vm202, %v109, 0
    %v339 = vsel %vm202, %v110, 0
    %v342 = vsel %vm202, %v111, 0
    %v345 = vsel %vm202, %v112, 0
    %v348 = vsel %vm202, %v113, 0
    %v351 = vsel %vm202, %v114, 0
    %v354 = vsel %vm202, %v115, 0
    %v357 = vsel %vm202, %v116, 0
    %v360 = vsel %vm202, %v117, 0
    %v363 = vsel %vm202, %v118, 0
    %v366 = vsel %vm202, %v119, 0
    %v369 = vsel %vm202, %v120, 0
    %v372 = vsel %vm202, %v121, 0
    %v375 = vsel %vm202, %v122, 0
    %v378 = vsel %vm202, %v123, 0
    %v381 = vsel %vm202, %v124, 0
    %v384 = vsel %vm202, %v125, 0
    %v387 = vsel %vm202, %v126, 0
    %v390 = vsel %vm202, %v127, 0
    %v393 = vsel %vm202, %v128, 0
    %v396 = vsel %vm202, %v129, 0
    %v399 = vsel %vm202, %v130, 0
    %v402 = vsel %vm202, %v131, 0
    %v405 = vsel %vm202, %v132, 0
    %v408 = vsel %vm202, %v133, 0
    %v411 = vsel %vm202, %v134, 0
    %v414 = vsel %vm202, %v135, 0
    %v417 = vsel %vm202, %v136, 0
    %v420 = vsel %vm202, %v137, 0
    %v423 = vsel %vm202, %v138, 0
    %v426 = vsel %vm202, %v139, 0
    %v429 = vsel %vm202, %v140, 0
    %v432 = vsel %vm202, %v141, 0
    %v435 = vsel %vm202, %v142, 0
    %v438 = vsel %vm202, %v143, 0
    %v441 = vsel %vm202, %v144, 0
    %v444 = vsel %vm202, %v145, 0
    %v447 = vsel %vm202, %v146, 0
    %v450 = vsel %vm202, %v147, 0
    %v453 = vsel %vm202, %v148, 0
    %v456 = vsel %vm202, %v149, 0
    %v459 = vsel %vm202, %v150, 0
    %v462 = vsel %vm202, %v151, 0
    %v465 = vsel %vm202, %v152, 0
    %v468 = vsel %vm202, %v153, 0
    %v471 = vsel %vm202, %v154, 0
    %v474 = vsel %vm202, %v155, 0
    %v477 = vsel %vm202, %v156, 0
    %v480 = vsel %vm202, %v157, 0
    %v483 = vsel %vm202, %v158, 0
    %v486 = vsel %vm202, %v159, 0
    %v489 = vsel %vm202, %v160, 0
    %v492 = vsel %vm202, %v161, 0
    %v495 = vsel %vm202, %v162, 0
    %v498 = vsel %vm202, %v163, 0
    %v501 = vsel %vm202, %v164, 0
    %v504 = vsel %vm202, %v165, 0
    %v507 = vsel %vm202, %v166, 0
    %v510 = vsel %vm202, %v167, 0
    %v513 = vsel %vm202, %v168, 0
    %v516 = vsel %vm202, %v169, 0
    %v519 = vsel %vm202, %v170, 0
    %v522 = vsel %vm202, %v171, 0
    %v525 = vsel %vm202, %v172, 0
    %v528 = vsel %vm202, %v173, 0
    %v531 = vsel %vm202, %v174, 0
    %v534 = vsel %vm202, %v175, 0
    %v537 = vsel %vm202, %v176, 0
    %v540 = vsel %vm202, %v177, 0
    %v543 = vsel %vm202, %v178, 0
    %v546 = vsel %vm202, %v179, 0
    %v549 = vsel %vm202, %v180, 0
    %v552 = vsel %vm202, %v181, 0
    %v555 = vsel %vm202, %v182, 0
    %v558 = vsel %vm202, %v183, 0
    %v561 = vsel %vm202, %v184, 0
    %v564 = vsel %vm202, %v185, 0
    %v567 = vsel %vm202, %v186, 0
    %v570 = vsel %vm202, %v187, 0
    %v573 = vsel %vm202, %v188, 0
    %v576 = vsel %vm202, %v189, 0
    %v579 = vsel %vm202, %v190, 0
    %v582 = vsel %vm202, %v191, 0
    %v585 = vsel %vm202, %v192, 0
    %587 = vmatprep.subr.mxu0 0.0
    %588 = vmatpush1.msra.mxu0 %v193
    %589 = vmatprep.subr.mxu0 0.0
    %590 = vmatpush1.msra.mxu0 %v194
    %591 = vmatprep.subr.mxu0 0.0
    %592 = vmatpush1.msra.mxu0 0.0
    %593 = vmatprep.subr.mxu0 0.0
    %594 = vmatpush1.msra.mxu0 0.0
    %595 = vmatprep.subr.mxu0 0.0
    %596 = vmatpush1.msra.mxu0 0.0
    %597 = vmatprep.subr.mxu0 0.0
    %598 = vmatpush1.msra.mxu0 0.0
    %599 = vmatprep.subr.mxu0 0.0
    %600 = vmatpush1.msra.mxu0 0.0
    %601 = vmatprep.subr.mxu0 0.0
    %602 = vmatpush1.msra.mxu0 0.0
    %603 = vmatprep.subr.mxu0 0.0
    %604 = vmatpush1.msra.mxu0 0.0
    %605 = vmatprep.subr.mxu0 0.0
    %606 = vmatpush1.msra.mxu0 0.0
    %607 = vmatprep.subr.mxu0 0.0
    %608 = vmatpush1.msra.mxu0 0.0
    %609 = vmatprep.subr.mxu0 0.0
    %610 = vmatpush1.msra.mxu0 0.0
    %611 = vmatprep.subr.mxu0 0.0
    %612 = vmatpush1.msra.mxu0 0.0
    %613 = vmatprep.subr.mxu0 0.0
    %614 = vmatpush1.msra.mxu0 0.0
    %615 = vmatprep.subr.mxu0 0.0
    %616 = vmatpush1.msra.mxu0 0.0
    %617 = vmatprep.subr.mxu0 0.0
    %618 = vmatpush1.msra.mxu0 0.0
    %619 = vmatprep.subr.mxu0 0.0
    %620 = vmatpush1.msra.mxu0 0.0
    %621 = vmatprep.subr.mxu0 0.0
    %622 = vmatpush1.msra.mxu0 0.0
    %623 = vmatprep.subr.mxu0 0.0
    %624 = vmatpush1.msra.mxu0 0.0
    %625 = vmatprep.subr.mxu0 0.0
    %626 = vmatpush1.msra.mxu0 0.0
    %627 = vmatprep.subr.mxu0 0.0
    %628 = vmatpush1.msra.mxu0 0.0
    %629 = vmatprep.subr.mxu0 0.0
    %630 = vmatpush1.msra.mxu0 0.0
    %631 = vmatprep.subr.mxu0 0.0
    %632 = vmatpush1.msra.mxu0 0.0
    %633 = vmatprep.subr.mxu0 0.0
    %634 = vmatpush1.msra.mxu0 0.0
    %635 = vmatprep.subr.mxu0 0.0
    %636 = vmatpush1.msra.mxu0 0.0
    %637 = vmatprep.subr.mxu0 0.0
    %638 = vmatpush1.msra.mxu0 0.0
    %639 = vmatprep.subr.mxu0 0.0
    %640 = vmatpush1.msra.mxu0 0.0
    %641 = vmatprep.subr.mxu0 0.0
    %642 = vmatpush1.msra.mxu0 0.0
    %643 = vmatprep.subr.mxu0 0.0
    %644 = vmatpush1.msra.mxu0 0.0
    %645 = vmatprep.subr.mxu0 0.0
    %646 = vmatpush1.msra.mxu0 0.0
    %647 = vmatprep.subr.mxu0 0.0
    %648 = vmatpush1.msra.mxu0 0.0
    %649 = vmatprep.subr.mxu0 0.0
    %650 = vmatpush1.msra.mxu0 0.0
    %651 = vmatprep.mubr.f32.mxu0 0.0
    %652 = vmatmul.mubr.f32.gmra.mrb[0].mxu0 %v204
    %v653 = vpop.f32.mrb[0].mxu0
    %v654 = vadd.f32 %v200, %v653
    %v655 = vpop.f32.mrb[0].mxu0
    %656 = vmatprep.mubr.f32.mxu0 0.0
    %657 = vmatmul.mubr.f32.gmra.mrb[0].mxu0 %v207
    %v658 = vpop.f32.mrb[0].mxu0
    %v659 = vadd.f32 %v200, %v658
    %v660 = vpop.f32.mrb[0].mxu0
    %661 = vmatprep.mubr.f32.mxu0 0.0
    %662 = vmatmul.mubr.f32.gmra.mrb[0].mxu0 %v210
    %v663 = vpop.f32.mrb[0].mxu0
    %v664 = vadd.f32 %v200, %v663
    %v665 = vpop.f32.mrb[0].mxu0
    %666 = vmatprep.mubr.f32.mxu0 0.0
    %667 = vmatmul.mubr.f32.gmra.mrb[0].mxu0 %v213
    %v668 = vpop.f32.mrb[0].mxu0
    %v669 = vadd.f32 %v200, %v668
    %v670 = vpop.f32.mrb[0].mxu0
    %671 = vmatprep.mubr.f32.mxu0 0.0
    %672 = vmatmul.mubr.f32.gmra.mrb[0].mxu0 %v216
    %v673 = vpop.f32.mrb[0].mxu0
    %v674 = vadd.f32 %v200, %v673
    %v675 = vpop.f32.mrb[0].mxu0
    %676 = vmatprep.mubr.f32.mxu0 0.0
    %677 = vmatmul.mubr.f32.gmra.mrb[0].mxu0 %v219
    %v678 = vpop.f32.mrb[0].mxu0
    %v679 = vadd.f32 %v200, %v678
    %v680 = vpop.f32.mrb[0].mxu0
    %681 = vmatprep.mubr.f32.mxu0 0.0
    %682 = vmatmul.mubr.f32.gmra.mrb[0].mxu0 %v222
    %v683 = vpop.f32.mrb[0].mxu0
    %v684 = vadd.f32 %v200, %v683
    %v685 = vpop.f32.mrb[0].mxu0
    %686 = vmatprep.mubr.f32.mxu0 0.0
    %687 = vmatmul.mubr.f32.gmra.mrb[0].mxu0 %v225
    %v688 = vpop.f32.mrb[0].mxu0
    %v689 = vadd.f32 %v200, %v688
    %v690 = vpop.f32.mrb[0].mxu0
    %691 = vmatprep.mubr.f32.mxu0 0.0
    %692 = vmatmul.mubr.f32.gmra.mrb[0].mxu0 %v228
    %v693 = vpop.f32.mrb[0].mxu0
    %v694 = vadd.f32 %v200, %v693
    %v695 = vpop.f32.mrb[0].mxu0
    %696 = vmatprep.mubr.f32.mxu0 0.0
    %697 = vmatmul.mubr.f32.gmra.mrb[0].mxu0 %v231
    %v698 = vpop.f32.mrb[0].mxu0
    %v699 = vadd.f32 %v200, %v698
    %v700 = vpop.f32.mrb[0].mxu0
    %701 = vmatprep.mubr.f32.mxu0 0.0
    %702 = vmatmul.mubr.f32.gmra.mrb[0].mxu0 %v234
    %v703 = vpop.f32.mrb[0].mxu0
    %v704 = vadd.f32 %v200, %v703
    %v705 = vpop.f32.mrb[0].mxu0
    %706 = vmatprep.mubr.f32.mxu0 0.0
    %707 = vmatmul.mubr.f32.gmra.mrb[0].mxu0 %v237
    %v708 = vpop.f32.mrb[0].mxu0
    %v709 = vadd.f32 %v200, %v708
    %v710 = vpop.f32.mrb[0].mxu0
    %711 = vmatprep.mubr.f32.mxu0 0.0
    %712 = vmatmul.mubr.f32.gmra.mrb[0].mxu0 %v240
    %v713 = vpop.f32.mrb[0].mxu0
    %v714 = vadd.f32 %v200, %v713
    %v715 = vpop.f32.mrb[0].mxu0
    %716 = vmatprep.mubr.f32.mxu0 0.0
    %717 = vmatmul.mubr.f32.gmra.mrb[0].mxu0 %v243
    %v718 = vpop.f32.mrb[0].mxu0
    %v719 = vadd.f32 %v200, %v718
    %v720 = vpop.f32.mrb[0].mxu0
    %721 = vmatprep.mubr.f32.mxu0 0.0
    %722 = vmatmul.mubr.f32.gmra.mrb[0].mxu0 %v246
    %v723 = vpop.f32.mrb[0].mxu0
    %v724 = vadd.f32 %v200, %v723
    %v725 = vpop.f32.mrb[0].mxu0
    %726 = vmatprep.mubr.f32.mxu0 0.0
    %727 = vmatmul.mubr.f32.gmra.mrb[0].mxu0 %v249
    %v728 = vpop.f32.mrb[0].mxu0
    %v729 = vadd.f32 %v200, %v728
    %v730 = vpop.f32.mrb[0].mxu0
    %731 = vmatprep.mubr.f32.mxu0 0.0
    %732 = vmatmul.mubr.f32.gmra.mrb[0].mxu0 %v252
    %v733 = vpop.f32.mrb[0].mxu0
    %v734 = vadd.f32 %v200, %v733
    %v735 = vpop.f32.mrb[0].mxu0
    %736 = vmatprep.mubr.f32.mxu0 0.0
    %737 = vmatmul.mubr.f32.gmra.mrb[0].mxu0 %v255
    %v738 = vpop.f32.mrb[0].mxu0
    %v739 = vadd.f32 %v200, %v738
    %v740 = vpop.f32.mrb[0].mxu0
    %741 = vmatprep.mubr.f32.mxu0 0.0
    %742 = vmatmul.mubr.f32.gmra.mrb[0].mxu0 %v258
    %v743 = vpop.f32.mrb[0].mxu0
    %v744 = vadd.f32 %v200, %v743
    %v745 = vpop.f32.mrb[0].mxu0
    %746 = vmatprep.mubr.f32.mxu0 0.0
    %747 = vmatmul.mubr.f32.gmra.mrb[0].mxu0 %v261
    %v748 = vpop.f32.mrb[0].mxu0
    %v749 = vadd.f32 %v200, %v748
    %v750 = vpop.f32.mrb[0].mxu0
    %751 = vmatprep.mubr.f32.mxu0 0.0
    %752 = vmatmul.mubr.f32.gmra.mrb[0].mxu0 %v264
    %v753 = vpop.f32.mrb[0].mxu0
    %v754 = vadd.f32 %v200, %v753
    %v755 = vpop.f32.mrb[0].mxu0
    %756 = vmatprep.mubr.f32.mxu0 0.0
    %757 = vmatmul.mubr.f32.gmra.mrb[0].mxu0 %v267
    %v758 = vpop.f32.mrb[0].mxu0
    %v759 = vadd.f32 %v200, %v758
    %v760 = vpop.f32.mrb[0].mxu0
    %761 = vmatprep.mubr.f32.mxu0 0.0
    %762 = vmatmul.mubr.f32.gmra.mrb[0].mxu0 %v270
    %v763 = vpop.f32.mrb[0].mxu0
    %v764 = vadd.f32 %v200, %v763
    %v765 = vpop.f32.mrb[0].mxu0
    %766 = vmatprep.mubr.f32.mxu0 0.0
    %767 = vmatmul.mubr.f32.gmra.mrb[0].mxu0 %v273
    %v768 = vpop.f32.mrb[0].mxu0
    %v769 = vadd.f32 %v200, %v768
    %v770 = vpop.f32.mrb[0].mxu0
    %771 = vmatprep.mubr.f32.mxu0 0.0
    %772 = vmatmul.mubr.f32.gmra.mrb[0].mxu0 %v276
    %v773 = vpop.f32.mrb[0].mxu0
    %v774 = vadd.f32 %v200, %v773
    %v775 = vpop.f32.mrb[0].mxu0
    %776 = vmatprep.mubr.f32.mxu0 0.0
    %777 = vmatmul.mubr.f32.gmra.mrb[0].mxu0 %v279
    %v778 = vpop.f32.mrb[0].mxu0
    %v779 = vadd.f32 %v200, %v778
    %v780 = vpop.f32.mrb[0].mxu0
    %781 = vmatprep.mubr.f32.mxu0 0.0
    %782 = vmatmul.mubr.f32.gmra.mrb[0].mxu0 %v282
    %v783 = vpop.f32.mrb[0].mxu0
    %v784 = vadd.f32 %v200, %v783
    %v785 = vpop.f32.mrb[0].mxu0
    %786 = vmatprep.mubr.f32.mxu0 0.0
    %787 = vmatmul.mubr.f32.gmra.mrb[0].mxu0 %v285
    %v788 = vpop.f32.mrb[0].mxu0
    %v789 = vadd.f32 %v200, %v788
    %v790 = vpop.f32.mrb[0].mxu0
    %791 = vmatprep.mubr.f32.mxu0 0.0
    %792 = vmatmul.mubr.f32.gmra.mrb[0].mxu0 %v288
    %v793 = vpop.f32.mrb[0].mxu0
    %v794 = vadd.f32 %v200, %v793
    %v795 = vpop.f32.mrb[0].mxu0
    %796 = vmatprep.mubr.f32.mxu0 0.0
    %797 = vmatmul.mubr.f32.gmra.mrb[0].mxu0 %v291
    %v798 = vpop.f32.mrb[0].mxu0
    %v799 = vadd.f32 %v200, %v798
    %v800 = vpop.f32.mrb[0].mxu0
    %801 = vmatprep.mubr.f32.mxu0 0.0
    %802 = vmatmul.mubr.f32.gmra.mrb[0].mxu0 %v294
    %v803 = vpop.f32.mrb[0].mxu0
    %v804 = vadd.f32 %v200, %v803
    %v805 = vpop.f32.mrb[0].mxu0
    %806 = vmatprep.mubr.f32.mxu0 0.0
    %807 = vmatmul.mubr.f32.gmra.mrb[0].mxu0 %v297
    %v808 = vpop.f32.mrb[0].mxu0
    %v809 = vadd.f32 %v200, %v808
    %v810 = vpop.f32.mrb[0].mxu0
    %811 = vmatprep.mubr.f32.mxu0 0.0
    %812 = vmatmul.mubr.f32.gmra.mrb[0].mxu0 %v300
    %v813 = vpop.f32.mrb[0].mxu0
    %v814 = vadd.f32 %v200, %v813
    %v815 = vpop.f32.mrb[0].mxu0
    %816 = vmatprep.mubr.f32.mxu0 0.0
    %817 = vmatmul.mubr.f32.gmra.mrb[0].mxu0 %v303
    %v818 = vpop.f32.mrb[0].mxu0
    %v819 = vadd.f32 %v200, %v818
    %v820 = vpop.f32.mrb[0].mxu0
    %821 = vmatprep.mubr.f32.mxu0 0.0
    %822 = vmatmul.mubr.f32.gmra.mrb[0].mxu0 %v306
    %v823 = vpop.f32.mrb[0].mxu0
    %v824 = vadd.f32 %v200, %v823
    %v825 = vpop.f32.mrb[0].mxu0
    %826 = vmatprep.mubr.f32.mxu0 0.0
    %827 = vmatmul.mubr.f32.gmra.mrb[0].mxu0 %v309
    %v828 = vpop.f32.mrb[0].mxu0
    %v829 = vadd.f32 %v200, %v828
    %v830 = vpop.f32.mrb[0].mxu0
    %831 = vmatprep.mubr.f32.mxu0 0.0
    %832 = vmatmul.mubr.f32.gmra.mrb[0].mxu0 %v312
    %v833 = vpop.f32.mrb[0].mxu0
    %v834 = vadd.f32 %v200, %v833
    %v835 = vpop.f32.mrb[0].mxu0
    %836 = vmatprep.mubr.f32.mxu0 0.0
    %837 = vmatmul.mubr.f32.gmra.mrb[0].mxu0 %v315
    %v838 = vpop.f32.mrb[0].mxu0
    %v839 = vadd.f32 %v200, %v838
    %v840 = vpop.f32.mrb[0].mxu0
    %841 = vmatprep.mubr.f32.mxu0 0.0
    %842 = vmatmul.mubr.f32.gmra.mrb[0].mxu0 %v318
    %v843 = vpop.f32.mrb[0].mxu0
    %v844 = vadd.f32 %v200, %v843
    %v845 = vpop.f32.mrb[0].mxu0
    %846 = vmatprep.mubr.f32.mxu0 0.0
    %847 = vmatmul.mubr.f32.gmra.mrb[0].mxu0 %v321
    %v848 = vpop.f32.mrb[0].mxu0
    %v849 = vadd.f32 %v200, %v848
    %v850 = vpop.f32.mrb[0].mxu0
    %851 = vmatprep.mubr.f32.mxu0 0.0
    %852 = vmatmul.mubr.f32.gmra.mrb[0].mxu0 %v324
    %v853 = vpop.f32.mrb[0].mxu0
    %v854 = vadd.f32 %v200, %v853
    %v855 = vpop.f32.mrb[0].mxu0
    %856 = vmatprep.mubr.f32.mxu0 0.0
    %857 = vmatmul.mubr.f32.gmra.mrb[0].mxu0 %v327
    %v858 = vpop.f32.mrb[0].mxu0
    %v859 = vadd.f32 %v200, %v858
    %v860 = vpop.f32.mrb[0].mxu0
    %861 = vmatprep.mubr.f32.mxu0 0.0
    %862 = vmatmul.mubr.f32.gmra.mrb[0].mxu0 %v330
    %v863 = vpop.f32.mrb[0].mxu0
    %v864 = vadd.f32 %v200, %v863
    %v865 = vpop.f32.mrb[0].mxu0
    %866 = vmatprep.mubr.f32.mxu0 0.0
    %867 = vmatmul.mubr.f32.gmra.mrb[0].mxu0 %v333
    %v868 = vpop.f32.mrb[0].mxu0
    %v869 = vadd.f32 %v200, %v868
    %v870 = vpop.f32.mrb[0].mxu0
    %871 = vmatprep.mubr.f32.mxu0 0.0
    %872 = vmatmul.mubr.f32.gmra.mrb[0].mxu0 %v336
    %v873 = vpop.f32.mrb[0].mxu0
    %v874 = vadd.f32 %v200, %v873
    %v875 = vpop.f32.mrb[0].mxu0
    %876 = vmatprep.mubr.f32.mxu0 0.0
    %877 = vmatmul.mubr.f32.gmra.mrb[0].mxu0 %v339
    %v878 = vpop.f32.mrb[0].mxu0
    %v879 = vadd.f32 %v200, %v878
    %v880 = vpop.f32.mrb[0].mxu0
    %881 = vmatprep.mubr.f32.mxu0 0.0
    %882 = vmatmul.mubr.f32.gmra.mrb[0].mxu0 %v342
    %v883 = vpop.f32.mrb[0].mxu0
    %v884 = vadd.f32 %v200, %v883
    %v885 = vpop.f32.mrb[0].mxu0
    %886 = vmatprep.mubr.f32.mxu0 0.0
    %887 = vmatmul.mubr.f32.gmra.mrb[0].mxu0 %v345
    %v888 = vpop.f32.mrb[0].mxu0
    %v889 = vadd.f32 %v200, %v888
    %v890 = vpop.f32.mrb[0].mxu0
    %891 = vmatprep.mubr.f32.mxu0 0.0
    %892 = vmatmul.mubr.f32.gmra.mrb[0].mxu0 %v348
    %v893 = vpop.f32.mrb[0].mxu0
    %v894 = vadd.f32 %v200, %v893
    %v895 = vpop.f32.mrb[0].mxu0
    %896 = vmatprep.mubr.f32.mxu0 0.0
    %897 = vmatmul.mubr.f32.gmra.mrb[0].mxu0 %v351
    %v898 = vpop.f32.mrb[0].mxu0
    %v899 = vadd.f32 %v200, %v898
    %v900 = vpop.f32.mrb[0].mxu0
    %901 = vmatprep.mubr.f32.mxu0 0.0
    %902 = vmatmul.mubr.f32.gmra.mrb[0].mxu0 %v354
    %v903 = vpop.f32.mrb[0].mxu0
    %v904 = vadd.f32 %v200, %v903
    %v905 = vpop.f32.mrb[0].mxu0
    %906 = vmatprep.mubr.f32.mxu0 0.0
    %907 = vmatmul.mubr.f32.gmra.mrb[0].mxu0 %v357
    %v908 = vpop.f32.mrb[0].mxu0
    %v909 = vadd.f32 %v200, %v908
    %v910 = vpop.f32.mrb[0].mxu0
    %911 = vmatprep.mubr.f32.mxu0 0.0
    %912 = vmatmul.mubr.f32.gmra.mrb[0].mxu0 %v360
    %v913 = vpop.f32.mrb[0].mxu0
    %v914 = vadd.f32 %v200, %v913
    %v915 = vpop.f32.mrb[0].mxu0
    %916 = vmatprep.mubr.f32.mxu0 0.0
    %917 = vmatmul.mubr.f32.gmra.mrb[0].mxu0 %v363
    %v918 = vpop.f32.mrb[0].mxu0
    %v919 = vadd.f32 %v200, %v918
    %v920 = vpop.f32.mrb[0].mxu0
    %921 = vmatprep.mubr.f32.mxu0 0.0
    %922 = vmatmul.mubr.f32.gmra.mrb[0].mxu0 %v366
    %v923 = vpop.f32.mrb[0].mxu0
    %v924 = vadd.f32 %v200, %v923
    %v925 = vpop.f32.mrb[0].mxu0
    %926 = vmatprep.mubr.f32.mxu0 0.0
    %927 = vmatmul.mubr.f32.gmra.mrb[0].mxu0 %v369
    %v928 = vpop.f32.mrb[0].mxu0
    %v929 = vadd.f32 %v200, %v928
    %v930 = vpop.f32.mrb[0].mxu0
    %931 = vmatprep.mubr.f32.mxu0 0.0
    %932 = vmatmul.mubr.f32.gmra.mrb[0].mxu0 %v372
    %v933 = vpop.f32.mrb[0].mxu0
    %v934 = vadd.f32 %v200, %v933
    %v935 = vpop.f32.mrb[0].mxu0
    %936 = vmatprep.mubr.f32.mxu0 0.0
    %937 = vmatmul.mubr.f32.gmra.mrb[0].mxu0 %v375
    %v938 = vpop.f32.mrb[0].mxu0
    %v939 = vadd.f32 %v200, %v938
    %v940 = vpop.f32.mrb[0].mxu0
    %941 = vmatprep.mubr.f32.mxu0 0.0
    %942 = vmatmul.mubr.f32.gmra.mrb[0].mxu0 %v378
    %v943 = vpop.f32.mrb[0].mxu0
    %v944 = vadd.f32 %v200, %v943
    %v945 = vpop.f32.mrb[0].mxu0
    %946 = vmatprep.mubr.f32.mxu0 0.0
    %947 = vmatmul.mubr.f32.gmra.mrb[0].mxu0 %v381
    %v948 = vpop.f32.mrb[0].mxu0
    %v949 = vadd.f32 %v200, %v948
    %v950 = vpop.f32.mrb[0].mxu0
    %951 = vmatprep.mubr.f32.mxu0 0.0
    %952 = vmatmul.mubr.f32.gmra.mrb[0].mxu0 %v384
    %v953 = vpop.f32.mrb[0].mxu0
    %v954 = vadd.f32 %v200, %v953
    %v955 = vpop.f32.mrb[0].mxu0
    %956 = vmatprep.mubr.f32.mxu0 0.0
    %957 = vmatmul.mubr.f32.gmra.mrb[0].mxu0 %v387
    %v958 = vpop.f32.mrb[0].mxu0
    %v959 = vadd.f32 %v200, %v958
    %v960 = vpop.f32.mrb[0].mxu0
    %961 = vmatprep.mubr.f32.mxu0 0.0
    %962 = vmatmul.mubr.f32.gmra.mrb[0].mxu0 %v390
    %v963 = vpop.f32.mrb[0].mxu0
    %v964 = vadd.f32 %v200, %v963
    %v965 = vpop.f32.mrb[0].mxu0
    %966 = vmatprep.mubr.f32.mxu0 0.0
    %967 = vmatmul.mubr.f32.gmra.mrb[0].mxu0 %v393
    %v968 = vpop.f32.mrb[0].mxu0
    %v969 = vadd.f32 %v200, %v968
    %v970 = vpop.f32.mrb[0].mxu0
    %971 = vmatprep.mubr.f32.mxu0 0.0
    %972 = vmatmul.mubr.f32.gmra.mrb[0].mxu0 %v396
    %v973 = vpop.f32.mrb[0].mxu0
    %v974 = vadd.f32 %v200, %v973
    %v975 = vpop.f32.mrb[0].mxu0
    %976 = vmatprep.mubr.f32.mxu0 0.0
    %977 = vmatmul.mubr.f32.gmra.mrb[0].mxu0 %v399
    %v978 = vpop.f32.mrb[0].mxu0
    %v979 = vadd.f32 %v200, %v978
    %v980 = vpop.f32.mrb[0].mxu0
    %981 = vmatprep.mubr.f32.mxu0 0.0
    %982 = vmatmul.mubr.f32.gmra.mrb[0].mxu0 %v402
    %v983 = vpop.f32.mrb[0].mxu0
    %v984 = vadd.f32 %v200, %v983
    %v985 = vpop.f32.mrb[0].mxu0
    %986 = vmatprep.mubr.f32.mxu0 0.0
    %987 = vmatmul.mubr.f32.gmra.mrb[0].mxu0 %v405
    %v988 = vpop.f32.mrb[0].mxu0
    %v989 = vadd.f32 %v200, %v988
    %v990 = vpop.f32.mrb[0].mxu0
    %991 = vmatprep.mubr.f32.mxu0 0.0
    %992 = vmatmul.mubr.f32.gmra.mrb[0].mxu0 %v408
    %v993 = vpop.f32.mrb[0].mxu0
    %v994 = vadd.f32 %v200, %v993
    %v995 = vpop.f32.mrb[0].mxu0
    %996 = vmatprep.mubr.f32.mxu0 0.0
    %997 = vmatmul.mubr.f32.gmra.mrb[0].mxu0 %v411
    %v998 = vpop.f32.mrb[0].mxu0
    %v999 = vadd.f32 %v200, %v998
    %v1000 = vpop.f32.mrb[0].mxu0
    %1001 = vmatprep.mubr.f32.mxu0 0.0
    %1002 = vmatmul.mubr.f32.gmra.mrb[0].mxu0 %v414
    %v1003 = vpop.f32.mrb[0].mxu0
    %v1004 = vadd.f32 %v200, %v1003
    %v1005 = vpop.f32.mrb[0].mxu0
    %1006 = vmatprep.mubr.f32.mxu0 0.0
    %1007 = vmatmul.mubr.f32.gmra.mrb[0].mxu0 %v417
    %v1008 = vpop.f32.mrb[0].mxu0
    %v1009 = vadd.f32 %v200, %v1008
    %v1010 = vpop.f32.mrb[0].mxu0
    %1011 = vmatprep.mubr.f32.mxu0 0.0
    %1012 = vmatmul.mubr.f32.gmra.mrb[0].mxu0 %v420
    %v1013 = vpop.f32.mrb[0].mxu0
    %v1014 = vadd.f32 %v200, %v1013
    %v1015 = vpop.f32.mrb[0].mxu0
    %1016 = vmatprep.mubr.f32.mxu0 0.0
    %1017 = vmatmul.mubr.f32.gmra.mrb[0].mxu0 %v423
    %v1018 = vpop.f32.mrb[0].mxu0
    %v1019 = vadd.f32 %v200, %v1018
    %v1020 = vpop.f32.mrb[0].mxu0
    %1021 = vmatprep.mubr.f32.mxu0 0.0
    %1022 = vmatmul.mubr.f32.gmra.mrb[0].mxu0 %v426
    %v1023 = vpop.f32.mrb[0].mxu0
    %v1024 = vadd.f32 %v200, %v1023
    %v1025 = vpop.f32.mrb[0].mxu0
    %1026 = vmatprep.mubr.f32.mxu0 0.0
    %1027 = vmatmul.mubr.f32.gmra.mrb[0].mxu0 %v429
    %v1028 = vpop.f32.mrb[0].mxu0
    %v1029 = vadd.f32 %v200, %v1028
    %v1030 = vpop.f32.mrb[0].mxu0
    %1031 = vmatprep.mubr.f32.mxu0 0.0
    %1032 = vmatmul.mubr.f32.gmra.mrb[0].mxu0 %v432
    %v1033 = vpop.f32.mrb[0].mxu0
    %v1034 = vadd.f32 %v200, %v1033
    %v1035 = vpop.f32.mrb[0].mxu0
    %1036 = vmatprep.mubr.f32.mxu0 0.0
    %1037 = vmatmul.mubr.f32.gmra.mrb[0].mxu0 %v435
    %v1038 = vpop.f32.mrb[0].mxu0
    %v1039 = vadd.f32 %v200, %v1038
    %v1040 = vpop.f32.mrb[0].mxu0
    %1041 = vmatprep.mubr.f32.mxu0 0.0
    %1042 = vmatmul.mubr.f32.gmra.mrb[0].mxu0 %v438
    %v1043 = vpop.f32.mrb[0].mxu0
    %v1044 = vadd.f32 %v200, %v1043
    %v1045 = vpop.f32.mrb[0].mxu0
    %1046 = vmatprep.mubr.f32.mxu0 0.0
    %1047 = vmatmul.mubr.f32.gmra.mrb[0].mxu0 %v441
    %v1048 = vpop.f32.mrb[0].mxu0
    %v1049 = vadd.f32 %v200, %v1048
    %v1050 = vpop.f32.mrb[0].mxu0
    %1051 = vmatprep.mubr.f32.mxu0 0.0
    %1052 = vmatmul.mubr.f32.gmra.mrb[0].mxu0 %v444
    %v1053 = vpop.f32.mrb[0].mxu0
    %v1054 = vadd.f32 %v200, %v1053
    %v1055 = vpop.f32.mrb[0].mxu0
    %1056 = vmatprep.mubr.f32.mxu0 0.0
    %1057 = vmatmul.mubr.f32.gmra.mrb[0].mxu0 %v447
    %v1058 = vpop.f32.mrb[0].mxu0
    %v1059 = vadd.f32 %v200, %v1058
    %v1060 = vpop.f32.mrb[0].mxu0
    %1061 = vmatprep.mubr.f32.mxu0 0.0
    %1062 = vmatmul.mubr.f32.gmra.mrb[0].mxu0 %v450
    %v1063 = vpop.f32.mrb[0].mxu0
    %v1064 = vadd.f32 %v200, %v1063
    %v1065 = vpop.f32.mrb[0].mxu0
    %1066 = vmatprep.mubr.f32.mxu0 0.0
    %1067 = vmatmul.mubr.f32.gmra.mrb[0].mxu0 %v453
    %v1068 = vpop.f32.mrb[0].mxu0
    %v1069 = vadd.f32 %v200, %v1068
    %v1070 = vpop.f32.mrb[0].mxu0
    %1071 = vmatprep.mubr.f32.mxu0 0.0
    %1072 = vmatmul.mubr.f32.gmra.mrb[0].mxu0 %v456
    %v1073 = vpop.f32.mrb[0].mxu0
    %v1074 = vadd.f32 %v200, %v1073
    %v1075 = vpop.f32.mrb[0].mxu0
    %1076 = vmatprep.mubr.f32.mxu0 0.0
    %1077 = vmatmul.mubr.f32.gmra.mrb[0].mxu0 %v459
    %v1078 = vpop.f32.mrb[0].mxu0
    %v1079 = vadd.f32 %v200, %v1078
    %v1080 = vpop.f32.mrb[0].mxu0
    %1081 = vmatprep.mubr.f32.mxu0 0.0
    %1082 = vmatmul.mubr.f32.gmra.mrb[0].mxu0 %v462
    %v1083 = vpop.f32.mrb[0].mxu0
    %v1084 = vadd.f32 %v200, %v1083
    %v1085 = vpop.f32.mrb[0].mxu0
    %1086 = vmatprep.mubr.f32.mxu0 0.0
    %1087 = vmatmul.mubr.f32.gmra.mrb[0].mxu0 %v465
    %v1088 = vpop.f32.mrb[0].mxu0
    %v1089 = vadd.f32 %v200, %v1088
    %v1090 = vpop.f32.mrb[0].mxu0
    %1091 = vmatprep.mubr.f32.mxu0 0.0
    %1092 = vmatmul.mubr.f32.gmra.mrb[0].mxu0 %v468
    %v1093 = vpop.f32.mrb[0].mxu0
    %v1094 = vadd.f32 %v200, %v1093
    %v1095 = vpop.f32.mrb[0].mxu0
    %1096 = vmatprep.mubr.f32.mxu0 0.0
    %1097 = vmatmul.mubr.f32.gmra.mrb[0].mxu0 %v471
    %v1098 = vpop.f32.mrb[0].mxu0
    %v1099 = vadd.f32 %v200, %v1098
    %v1100 = vpop.f32.mrb[0].mxu0
    %1101 = vmatprep.mubr.f32.mxu0 0.0
    %1102 = vmatmul.mubr.f32.gmra.mrb[0].mxu0 %v474
    %v1103 = vpop.f32.mrb[0].mxu0
    %v1104 = vadd.f32 %v200, %v1103
    %v1105 = vpop.f32.mrb[0].mxu0
    %1106 = vmatprep.mubr.f32.mxu0 0.0
    %1107 = vmatmul.mubr.f32.gmra.mrb[0].mxu0 %v477
    %v1108 = vpop.f32.mrb[0].mxu0
    %v1109 = vadd.f32 %v200, %v1108
    %v1110 = vpop.f32.mrb[0].mxu0
    %1111 = vmatprep.mubr.f32.mxu0 0.0
    %1112 = vmatmul.mubr.f32.gmra.mrb[0].mxu0 %v480
    %v1113 = vpop.f32.mrb[0].mxu0
    %v1114 = vadd.f32 %v200, %v1113
    %v1115 = vpop.f32.mrb[0].mxu0
    %1116 = vmatprep.mubr.f32.mxu0 0.0
    %1117 = vmatmul.mubr.f32.gmra.mrb[0].mxu0 %v483
    %v1118 = vpop.f32.mrb[0].mxu0
    %v1119 = vadd.f32 %v200, %v1118
    %v1120 = vpop.f32.mrb[0].mxu0
    %1121 = vmatprep.mubr.f32.mxu0 0.0
    %1122 = vmatmul.mubr.f32.gmra.mrb[0].mxu0 %v486
    %v1123 = vpop.f32.mrb[0].mxu0
    %v1124 = vadd.f32 %v200, %v1123
    %v1125 = vpop.f32.mrb[0].mxu0
    %1126 = vmatprep.mubr.f32.mxu0 0.0
    %1127 = vmatmul.mubr.f32.gmra.mrb[0].mxu0 %v489
    %v1128 = vpop.f32.mrb[0].mxu0
    %v1129 = vadd.f32 %v200, %v1128
    %v1130 = vpop.f32.mrb[0].mxu0
    %1131 = vmatprep.mubr.f32.mxu0 0.0
    %1132 = vmatmul.mubr.f32.gmra.mrb[0].mxu0 %v492
    %v1133 = vpop.f32.mrb[0].mxu0
    %v1134 = vadd.f32 %v200, %v1133
    %v1135 = vpop.f32.mrb[0].mxu0
    %1136 = vmatprep.mubr.f32.mxu0 0.0
    %1137 = vmatmul.mubr.f32.gmra.mrb[0].mxu0 %v495
    %v1138 = vpop.f32.mrb[0].mxu0
    %v1139 = vadd.f32 %v200, %v1138
    %v1140 = vpop.f32.mrb[0].mxu0
    %1141 = vmatprep.mubr.f32.mxu0 0.0
    %1142 = vmatmul.mubr.f32.gmra.mrb[0].mxu0 %v498
    %v1143 = vpop.f32.mrb[0].mxu0
    %v1144 = vadd.f32 %v200, %v1143
    %v1145 = vpop.f32.mrb[0].mxu0
    %1146 = vmatprep.mubr.f32.mxu0 0.0
    %1147 = vmatmul.mubr.f32.gmra.mrb[0].mxu0 %v501
    %v1148 = vpop.f32.mrb[0].mxu0
    %v1149 = vadd.f32 %v200, %v1148
    %v1150 = vpop.f32.mrb[0].mxu0
    %1151 = vmatprep.mubr.f32.mxu0 0.0
    %1152 = vmatmul.mubr.f32.gmra.mrb[0].mxu0 %v504
    %v1153 = vpop.f32.mrb[0].mxu0
    %v1154 = vadd.f32 %v200, %v1153
    %v1155 = vpop.f32.mrb[0].mxu0
    %1156 = vmatprep.mubr.f32.mxu0 0.0
    %1157 = vmatmul.mubr.f32.gmra.mrb[0].mxu0 %v507
    %v1158 = vpop.f32.mrb[0].mxu0
    %v1159 = vadd.f32 %v200, %v1158
    %v1160 = vpop.f32.mrb[0].mxu0
    %1161 = vmatprep.mubr.f32.mxu0 0.0
    %1162 = vmatmul.mubr.f32.gmra.mrb[0].mxu0 %v510
    %v1163 = vpop.f32.mrb[0].mxu0
    %v1164 = vadd.f32 %v200, %v1163
    %v1165 = vpop.f32.mrb[0].mxu0
    %1166 = vmatprep.mubr.f32.mxu0 0.0
    %1167 = vmatmul.mubr.f32.gmra.mrb[0].mxu0 %v513
    %v1168 = vpop.f32.mrb[0].mxu0
    %v1169 = vadd.f32 %v200, %v1168
    %v1170 = vpop.f32.mrb[0].mxu0
    %1171 = vmatprep.mubr.f32.mxu0 0.0
    %1172 = vmatmul.mubr.f32.gmra.mrb[0].mxu0 %v516
    %v1173 = vpop.f32.mrb[0].mxu0
    %v1174 = vadd.f32 %v200, %v1173
    %v1175 = vpop.f32.mrb[0].mxu0
    %1176 = vmatprep.mubr.f32.mxu0 0.0
    %1177 = vmatmul.mubr.f32.gmra.mrb[0].mxu0 %v519
    %v1178 = vpop.f32.mrb[0].mxu0
    %v1179 = vadd.f32 %v200, %v1178
    %v1180 = vpop.f32.mrb[0].mxu0
    %1181 = vmatprep.mubr.f32.mxu0 0.0
    %1182 = vmatmul.mubr.f32.gmra.mrb[0].mxu0 %v522
    %v1183 = vpop.f32.mrb[0].mxu0
    %v1184 = vadd.f32 %v200, %v1183
    %v1185 = vpop.f32.mrb[0].mxu0
    %1186 = vmatprep.mubr.f32.mxu0 0.0
    %1187 = vmatmul.mubr.f32.gmra.mrb[0].mxu0 %v525
    %v1188 = vpop.f32.mrb[0].mxu0
    %v1189 = vadd.f32 %v200, %v1188
    %v1190 = vpop.f32.mrb[0].mxu0
    %1191 = vmatprep.mubr.f32.mxu0 0.0
    %1192 = vmatmul.mubr.f32.gmra.mrb[0].mxu0 %v528
    %v1193 = vpop.f32.mrb[0].mxu0
    %v1194 = vadd.f32 %v200, %v1193
    %v1195 = vpop.f32.mrb[0].mxu0
    %1196 = vmatprep.mubr.f32.mxu0 0.0
    %1197 = vmatmul.mubr.f32.gmra.mrb[0].mxu0 %v531
    %v1198 = vpop.f32.mrb[0].mxu0
    %v1199 = vadd.f32 %v200, %v1198
    %v1200 = vpop.f32.mrb[0].mxu0
    %1201 = vmatprep.mubr.f32.mxu0 0.0
    %1202 = vmatmul.mubr.f32.gmra.mrb[0].mxu0 %v534
    %v1203 = vpop.f32.mrb[0].mxu0
    %v1204 = vadd.f32 %v200, %v1203
    %v1205 = vpop.f32.mrb[0].mxu0
    %1206 = vmatprep.mubr.f32.mxu0 0.0
    %1207 = vmatmul.mubr.f32.gmra.mrb[0].mxu0 %v537
    %v1208 = vpop.f32.mrb[0].mxu0
    %v1209 = vadd.f32 %v200, %v1208
    %v1210 = vpop.f32.mrb[0].mxu0
    %1211 = vmatprep.mubr.f32.mxu0 0.0
    %1212 = vmatmul.mubr.f32.gmra.mrb[0].mxu0 %v540
    %v1213 = vpop.f32.mrb[0].mxu0
    %v1214 = vadd.f32 %v200, %v1213
    %v1215 = vpop.f32.mrb[0].mxu0
    %1216 = vmatprep.mubr.f32.mxu0 0.0
    %1217 = vmatmul.mubr.f32.gmra.mrb[0].mxu0 %v543
    %v1218 = vpop.f32.mrb[0].mxu0
    %v1219 = vadd.f32 %v200, %v1218
    %v1220 = vpop.f32.mrb[0].mxu0
    %1221 = vmatprep.mubr.f32.mxu0 0.0
    %1222 = vmatmul.mubr.f32.gmra.mrb[0].mxu0 %v546
    %v1223 = vpop.f32.mrb[0].mxu0
    %v1224 = vadd.f32 %v200, %v1223
    %v1225 = vpop.f32.mrb[0].mxu0
    %1226 = vmatprep.mubr.f32.mxu0 0.0
    %1227 = vmatmul.mubr.f32.gmra.mrb[0].mxu0 %v549
    %v1228 = vpop.f32.mrb[0].mxu0
    %v1229 = vadd.f32 %v200, %v1228
    %v1230 = vpop.f32.mrb[0].mxu0
    %1231 = vmatprep.mubr.f32.mxu0 0.0
    %1232 = vmatmul.mubr.f32.gmra.mrb[0].mxu0 %v552
    %v1233 = vpop.f32.mrb[0].mxu0
    %v1234 = vadd.f32 %v200, %v1233
    %v1235 = vpop.f32.mrb[0].mxu0
    %1236 = vmatprep.mubr.f32.mxu0 0.0
    %1237 = vmatmul.mubr.f32.gmra.mrb[0].mxu0 %v555
    %v1238 = vpop.f32.mrb[0].mxu0
    %v1239 = vadd.f32 %v200, %v1238
    %v1240 = vpop.f32.mrb[0].mxu0
    %1241 = vmatprep.mubr.f32.mxu0 0.0
    %1242 = vmatmul.mubr.f32.gmra.mrb[0].mxu0 %v558
    %v1243 = vpop.f32.mrb[0].mxu0
    %v1244 = vadd.f32 %v200, %v1243
    %v1245 = vpop.f32.mrb[0].mxu0
    %1246 = vmatprep.mubr.f32.mxu0 0.0
    %1247 = vmatmul.mubr.f32.gmra.mrb[0].mxu0 %v561
    %v1248 = vpop.f32.mrb[0].mxu0
    %v1249 = vadd.f32 %v200, %v1248
    %v1250 = vpop.f32.mrb[0].mxu0
    %1251 = vmatprep.mubr.f32.mxu0 0.0
    %1252 = vmatmul.mubr.f32.gmra.mrb[0].mxu0 %v564
    %v1253 = vpop.f32.mrb[0].mxu0
    %v1254 = vadd.f32 %v200, %v1253
    %v1255 = vpop.f32.mrb[0].mxu0
    %1256 = vmatprep.mubr.f32.mxu0 0.0
    %1257 = vmatmul.mubr.f32.gmra.mrb[0].mxu0 %v567
    %v1258 = vpop.f32.mrb[0].mxu0
    %v1259 = vadd.f32 %v200, %v1258
    %v1260 = vpop.f32.mrb[0].mxu0
    %1261 = vmatprep.mubr.f32.mxu0 0.0
    %1262 = vmatmul.mubr.f32.gmra.mrb[0].mxu0 %v570
    %v1263 = vpop.f32.mrb[0].mxu0
    %v1264 = vadd.f32 %v200, %v1263
    %v1265 = vpop.f32.mrb[0].mxu0
    %1266 = vmatprep.mubr.f32.mxu0 0.0
    %1267 = vmatmul.mubr.f32.gmra.mrb[0].mxu0 %v573
    %v1268 = vpop.f32.mrb[0].mxu0
    %v1269 = vadd.f32 %v200, %v1268
    %v1270 = vpop.f32.mrb[0].mxu0
    %1271 = vmatprep.mubr.f32.mxu0 0.0
    %1272 = vmatmul.mubr.f32.gmra.mrb[0].mxu0 %v576
    %v1273 = vpop.f32.mrb[0].mxu0
    %v1274 = vadd.f32 %v200, %v1273
    %v1275 = vpop.f32.mrb[0].mxu0
    %1276 = vmatprep.mubr.f32.mxu0 0.0
    %1277 = vmatmul.mubr.f32.gmra.mrb[0].mxu0 %v579
    %v1278 = vpop.f32.mrb[0].mxu0
    %v1279 = vadd.f32 %v200, %v1278
    %v1280 = vpop.f32.mrb[0].mxu0
    %1281 = vmatprep.mubr.f32.mxu0 0.0
    %1282 = vmatmul.mubr.f32.gmra.mrb[0].mxu0 %v582
    %v1283 = vpop.f32.mrb[0].mxu0
    %v1284 = vadd.f32 %v200, %v1283
    %v1285 = vpop.f32.mrb[0].mxu0
    %1286 = vmatprep.mubr.f32.mxu0 0.0
    %1287 = vmatmul.mubr.f32.gmra.mrb[0].mxu0 %v585
    %v1288 = vpop.f32.mrb[0].mxu0
    %v1289 = vadd.f32 %v200, %v1288
    %v1290 = vpop.f32.mrb[0].mxu0
    %1291 = vdwg.mxu0
    %v1292 = vmax.f32 %v654, 0.0
    %v1293 = vmax.f32 %v659, 0.0
    %v1294 = vmax.f32 %v664, 0.0
    %v1295 = vmax.f32 %v669, 0.0
    %v1296 = vmax.f32 %v674, 0.0
    %v1297 = vmax.f32 %v679, 0.0
    %v1298 = vmax.f32 %v684, 0.0
    %v1299 = vmax.f32 %v689, 0.0
    %v1300 = vmax.f32 %v694, 0.0
    %v1301 = vmax.f32 %v699, 0.0
    %v1302 = vmax.f32 %v704, 0.0
    %v1303 = vmax.f32 %v709, 0.0
    %v1304 = vmax.f32 %v714, 0.0
    %v1305 = vmax.f32 %v719, 0.0
    %v1306 = vmax.f32 %v724, 0.0
    %v1307 = vmax.f32 %v729, 0.0
    %v1308 = vmax.f32 %v734, 0.0
    %v1309 = vmax.f32 %v739, 0.0
    %v1310 = vmax.f32 %v744, 0.0
    %v1311 = vmax.f32 %v749, 0.0
    %v1312 = vmax.f32 %v754, 0.0
    %v1313 = vmax.f32 %v759, 0.0
    %v1314 = vmax.f32 %v764, 0.0
    %v1315 = vmax.f32 %v769, 0.0
    %v1316 = vmax.f32 %v774, 0.0
    %v1317 = vmax.f32 %v779, 0.0
    %v1318 = vmax.f32 %v784, 0.0
    %v1319 = vmax.f32 %v789, 0.0
    %v1320 = vmax.f32 %v794, 0.0
    %v1321 = vmax.f32 %v799, 0.0
    %v1322 = vmax.f32 %v804, 0.0
    %v1323 = vmax.f32 %v809, 0.0
    %v1324 = vmax.f32 %v814, 0.0
    %v1325 = vmax.f32 %v819, 0.0
    %v1326 = vmax.f32 %v824, 0.0
    %v1327 = vmax.f32 %v829, 0.0
    %v1328 = vmax.f32 %v834, 0.0
    %v1329 = vmax.f32 %v839, 0.0
    %v1330 = vmax.f32 %v844, 0.0
    %v1331 = vmax.f32 %v849, 0.0
    %v1332 = vmax.f32 %v854, 0.0
    %v1333 = vmax.f32 %v859, 0.0
    %v1334 = vmax.f32 %v864, 0.0
    %v1335 = vmax.f32 %v869, 0.0
    %v1336 = vmax.f32 %v874, 0.0
    %v1337 = vmax.f32 %v879, 0.0
    %v1338 = vmax.f32 %v884, 0.0
    %v1339 = vmax.f32 %v889, 0.0
    %v1340 = vmax.f32 %v894, 0.0
    %v1341 = vmax.f32 %v899, 0.0
    %v1342 = vmax.f32 %v904, 0.0
    %v1343 = vmax.f32 %v909, 0.0
    %v1344 = vmax.f32 %v914, 0.0
    %v1345 = vmax.f32 %v919, 0.0
    %v1346 = vmax.f32 %v924, 0.0
    %v1347 = vmax.f32 %v929, 0.0
    %v1348 = vmax.f32 %v934, 0.0
    %v1349 = vmax.f32 %v939, 0.0
    %v1350 = vmax.f32 %v944, 0.0
    %v1351 = vmax.f32 %v949, 0.0
    %v1352 = vmax.f32 %v954, 0.0
    %v1353 = vmax.f32 %v959, 0.0
    %v1354 = vmax.f32 %v964, 0.0
    %v1355 = vmax.f32 %v969, 0.0
    %v1356 = vmax.f32 %v974, 0.0
    %v1357 = vmax.f32 %v979, 0.0
    %v1358 = vmax.f32 %v984, 0.0
    %v1359 = vmax.f32 %v989, 0.0
    %v1360 = vmax.f32 %v994, 0.0
    %v1361 = vmax.f32 %v999, 0.0
    %v1362 = vmax.f32 %v1004, 0.0
    %v1363 = vmax.f32 %v1009, 0.0
    %v1364 = vmax.f32 %v1014, 0.0
    %v1365 = vmax.f32 %v1019, 0.0
    %v1366 = vmax.f32 %v1024, 0.0
    %v1367 = vmax.f32 %v1029, 0.0
    %v1368 = vmax.f32 %v1034, 0.0
    %v1369 = vmax.f32 %v1039, 0.0
    %v1370 = vmax.f32 %v1044, 0.0
    %v1371 = vmax.f32 %v1049, 0.0
    %v1372 = vmax.f32 %v1054, 0.0
    %v1373 = vmax.f32 %v1059, 0.0
    %v1374 = vmax.f32 %v1064, 0.0
    %v1375 = vmax.f32 %v1069, 0.0
    %v1376 = vmax.f32 %v1074, 0.0
    %v1377 = vmax.f32 %v1079, 0.0
    %v1378 = vmax.f32 %v1084, 0.0
    %v1379 = vmax.f32 %v1089, 0.0
    %v1380 = vmax.f32 %v1094, 0.0
    %v1381 = vmax.f32 %v1099, 0.0
    %v1382 = vmax.f32 %v1104, 0.0
    %v1383 = vmax.f32 %v1109, 0.0
    %v1384 = vmax.f32 %v1114, 0.0
    %v1385 = vmax.f32 %v1119, 0.0
    %v1386 = vmax.f32 %v1124, 0.0
    %v1387 = vmax.f32 %v1129, 0.0
    %v1388 = vmax.f32 %v1134, 0.0
    %v1389 = vmax.f32 %v1139, 0.0
    %v1390 = vmax.f32 %v1144, 0.0
    %v1391 = vmax.f32 %v1149, 0.0
    %v1392 = vmax.f32 %v1154, 0.0
    %v1393 = vmax.f32 %v1159, 0.0
    %v1394 = vmax.f32 %v1164, 0.0
    %v1395 = vmax.f32 %v1169, 0.0
    %v1396 = vmax.f32 %v1174, 0.0
    %v1397 = vmax.f32 %v1179, 0.0
    %v1398 = vmax.f32 %v1184, 0.0
    %v1399 = vmax.f32 %v1189, 0.0
    %v1400 = vmax.f32 %v1194, 0.0
    %v1401 = vmax.f32 %v1199, 0.0
    %v1402 = vmax.f32 %v1204, 0.0
    %v1403 = vmax.f32 %v1209, 0.0
    %v1404 = vmax.f32 %v1214, 0.0
    %v1405 = vmax.f32 %v1219, 0.0
    %v1406 = vmax.f32 %v1224, 0.0
    %v1407 = vmax.f32 %v1229, 0.0
    %v1408 = vmax.f32 %v1234, 0.0
    %v1409 = vmax.f32 %v1239, 0.0
    %v1410 = vmax.f32 %v1244, 0.0
    %v1411 = vmax.f32 %v1249, 0.0
    %v1412 = vmax.f32 %v1254, 0.0
    %v1413 = vmax.f32 %v1259, 0.0
    %v1414 = vmax.f32 %v1264, 0.0
    %v1415 = vmax.f32 %v1269, 0.0
    %v1416 = vmax.f32 %v1274, 0.0
    %v1417 = vmax.f32 %v1279, 0.0
    %v1418 = vmax.f32 %v1284, 0.0
    %v1419 = vmax.f32 %v1289, 0.0
    %v1420 = vld [vmem:[%s5] sm:$0xff]
    %v1421 = vld [vmem:[%s5 + $0x8] sm:$0xff]
    %v1422 = vld [vmem:[%s5 + $0x10] sm:$0xff]
    %v1423 = vld [vmem:[%s5 + $0x18] sm:$0xff]
    %v1424 = vld [vmem:[%s6] sm:$0x1]
    %v1426 = vlaneseq
    %v1427 = vshrl.u32 %v1426, 7
    %v1428 = vsub.s32 0, %v1427
    %v1429 = vrot.slane %v1424, %v1428
    %vm1431 = vcmask 261120
    %v1433 = vsel %vm1431, %v1292, 0
    %v1436 = vsel %vm1431, %v1293, 0
    %v1439 = vsel %vm1431, %v1294, 0
    %v1442 = vsel %vm1431, %v1295, 0
    %v1445 = vsel %vm1431, %v1296, 0
    %v1448 = vsel %vm1431, %v1297, 0
    %v1451 = vsel %vm1431, %v1298, 0
    %v1454 = vsel %vm1431, %v1299, 0
    %v1457 = vsel %vm1431, %v1300, 0
    %v1460 = vsel %vm1431, %v1301, 0
    %v1463 = vsel %vm1431, %v1302, 0
    %v1466 = vsel %vm1431, %v1303, 0
    %v1469 = vsel %vm1431, %v1304, 0
    %v1472 = vsel %vm1431, %v1305, 0
    %v1475 = vsel %vm1431, %v1306, 0
    %v1478 = vsel %vm1431, %v1307, 0
    %v1481 = vsel %vm1431, %v1308, 0
    %v1484 = vsel %vm1431, %v1309, 0
    %v1487 = vsel %vm1431, %v1310, 0
    %v1490 = vsel %vm1431, %v1311, 0
    %v1493 = vsel %vm1431, %v1312, 0
    %v1496 = vsel %vm1431, %v1313, 0
    %v1499 = vsel %vm1431, %v1314, 0
    %v1502 = vsel %vm1431, %v1315, 0
    %v1505 = vsel %vm1431, %v1316, 0
    %v1508 = vsel %vm1431, %v1317, 0
    %v1511 = vsel %vm1431, %v1318, 0
    %v1514 = vsel %vm1431, %v1319, 0
    %v1517 = vsel %vm1431, %v1320, 0
    %v1520 = vsel %vm1431, %v1321, 0
    %v1523 = vsel %vm1431, %v1322, 0
    %v1526 = vsel %vm1431, %v1323, 0
    %v1529 = vsel %vm1431, %v1324, 0
    %v1532 = vsel %vm1431, %v1325, 0
    %v1535 = vsel %vm1431, %v1326, 0
    %v1538 = vsel %vm1431, %v1327, 0
    %v1541 = vsel %vm1431, %v1328, 0
    %v1544 = vsel %vm1431, %v1329, 0
    %v1547 = vsel %vm1431, %v1330, 0
    %v1550 = vsel %vm1431, %v1331, 0
    %v1553 = vsel %vm1431, %v1332, 0
    %v1556 = vsel %vm1431, %v1333, 0
    %v1559 = vsel %vm1431, %v1334, 0
    %v1562 = vsel %vm1431, %v1335, 0
    %v1565 = vsel %vm1431, %v1336, 0
    %v1568 = vsel %vm1431, %v1337, 0
    %v1571 = vsel %vm1431, %v1338, 0
    %v1574 = vsel %vm1431, %v1339, 0
    %v1577 = vsel %vm1431, %v1340, 0
    %v1580 = vsel %vm1431, %v1341, 0
    %v1583 = vsel %vm1431, %v1342, 0
    %v1586 = vsel %vm1431, %v1343, 0
    %v1589 = vsel %vm1431, %v1344, 0
    %v1592 = vsel %vm1431, %v1345, 0
    %v1595 = vsel %vm1431, %v1346, 0
    %v1598 = vsel %vm1431, %v1347, 0
    %v1601 = vsel %vm1431, %v1348, 0
    %v1604 = vsel %vm1431, %v1349, 0
    %v1607 = vsel %vm1431, %v1350, 0
    %v1610 = vsel %vm1431, %v1351, 0
    %v1613 = vsel %vm1431, %v1352, 0
    %v1616 = vsel %vm1431, %v1353, 0
    %v1619 = vsel %vm1431, %v1354, 0
    %v1622 = vsel %vm1431, %v1355, 0
    %v1625 = vsel %vm1431, %v1356, 0
    %v1628 = vsel %vm1431, %v1357, 0
    %v1631 = vsel %vm1431, %v1358, 0
    %v1634 = vsel %vm1431, %v1359, 0
    %v1637 = vsel %vm1431, %v1360, 0
    %v1640 = vsel %vm1431, %v1361, 0
    %v1643 = vsel %vm1431, %v1362, 0
    %v1646 = vsel %vm1431, %v1363, 0
    %v1649 = vsel %vm1431, %v1364, 0
    %v1652 = vsel %vm1431, %v1365, 0
    %v1655 = vsel %vm1431, %v1366, 0
    %v1658 = vsel %vm1431, %v1367, 0
    %v1661 = vsel %vm1431, %v1368, 0
    %v1664 = vsel %vm1431, %v1369, 0
    %v1667 = vsel %vm1431, %v1370, 0
    %v1670 = vsel %vm1431, %v1371, 0
    %v1673 = vsel %vm1431, %v1372, 0
    %v1676 = vsel %vm1431, %v1373, 0
    %v1679 = vsel %vm1431, %v1374, 0
    %v1682 = vsel %vm1431, %v1375, 0
    %v1685 = vsel %vm1431, %v1376, 0
    %v1688 = vsel %vm1431, %v1377, 0
    %v1691 = vsel %vm1431, %v1378, 0
    %v1694 = vsel %vm1431, %v1379, 0
    %v1697 = vsel %vm1431, %v1380, 0
    %v1700 = vsel %vm1431, %v1381, 0
    %v1703 = vsel %vm1431, %v1382, 0
    %v1706 = vsel %vm1431, %v1383, 0
    %v1709 = vsel %vm1431, %v1384, 0
    %v1712 = vsel %vm1431, %v1385, 0
    %v1715 = vsel %vm1431, %v1386, 0
    %v1718 = vsel %vm1431, %v1387, 0
    %v1721 = vsel %vm1431, %v1388, 0
    %v1724 = vsel %vm1431, %v1389, 0
    %v1727 = vsel %vm1431, %v1390, 0
    %v1730 = vsel %vm1431, %v1391, 0
    %v1733 = vsel %vm1431, %v1392, 0
    %v1736 = vsel %vm1431, %v1393, 0
    %v1739 = vsel %vm1431, %v1394, 0
    %v1742 = vsel %vm1431, %v1395, 0
    %v1745 = vsel %vm1431, %v1396, 0
    %v1748 = vsel %vm1431, %v1397, 0
    %v1751 = vsel %vm1431, %v1398, 0
    %v1754 = vsel %vm1431, %v1399, 0
    %v1757 = vsel %vm1431, %v1400, 0
    %v1760 = vsel %vm1431, %v1401, 0
    %v1763 = vsel %vm1431, %v1402, 0
    %v1766 = vsel %vm1431, %v1403, 0
    %v1769 = vsel %vm1431, %v1404, 0
    %v1772 = vsel %vm1431, %v1405, 0
    %v1775 = vsel %vm1431, %v1406, 0
    %v1778 = vsel %vm1431, %v1407, 0
    %v1781 = vsel %vm1431, %v1408, 0
    %v1784 = vsel %vm1431, %v1409, 0
    %v1787 = vsel %vm1431, %v1410, 0
    %v1790 = vsel %vm1431, %v1411, 0
    %v1793 = vsel %vm1431, %v1412, 0
    %v1796 = vsel %vm1431, %v1413, 0
    %v1799 = vsel %vm1431, %v1414, 0
    %v1802 = vsel %vm1431, %v1415, 0
    %v1805 = vsel %vm1431, %v1416, 0
    %v1808 = vsel %vm1431, %v1417, 0
    %v1811 = vsel %vm1431, %v1418, 0
    %v1814 = vsel %vm1431, %v1419, 0
    %1816 = vmatprep.subr.mxu0 0.0
    %1817 = vmatpush1.msra.mxu0 %v1420
    %1818 = vmatprep.subr.mxu0 0.0
    %1819 = vmatpush1.msra.mxu0 %v1421
    %1820 = vmatprep.subr.mxu0 0.0
    %1821 = vmatpush1.msra.mxu0 %v1422
    %1822 = vmatprep.subr.mxu0 0.0
    %1823 = vmatpush1.msra.mxu0 %v1423
    %1824 = vmatprep.subr.mxu0 0.0
    %1825 = vmatpush1.msra.mxu0 0.0
    %1826 = vmatprep.subr.mxu0 0.0
    %1827 = vmatpush1.msra.mxu0 0.0
    %1828 = vmatprep.subr.mxu0 0.0
    %1829 = vmatpush1.msra.mxu0 0.0
    %1830 = vmatprep.subr.mxu0 0.0
    %1831 = vmatpush1.msra.mxu0 0.0
    %1832 = vmatprep.subr.mxu0 0.0
    %1833 = vmatpush1.msra.mxu0 0.0
    %1834 = vmatprep.subr.mxu0 0.0
    %1835 = vmatpush1.msra.mxu0 0.0
    %1836 = vmatprep.subr.mxu0 0.0
    %1837 = vmatpush1.msra.mxu0 0.0
    %1838 = vmatprep.subr.mxu0 0.0
    %1839 = vmatpush1.msra.mxu0 0.0
    %1840 = vmatprep.subr.mxu0 0.0
    %1841 = vmatpush1.msra.mxu0 0.0
    %1842 = vmatprep.subr.mxu0 0.0
    %1843 = vmatpush1.msra.mxu0 0.0
    %1844 = vmatprep.subr.mxu0 0.0
    %1845 = vmatpush1.msra.mxu0 0.0
    %1846 = vmatprep.subr.mxu0 0.0
    %1847 = vmatpush1.msra.mxu0 0.0
    %1848 = vmatprep.subr.mxu0 0.0
    %1849 = vmatpush1.msra.mxu0 0.0
    %1850 = vmatprep.subr.mxu0 0.0
    %1851 = vmatpush1.msra.mxu0 0.0
    %1852 = vmatprep.subr.mxu0 0.0
    %1853 = vmatpush1.msra.mxu0 0.0
    %1854 = vmatprep.subr.mxu0 0.0
    %1855 = vmatpush1.msra.mxu0 0.0
    %1856 = vmatprep.subr.mxu0 0.0
    %1857 = vmatpush1.msra.mxu0 0.0
    %1858 = vmatprep.subr.mxu0 0.0
    %1859 = vmatpush1.msra.mxu0 0.0
    %1860 = vmatprep.subr.mxu0 0.0
    %1861 = vmatpush1.msra.mxu0 0.0
    %1862 = vmatprep.subr.mxu0 0.0
    %1863 = vmatpush1.msra.mxu0 0.0
    %1864 = vmatprep.subr.mxu0 0.0
    %1865 = vmatpush1.msra.mxu0 0.0
    %1866 = vmatprep.subr.mxu0 0.0
    %1867 = vmatpush1.msra.mxu0 0.0
    %1868 = vmatprep.subr.mxu0 0.0
    %1869 = vmatpush1.msra.mxu0 0.0
    %1870 = vmatprep.subr.mxu0 0.0
    %1871 = vmatpush1.msra.mxu0 0.0
    %1872 = vmatprep.subr.mxu0 0.0
    %1873 = vmatpush1.msra.mxu0 0.0
    %1874 = vmatprep.subr.mxu0 0.0
    %1875 = vmatpush1.msra.mxu0 0.0
    %1876 = vmatprep.subr.mxu0 0.0
    %1877 = vmatpush1.msra.mxu0 0.0
    %1878 = vmatprep.subr.mxu0 0.0
    %1879 = vmatpush1.msra.mxu0 0.0
    %1880 = vmatprep.mubr.f32.mxu0 0.0
    %1881 = vmatmul.mubr.f32.gmra.mrb[0].mxu0 %v1433
    %v1882 = vpop.f32.mrb[0].mxu0
    %v1883 = vadd.f32 %v1429, %v1882
    %v1884 = vpop.f32.mrb[0].mxu0
    %1885 = vmatprep.mubr.f32.mxu0 0.0
    %1886 = vmatmul.mubr.f32.gmra.mrb[0].mxu0 %v1436
    %v1887 = vpop.f32.mrb[0].mxu0
    %v1888 = vadd.f32 %v1429, %v1887
    %v1889 = vpop.f32.mrb[0].mxu0
    %1890 = vmatprep.mubr.f32.mxu0 0.0
    %1891 = vmatmul.mubr.f32.gmra.mrb[0].mxu0 %v1439
    %v1892 = vpop.f32.mrb[0].mxu0
    %v1893 = vadd.f32 %v1429, %v1892
    %v1894 = vpop.f32.mrb[0].mxu0
    %1895 = vmatprep.mubr.f32.mxu0 0.0
    %1896 = vmatmul.mubr.f32.gmra.mrb[0].mxu0 %v1442
    %v1897 = vpop.f32.mrb[0].mxu0
    %v1898 = vadd.f32 %v1429, %v1897
    %v1899 = vpop.f32.mrb[0].mxu0
    %1900 = vmatprep.mubr.f32.mxu0 0.0
    %1901 = vmatmul.mubr.f32.gmra.mrb[0].mxu0 %v1445
    %v1902 = vpop.f32.mrb[0].mxu0
    %v1903 = vadd.f32 %v1429, %v1902
    %v1904 = vpop.f32.mrb[0].mxu0
    %1905 = vmatprep.mubr.f32.mxu0 0.0
    %1906 = vmatmul.mubr.f32.gmra.mrb[0].mxu0 %v1448
    %v1907 = vpop.f32.mrb[0].mxu0
    %v1908 = vadd.f32 %v1429, %v1907
    %v1909 = vpop.f32.mrb[0].mxu0
    %1910 = vmatprep.mubr.f32.mxu0 0.0
    %1911 = vmatmul.mubr.f32.gmra.mrb[0].mxu0 %v1451
    %v1912 = vpop.f32.mrb[0].mxu0
    %v1913 = vadd.f32 %v1429, %v1912
    %v1914 = vpop.f32.mrb[0].mxu0
    %1915 = vmatprep.mubr.f32.mxu0 0.0
    %1916 = vmatmul.mubr.f32.gmra.mrb[0].mxu0 %v1454
    %v1917 = vpop.f32.mrb[0].mxu0
    %v1918 = vadd.f32 %v1429, %v1917
    %v1919 = vpop.f32.mrb[0].mxu0
    %1920 = vmatprep.mubr.f32.mxu0 0.0
    %1921 = vmatmul.mubr.f32.gmra.mrb[0].mxu0 %v1457
    %v1922 = vpop.f32.mrb[0].mxu0
    %v1923 = vadd.f32 %v1429, %v1922
    %v1924 = vpop.f32.mrb[0].mxu0
    %1925 = vmatprep.mubr.f32.mxu0 0.0
    %1926 = vmatmul.mubr.f32.gmra.mrb[0].mxu0 %v1460
    %v1927 = vpop.f32.mrb[0].mxu0
    %v1928 = vadd.f32 %v1429, %v1927
    %v1929 = vpop.f32.mrb[0].mxu0
    %1930 = vmatprep.mubr.f32.mxu0 0.0
    %1931 = vmatmul.mubr.f32.gmra.mrb[0].mxu0 %v1463
    %v1932 = vpop.f32.mrb[0].mxu0
    %v1933 = vadd.f32 %v1429, %v1932
    %v1934 = vpop.f32.mrb[0].mxu0
    %1935 = vmatprep.mubr.f32.mxu0 0.0
    %1936 = vmatmul.mubr.f32.gmra.mrb[0].mxu0 %v1466
    %v1937 = vpop.f32.mrb[0].mxu0
    %v1938 = vadd.f32 %v1429, %v1937
    %v1939 = vpop.f32.mrb[0].mxu0
    %1940 = vmatprep.mubr.f32.mxu0 0.0
    %1941 = vmatmul.mubr.f32.gmra.mrb[0].mxu0 %v1469
    %v1942 = vpop.f32.mrb[0].mxu0
    %v1943 = vadd.f32 %v1429, %v1942
    %v1944 = vpop.f32.mrb[0].mxu0
    %1945 = vmatprep.mubr.f32.mxu0 0.0
    %1946 = vmatmul.mubr.f32.gmra.mrb[0].mxu0 %v1472
    %v1947 = vpop.f32.mrb[0].mxu0
    %v1948 = vadd.f32 %v1429, %v1947
    %v1949 = vpop.f32.mrb[0].mxu0
    %1950 = vmatprep.mubr.f32.mxu0 0.0
    %1951 = vmatmul.mubr.f32.gmra.mrb[0].mxu0 %v1475
    %v1952 = vpop.f32.mrb[0].mxu0
    %v1953 = vadd.f32 %v1429, %v1952
    %v1954 = vpop.f32.mrb[0].mxu0
    %1955 = vmatprep.mubr.f32.mxu0 0.0
    %1956 = vmatmul.mubr.f32.gmra.mrb[0].mxu0 %v1478
    %v1957 = vpop.f32.mrb[0].mxu0
    %v1958 = vadd.f32 %v1429, %v1957
    %v1959 = vpop.f32.mrb[0].mxu0
    %1960 = vmatprep.mubr.f32.mxu0 0.0
    %1961 = vmatmul.mubr.f32.gmra.mrb[0].mxu0 %v1481
    %v1962 = vpop.f32.mrb[0].mxu0
    %v1963 = vadd.f32 %v1429, %v1962
    %v1964 = vpop.f32.mrb[0].mxu0
    %1965 = vmatprep.mubr.f32.mxu0 0.0
    %1966 = vmatmul.mubr.f32.gmra.mrb[0].mxu0 %v1484
    %v1967 = vpop.f32.mrb[0].mxu0
    %v1968 = vadd.f32 %v1429, %v1967
    %v1969 = vpop.f32.mrb[0].mxu0
    %1970 = vmatprep.mubr.f32.mxu0 0.0
    %1971 = vmatmul.mubr.f32.gmra.mrb[0].mxu0 %v1487
    %v1972 = vpop.f32.mrb[0].mxu0
    %v1973 = vadd.f32 %v1429, %v1972
    %v1974 = vpop.f32.mrb[0].mxu0
    %1975 = vmatprep.mubr.f32.mxu0 0.0
    %1976 = vmatmul.mubr.f32.gmra.mrb[0].mxu0 %v1490
    %v1977 = vpop.f32.mrb[0].mxu0
    %v1978 = vadd.f32 %v1429, %v1977
    %v1979 = vpop.f32.mrb[0].mxu0
    %1980 = vmatprep.mubr.f32.mxu0 0.0
    %1981 = vmatmul.mubr.f32.gmra.mrb[0].mxu0 %v1493
    %v1982 = vpop.f32.mrb[0].mxu0
    %v1983 = vadd.f32 %v1429, %v1982
    %v1984 = vpop.f32.mrb[0].mxu0
    %1985 = vmatprep.mubr.f32.mxu0 0.0
    %1986 = vmatmul.mubr.f32.gmra.mrb[0].mxu0 %v1496
    %v1987 = vpop.f32.mrb[0].mxu0
    %v1988 = vadd.f32 %v1429, %v1987
    %v1989 = vpop.f32.mrb[0].mxu0
    %1990 = vmatprep.mubr.f32.mxu0 0.0
    %1991 = vmatmul.mubr.f32.gmra.mrb[0].mxu0 %v1499
    %v1992 = vpop.f32.mrb[0].mxu0
    %v1993 = vadd.f32 %v1429, %v1992
    %v1994 = vpop.f32.mrb[0].mxu0
    %1995 = vmatprep.mubr.f32.mxu0 0.0
    %1996 = vmatmul.mubr.f32.gmra.mrb[0].mxu0 %v1502
    %v1997 = vpop.f32.mrb[0].mxu0
    %v1998 = vadd.f32 %v1429, %v1997
    %v1999 = vpop.f32.mrb[0].mxu0
    %2000 = vmatprep.mubr.f32.mxu0 0.0
    %2001 = vmatmul.mubr.f32.gmra.mrb[0].mxu0 %v1505
    %v2002 = vpop.f32.mrb[0].mxu0
    %v2003 = vadd.f32 %v1429, %v2002
    %v2004 = vpop.f32.mrb[0].mxu0
    %2005 = vmatprep.mubr.f32.mxu0 0.0
    %2006 = vmatmul.mubr.f32.gmra.mrb[0].mxu0 %v1508
    %v2007 = vpop.f32.mrb[0].mxu0
    %v2008 = vadd.f32 %v1429, %v2007
    %v2009 = vpop.f32.mrb[0].mxu0
    %2010 = vmatprep.mubr.f32.mxu0 0.0
    %2011 = vmatmul.mubr.f32.gmra.mrb[0].mxu0 %v1511
    %v2012 = vpop.f32.mrb[0].mxu0
    %v2013 = vadd.f32 %v1429, %v2012
    %v2014 = vpop.f32.mrb[0].mxu0
    %2015 = vmatprep.mubr.f32.mxu0 0.0
    %2016 = vmatmul.mubr.f32.gmra.mrb[0].mxu0 %v1514
    %v2017 = vpop.f32.mrb[0].mxu0
    %v2018 = vadd.f32 %v1429, %v2017
    %v2019 = vpop.f32.mrb[0].mxu0
    %2020 = vmatprep.mubr.f32.mxu0 0.0
    %2021 = vmatmul.mubr.f32.gmra.mrb[0].mxu0 %v1517
    %v2022 = vpop.f32.mrb[0].mxu0
    %v2023 = vadd.f32 %v1429, %v2022
    %v2024 = vpop.f32.mrb[0].mxu0
    %2025 = vmatprep.mubr.f32.mxu0 0.0
    %2026 = vmatmul.mubr.f32.gmra.mrb[0].mxu0 %v1520
    %v2027 = vpop.f32.mrb[0].mxu0
    %v2028 = vadd.f32 %v1429, %v2027
    %v2029 = vpop.f32.mrb[0].mxu0
    %2030 = vmatprep.mubr.f32.mxu0 0.0
    %2031 = vmatmul.mubr.f32.gmra.mrb[0].mxu0 %v1523
    %v2032 = vpop.f32.mrb[0].mxu0
    %v2033 = vadd.f32 %v1429, %v2032
    %v2034 = vpop.f32.mrb[0].mxu0
    %2035 = vmatprep.mubr.f32.mxu0 0.0
    %2036 = vmatmul.mubr.f32.gmra.mrb[0].mxu0 %v1526
    %v2037 = vpop.f32.mrb[0].mxu0
    %v2038 = vadd.f32 %v1429, %v2037
    %v2039 = vpop.f32.mrb[0].mxu0
    %2040 = vmatprep.mubr.f32.mxu0 0.0
    %2041 = vmatmul.mubr.f32.gmra.mrb[0].mxu0 %v1529
    %v2042 = vpop.f32.mrb[0].mxu0
    %v2043 = vadd.f32 %v1429, %v2042
    %v2044 = vpop.f32.mrb[0].mxu0
    %2045 = vmatprep.mubr.f32.mxu0 0.0
    %2046 = vmatmul.mubr.f32.gmra.mrb[0].mxu0 %v1532
    %v2047 = vpop.f32.mrb[0].mxu0
    %v2048 = vadd.f32 %v1429, %v2047
    %v2049 = vpop.f32.mrb[0].mxu0
    %2050 = vmatprep.mubr.f32.mxu0 0.0
    %2051 = vmatmul.mubr.f32.gmra.mrb[0].mxu0 %v1535
    %v2052 = vpop.f32.mrb[0].mxu0
    %v2053 = vadd.f32 %v1429, %v2052
    %v2054 = vpop.f32.mrb[0].mxu0
    %2055 = vmatprep.mubr.f32.mxu0 0.0
    %2056 = vmatmul.mubr.f32.gmra.mrb[0].mxu0 %v1538
    %v2057 = vpop.f32.mrb[0].mxu0
    %v2058 = vadd.f32 %v1429, %v2057
    %v2059 = vpop.f32.mrb[0].mxu0
    %2060 = vmatprep.mubr.f32.mxu0 0.0
    %2061 = vmatmul.mubr.f32.gmra.mrb[0].mxu0 %v1541
    %v2062 = vpop.f32.mrb[0].mxu0
    %v2063 = vadd.f32 %v1429, %v2062
    %v2064 = vpop.f32.mrb[0].mxu0
    %2065 = vmatprep.mubr.f32.mxu0 0.0
    %2066 = vmatmul.mubr.f32.gmra.mrb[0].mxu0 %v1544
    %v2067 = vpop.f32.mrb[0].mxu0
    %v2068 = vadd.f32 %v1429, %v2067
    %v2069 = vpop.f32.mrb[0].mxu0
    %2070 = vmatprep.mubr.f32.mxu0 0.0
    %2071 = vmatmul.mubr.f32.gmra.mrb[0].mxu0 %v1547
    %v2072 = vpop.f32.mrb[0].mxu0
    %v2073 = vadd.f32 %v1429, %v2072
    %v2074 = vpop.f32.mrb[0].mxu0
    %2075 = vmatprep.mubr.f32.mxu0 0.0
    %2076 = vmatmul.mubr.f32.gmra.mrb[0].mxu0 %v1550
    %v2077 = vpop.f32.mrb[0].mxu0
    %v2078 = vadd.f32 %v1429, %v2077
    %v2079 = vpop.f32.mrb[0].mxu0
    %2080 = vmatprep.mubr.f32.mxu0 0.0
    %2081 = vmatmul.mubr.f32.gmra.mrb[0].mxu0 %v1553
    %v2082 = vpop.f32.mrb[0].mxu0
    %v2083 = vadd.f32 %v1429, %v2082
    %v2084 = vpop.f32.mrb[0].mxu0
    %2085 = vmatprep.mubr.f32.mxu0 0.0
    %2086 = vmatmul.mubr.f32.gmra.mrb[0].mxu0 %v1556
    %v2087 = vpop.f32.mrb[0].mxu0
    %v2088 = vadd.f32 %v1429, %v2087
    %v2089 = vpop.f32.mrb[0].mxu0
    %2090 = vmatprep.mubr.f32.mxu0 0.0
    %2091 = vmatmul.mubr.f32.gmra.mrb[0].mxu0 %v1559
    %v2092 = vpop.f32.mrb[0].mxu0
    %v2093 = vadd.f32 %v1429, %v2092
    %v2094 = vpop.f32.mrb[0].mxu0
    %2095 = vmatprep.mubr.f32.mxu0 0.0
    %2096 = vmatmul.mubr.f32.gmra.mrb[0].mxu0 %v1562
    %v2097 = vpop.f32.mrb[0].mxu0
    %v2098 = vadd.f32 %v1429, %v2097
    %v2099 = vpop.f32.mrb[0].mxu0
    %2100 = vmatprep.mubr.f32.mxu0 0.0
    %2101 = vmatmul.mubr.f32.gmra.mrb[0].mxu0 %v1565
    %v2102 = vpop.f32.mrb[0].mxu0
    %v2103 = vadd.f32 %v1429, %v2102
    %v2104 = vpop.f32.mrb[0].mxu0
    %2105 = vmatprep.mubr.f32.mxu0 0.0
    %2106 = vmatmul.mubr.f32.gmra.mrb[0].mxu0 %v1568
    %v2107 = vpop.f32.mrb[0].mxu0
    %v2108 = vadd.f32 %v1429, %v2107
    %v2109 = vpop.f32.mrb[0].mxu0
    %2110 = vmatprep.mubr.f32.mxu0 0.0
    %2111 = vmatmul.mubr.f32.gmra.mrb[0].mxu0 %v1571
    %v2112 = vpop.f32.mrb[0].mxu0
    %v2113 = vadd.f32 %v1429, %v2112
    %v2114 = vpop.f32.mrb[0].mxu0
    %2115 = vmatprep.mubr.f32.mxu0 0.0
    %2116 = vmatmul.mubr.f32.gmra.mrb[0].mxu0 %v1574
    %v2117 = vpop.f32.mrb[0].mxu0
    %v2118 = vadd.f32 %v1429, %v2117
    %v2119 = vpop.f32.mrb[0].mxu0
    %2120 = vmatprep.mubr.f32.mxu0 0.0
    %2121 = vmatmul.mubr.f32.gmra.mrb[0].mxu0 %v1577
    %v2122 = vpop.f32.mrb[0].mxu0
    %v2123 = vadd.f32 %v1429, %v2122
    %v2124 = vpop.f32.mrb[0].mxu0
    %2125 = vmatprep.mubr.f32.mxu0 0.0
    %2126 = vmatmul.mubr.f32.gmra.mrb[0].mxu0 %v1580
    %v2127 = vpop.f32.mrb[0].mxu0
    %v2128 = vadd.f32 %v1429, %v2127
    %v2129 = vpop.f32.mrb[0].mxu0
    %2130 = vmatprep.mubr.f32.mxu0 0.0
    %2131 = vmatmul.mubr.f32.gmra.mrb[0].mxu0 %v1583
    %v2132 = vpop.f32.mrb[0].mxu0
    %v2133 = vadd.f32 %v1429, %v2132
    %v2134 = vpop.f32.mrb[0].mxu0
    %2135 = vmatprep.mubr.f32.mxu0 0.0
    %2136 = vmatmul.mubr.f32.gmra.mrb[0].mxu0 %v1586
    %v2137 = vpop.f32.mrb[0].mxu0
    %v2138 = vadd.f32 %v1429, %v2137
    %v2139 = vpop.f32.mrb[0].mxu0
    %2140 = vmatprep.mubr.f32.mxu0 0.0
    %2141 = vmatmul.mubr.f32.gmra.mrb[0].mxu0 %v1589
    %v2142 = vpop.f32.mrb[0].mxu0
    %v2143 = vadd.f32 %v1429, %v2142
    %v2144 = vpop.f32.mrb[0].mxu0
    %2145 = vmatprep.mubr.f32.mxu0 0.0
    %2146 = vmatmul.mubr.f32.gmra.mrb[0].mxu0 %v1592
    %v2147 = vpop.f32.mrb[0].mxu0
    %v2148 = vadd.f32 %v1429, %v2147
    %v2149 = vpop.f32.mrb[0].mxu0
    %2150 = vmatprep.mubr.f32.mxu0 0.0
    %2151 = vmatmul.mubr.f32.gmra.mrb[0].mxu0 %v1595
    %v2152 = vpop.f32.mrb[0].mxu0
    %v2153 = vadd.f32 %v1429, %v2152
    %v2154 = vpop.f32.mrb[0].mxu0
    %2155 = vmatprep.mubr.f32.mxu0 0.0
    %2156 = vmatmul.mubr.f32.gmra.mrb[0].mxu0 %v1598
    %v2157 = vpop.f32.mrb[0].mxu0
    %v2158 = vadd.f32 %v1429, %v2157
    %v2159 = vpop.f32.mrb[0].mxu0
    %2160 = vmatprep.mubr.f32.mxu0 0.0
    %2161 = vmatmul.mubr.f32.gmra.mrb[0].mxu0 %v1601
    %v2162 = vpop.f32.mrb[0].mxu0
    %v2163 = vadd.f32 %v1429, %v2162
    %v2164 = vpop.f32.mrb[0].mxu0
    %2165 = vmatprep.mubr.f32.mxu0 0.0
    %2166 = vmatmul.mubr.f32.gmra.mrb[0].mxu0 %v1604
    %v2167 = vpop.f32.mrb[0].mxu0
    %v2168 = vadd.f32 %v1429, %v2167
    %v2169 = vpop.f32.mrb[0].mxu0
    %2170 = vmatprep.mubr.f32.mxu0 0.0
    %2171 = vmatmul.mubr.f32.gmra.mrb[0].mxu0 %v1607
    %v2172 = vpop.f32.mrb[0].mxu0
    %v2173 = vadd.f32 %v1429, %v2172
    %v2174 = vpop.f32.mrb[0].mxu0
    %2175 = vmatprep.mubr.f32.mxu0 0.0
    %2176 = vmatmul.mubr.f32.gmra.mrb[0].mxu0 %v1610
    %v2177 = vpop.f32.mrb[0].mxu0
    %v2178 = vadd.f32 %v1429, %v2177
    %v2179 = vpop.f32.mrb[0].mxu0
    %2180 = vmatprep.mubr.f32.mxu0 0.0
    %2181 = vmatmul.mubr.f32.gmra.mrb[0].mxu0 %v1613
    %v2182 = vpop.f32.mrb[0].mxu0
    %v2183 = vadd.f32 %v1429, %v2182
    %v2184 = vpop.f32.mrb[0].mxu0
    %2185 = vmatprep.mubr.f32.mxu0 0.0
    %2186 = vmatmul.mubr.f32.gmra.mrb[0].mxu0 %v1616
    %v2187 = vpop.f32.mrb[0].mxu0
    %v2188 = vadd.f32 %v1429, %v2187
    %v2189 = vpop.f32.mrb[0].mxu0
    %2190 = vmatprep.mubr.f32.mxu0 0.0
    %2191 = vmatmul.mubr.f32.gmra.mrb[0].mxu0 %v1619
    %v2192 = vpop.f32.mrb[0].mxu0
    %v2193 = vadd.f32 %v1429, %v2192
    %v2194 = vpop.f32.mrb[0].mxu0
    %2195 = vmatprep.mubr.f32.mxu0 0.0
    %2196 = vmatmul.mubr.f32.gmra.mrb[0].mxu0 %v1622
    %v2197 = vpop.f32.mrb[0].mxu0
    %v2198 = vadd.f32 %v1429, %v2197
    %v2199 = vpop.f32.mrb[0].mxu0
    %2200 = vmatprep.mubr.f32.mxu0 0.0
    %2201 = vmatmul.mubr.f32.gmra.mrb[0].mxu0 %v1625
    %v2202 = vpop.f32.mrb[0].mxu0
    %v2203 = vadd.f32 %v1429, %v2202
    %v2204 = vpop.f32.mrb[0].mxu0
    %2205 = vmatprep.mubr.f32.mxu0 0.0
    %2206 = vmatmul.mubr.f32.gmra.mrb[0].mxu0 %v1628
    %v2207 = vpop.f32.mrb[0].mxu0
    %v2208 = vadd.f32 %v1429, %v2207
    %v2209 = vpop.f32.mrb[0].mxu0
    %2210 = vmatprep.mubr.f32.mxu0 0.0
    %2211 = vmatmul.mubr.f32.gmra.mrb[0].mxu0 %v1631
    %v2212 = vpop.f32.mrb[0].mxu0
    %v2213 = vadd.f32 %v1429, %v2212
    %v2214 = vpop.f32.mrb[0].mxu0
    %2215 = vmatprep.mubr.f32.mxu0 0.0
    %2216 = vmatmul.mubr.f32.gmra.mrb[0].mxu0 %v1634
    %v2217 = vpop.f32.mrb[0].mxu0
    %v2218 = vadd.f32 %v1429, %v2217
    %v2219 = vpop.f32.mrb[0].mxu0
    %2220 = vmatprep.mubr.f32.mxu0 0.0
    %2221 = vmatmul.mubr.f32.gmra.mrb[0].mxu0 %v1637
    %v2222 = vpop.f32.mrb[0].mxu0
    %v2223 = vadd.f32 %v1429, %v2222
    %v2224 = vpop.f32.mrb[0].mxu0
    %2225 = vmatprep.mubr.f32.mxu0 0.0
    %2226 = vmatmul.mubr.f32.gmra.mrb[0].mxu0 %v1640
    %v2227 = vpop.f32.mrb[0].mxu0
    %v2228 = vadd.f32 %v1429, %v2227
    %v2229 = vpop.f32.mrb[0].mxu0
    %2230 = vmatprep.mubr.f32.mxu0 0.0
    %2231 = vmatmul.mubr.f32.gmra.mrb[0].mxu0 %v1643
    %v2232 = vpop.f32.mrb[0].mxu0
    %v2233 = vadd.f32 %v1429, %v2232
    %v2234 = vpop.f32.mrb[0].mxu0
    %2235 = vmatprep.mubr.f32.mxu0 0.0
    %2236 = vmatmul.mubr.f32.gmra.mrb[0].mxu0 %v1646
    %v2237 = vpop.f32.mrb[0].mxu0
    %v2238 = vadd.f32 %v1429, %v2237
    %v2239 = vpop.f32.mrb[0].mxu0
    %2240 = vmatprep.mubr.f32.mxu0 0.0
    %2241 = vmatmul.mubr.f32.gmra.mrb[0].mxu0 %v1649
    %v2242 = vpop.f32.mrb[0].mxu0
    %v2243 = vadd.f32 %v1429, %v2242
    %v2244 = vpop.f32.mrb[0].mxu0
    %2245 = vmatprep.mubr.f32.mxu0 0.0
    %2246 = vmatmul.mubr.f32.gmra.mrb[0].mxu0 %v1652
    %v2247 = vpop.f32.mrb[0].mxu0
    %v2248 = vadd.f32 %v1429, %v2247
    %v2249 = vpop.f32.mrb[0].mxu0
    %2250 = vmatprep.mubr.f32.mxu0 0.0
    %2251 = vmatmul.mubr.f32.gmra.mrb[0].mxu0 %v1655
    %v2252 = vpop.f32.mrb[0].mxu0
    %v2253 = vadd.f32 %v1429, %v2252
    %v2254 = vpop.f32.mrb[0].mxu0
    %2255 = vmatprep.mubr.f32.mxu0 0.0
    %2256 = vmatmul.mubr.f32.gmra.mrb[0].mxu0 %v1658
    %v2257 = vpop.f32.mrb[0].mxu0
    %v2258 = vadd.f32 %v1429, %v2257
    %v2259 = vpop.f32.mrb[0].mxu0
    %2260 = vmatprep.mubr.f32.mxu0 0.0
    %2261 = vmatmul.mubr.f32.gmra.mrb[0].mxu0 %v1661
    %v2262 = vpop.f32.mrb[0].mxu0
    %v2263 = vadd.f32 %v1429, %v2262
    %v2264 = vpop.f32.mrb[0].mxu0
    %2265 = vmatprep.mubr.f32.mxu0 0.0
    %2266 = vmatmul.mubr.f32.gmra.mrb[0].mxu0 %v1664
    %v2267 = vpop.f32.mrb[0].mxu0
    %v2268 = vadd.f32 %v1429, %v2267
    %v2269 = vpop.f32.mrb[0].mxu0
    %2270 = vmatprep.mubr.f32.mxu0 0.0
    %2271 = vmatmul.mubr.f32.gmra.mrb[0].mxu0 %v1667
    %v2272 = vpop.f32.mrb[0].mxu0
    %v2273 = vadd.f32 %v1429, %v2272
    %v2274 = vpop.f32.mrb[0].mxu0
    %2275 = vmatprep.mubr.f32.mxu0 0.0
    %2276 = vmatmul.mubr.f32.gmra.mrb[0].mxu0 %v1670
    %v2277 = vpop.f32.mrb[0].mxu0
    %v2278 = vadd.f32 %v1429, %v2277
    %v2279 = vpop.f32.mrb[0].mxu0
    %2280 = vmatprep.mubr.f32.mxu0 0.0
    %2281 = vmatmul.mubr.f32.gmra.mrb[0].mxu0 %v1673
    %v2282 = vpop.f32.mrb[0].mxu0
    %v2283 = vadd.f32 %v1429, %v2282
    %v2284 = vpop.f32.mrb[0].mxu0
    %2285 = vmatprep.mubr.f32.mxu0 0.0
    %2286 = vmatmul.mubr.f32.gmra.mrb[0].mxu0 %v1676
    %v2287 = vpop.f32.mrb[0].mxu0
    %v2288 = vadd.f32 %v1429, %v2287
    %v2289 = vpop.f32.mrb[0].mxu0
    %2290 = vmatprep.mubr.f32.mxu0 0.0
    %2291 = vmatmul.mubr.f32.gmra.mrb[0].mxu0 %v1679
    %v2292 = vpop.f32.mrb[0].mxu0
    %v2293 = vadd.f32 %v1429, %v2292
    %v2294 = vpop.f32.mrb[0].mxu0
    %2295 = vmatprep.mubr.f32.mxu0 0.0
    %2296 = vmatmul.mubr.f32.gmra.mrb[0].mxu0 %v1682
    %v2297 = vpop.f32.mrb[0].mxu0
    %v2298 = vadd.f32 %v1429, %v2297
    %v2299 = vpop.f32.mrb[0].mxu0
    %2300 = vmatprep.mubr.f32.mxu0 0.0
    %2301 = vmatmul.mubr.f32.gmra.mrb[0].mxu0 %v1685
    %v2302 = vpop.f32.mrb[0].mxu0
    %v2303 = vadd.f32 %v1429, %v2302
    %v2304 = vpop.f32.mrb[0].mxu0
    %2305 = vmatprep.mubr.f32.mxu0 0.0
    %2306 = vmatmul.mubr.f32.gmra.mrb[0].mxu0 %v1688
    %v2307 = vpop.f32.mrb[0].mxu0
    %v2308 = vadd.f32 %v1429, %v2307
    %v2309 = vpop.f32.mrb[0].mxu0
    %2310 = vmatprep.mubr.f32.mxu0 0.0
    %2311 = vmatmul.mubr.f32.gmra.mrb[0].mxu0 %v1691
    %v2312 = vpop.f32.mrb[0].mxu0
    %v2313 = vadd.f32 %v1429, %v2312
    %v2314 = vpop.f32.mrb[0].mxu0
    %2315 = vmatprep.mubr.f32.mxu0 0.0
    %2316 = vmatmul.mubr.f32.gmra.mrb[0].mxu0 %v1694
    %v2317 = vpop.f32.mrb[0].mxu0
    %v2318 = vadd.f32 %v1429, %v2317
    %v2319 = vpop.f32.mrb[0].mxu0
    %2320 = vmatprep.mubr.f32.mxu0 0.0
    %2321 = vmatmul.mubr.f32.gmra.mrb[0].mxu0 %v1697
    %v2322 = vpop.f32.mrb[0].mxu0
    %v2323 = vadd.f32 %v1429, %v2322
    %v2324 = vpop.f32.mrb[0].mxu0
    %2325 = vmatprep.mubr.f32.mxu0 0.0
    %2326 = vmatmul.mubr.f32.gmra.mrb[0].mxu0 %v1700
    %v2327 = vpop.f32.mrb[0].mxu0
    %v2328 = vadd.f32 %v1429, %v2327
    %v2329 = vpop.f32.mrb[0].mxu0
    %2330 = vmatprep.mubr.f32.mxu0 0.0
    %2331 = vmatmul.mubr.f32.gmra.mrb[0].mxu0 %v1703
    %v2332 = vpop.f32.mrb[0].mxu0
    %v2333 = vadd.f32 %v1429, %v2332
    %v2334 = vpop.f32.mrb[0].mxu0
    %2335 = vmatprep.mubr.f32.mxu0 0.0
    %2336 = vmatmul.mubr.f32.gmra.mrb[0].mxu0 %v1706
    %v2337 = vpop.f32.mrb[0].mxu0
    %v2338 = vadd.f32 %v1429, %v2337
    %v2339 = vpop.f32.mrb[0].mxu0
    %2340 = vmatprep.mubr.f32.mxu0 0.0
    %2341 = vmatmul.mubr.f32.gmra.mrb[0].mxu0 %v1709
    %v2342 = vpop.f32.mrb[0].mxu0
    %v2343 = vadd.f32 %v1429, %v2342
    %v2344 = vpop.f32.mrb[0].mxu0
    %2345 = vmatprep.mubr.f32.mxu0 0.0
    %2346 = vmatmul.mubr.f32.gmra.mrb[0].mxu0 %v1712
    %v2347 = vpop.f32.mrb[0].mxu0
    %v2348 = vadd.f32 %v1429, %v2347
    %v2349 = vpop.f32.mrb[0].mxu0
    %2350 = vmatprep.mubr.f32.mxu0 0.0
    %2351 = vmatmul.mubr.f32.gmra.mrb[0].mxu0 %v1715
    %v2352 = vpop.f32.mrb[0].mxu0
    %v2353 = vadd.f32 %v1429, %v2352
    %v2354 = vpop.f32.mrb[0].mxu0
    %2355 = vmatprep.mubr.f32.mxu0 0.0
    %2356 = vmatmul.mubr.f32.gmra.mrb[0].mxu0 %v1718
    %v2357 = vpop.f32.mrb[0].mxu0
    %v2358 = vadd.f32 %v1429, %v2357
    %v2359 = vpop.f32.mrb[0].mxu0
    %2360 = vmatprep.mubr.f32.mxu0 0.0
    %2361 = vmatmul.mubr.f32.gmra.mrb[0].mxu0 %v1721
    %v2362 = vpop.f32.mrb[0].mxu0
    %v2363 = vadd.f32 %v1429, %v2362
    %v2364 = vpop.f32.mrb[0].mxu0
    %2365 = vmatprep.mubr.f32.mxu0 0.0
    %2366 = vmatmul.mubr.f32.gmra.mrb[0].mxu0 %v1724
    %v2367 = vpop.f32.mrb[0].mxu0
    %v2368 = vadd.f32 %v1429, %v2367
    %v2369 = vpop.f32.mrb[0].mxu0
    %2370 = vmatprep.mubr.f32.mxu0 0.0
    %2371 = vmatmul.mubr.f32.gmra.mrb[0].mxu0 %v1727
    %v2372 = vpop.f32.mrb[0].mxu0
    %v2373 = vadd.f32 %v1429, %v2372
    %v2374 = vpop.f32.mrb[0].mxu0
    %2375 = vmatprep.mubr.f32.mxu0 0.0
    %2376 = vmatmul.mubr.f32.gmra.mrb[0].mxu0 %v1730
    %v2377 = vpop.f32.mrb[0].mxu0
    %v2378 = vadd.f32 %v1429, %v2377
    %v2379 = vpop.f32.mrb[0].mxu0
    %2380 = vmatprep.mubr.f32.mxu0 0.0
    %2381 = vmatmul.mubr.f32.gmra.mrb[0].mxu0 %v1733
    %v2382 = vpop.f32.mrb[0].mxu0
    %v2383 = vadd.f32 %v1429, %v2382
    %v2384 = vpop.f32.mrb[0].mxu0
    %2385 = vmatprep.mubr.f32.mxu0 0.0
    %2386 = vmatmul.mubr.f32.gmra.mrb[0].mxu0 %v1736
    %v2387 = vpop.f32.mrb[0].mxu0
    %v2388 = vadd.f32 %v1429, %v2387
    %v2389 = vpop.f32.mrb[0].mxu0
    %2390 = vmatprep.mubr.f32.mxu0 0.0
    %2391 = vmatmul.mubr.f32.gmra.mrb[0].mxu0 %v1739
    %v2392 = vpop.f32.mrb[0].mxu0
    %v2393 = vadd.f32 %v1429, %v2392
    %v2394 = vpop.f32.mrb[0].mxu0
    %2395 = vmatprep.mubr.f32.mxu0 0.0
    %2396 = vmatmul.mubr.f32.gmra.mrb[0].mxu0 %v1742
    %v2397 = vpop.f32.mrb[0].mxu0
    %v2398 = vadd.f32 %v1429, %v2397
    %v2399 = vpop.f32.mrb[0].mxu0
    %2400 = vmatprep.mubr.f32.mxu0 0.0
    %2401 = vmatmul.mubr.f32.gmra.mrb[0].mxu0 %v1745
    %v2402 = vpop.f32.mrb[0].mxu0
    %v2403 = vadd.f32 %v1429, %v2402
    %v2404 = vpop.f32.mrb[0].mxu0
    %2405 = vmatprep.mubr.f32.mxu0 0.0
    %2406 = vmatmul.mubr.f32.gmra.mrb[0].mxu0 %v1748
    %v2407 = vpop.f32.mrb[0].mxu0
    %v2408 = vadd.f32 %v1429, %v2407
    %v2409 = vpop.f32.mrb[0].mxu0
    %2410 = vmatprep.mubr.f32.mxu0 0.0
    %2411 = vmatmul.mubr.f32.gmra.mrb[0].mxu0 %v1751
    %v2412 = vpop.f32.mrb[0].mxu0
    %v2413 = vadd.f32 %v1429, %v2412
    %v2414 = vpop.f32.mrb[0].mxu0
    %2415 = vmatprep.mubr.f32.mxu0 0.0
    %2416 = vmatmul.mubr.f32.gmra.mrb[0].mxu0 %v1754
    %v2417 = vpop.f32.mrb[0].mxu0
    %v2418 = vadd.f32 %v1429, %v2417
    %v2419 = vpop.f32.mrb[0].mxu0
    %2420 = vmatprep.mubr.f32.mxu0 0.0
    %2421 = vmatmul.mubr.f32.gmra.mrb[0].mxu0 %v1757
    %v2422 = vpop.f32.mrb[0].mxu0
    %v2423 = vadd.f32 %v1429, %v2422
    %v2424 = vpop.f32.mrb[0].mxu0
    %2425 = vmatprep.mubr.f32.mxu0 0.0
    %2426 = vmatmul.mubr.f32.gmra.mrb[0].mxu0 %v1760
    %v2427 = vpop.f32.mrb[0].mxu0
    %v2428 = vadd.f32 %v1429, %v2427
    %v2429 = vpop.f32.mrb[0].mxu0
    %2430 = vmatprep.mubr.f32.mxu0 0.0
    %2431 = vmatmul.mubr.f32.gmra.mrb[0].mxu0 %v1763
    %v2432 = vpop.f32.mrb[0].mxu0
    %v2433 = vadd.f32 %v1429, %v2432
    %v2434 = vpop.f32.mrb[0].mxu0
    %2435 = vmatprep.mubr.f32.mxu0 0.0
    %2436 = vmatmul.mubr.f32.gmra.mrb[0].mxu0 %v1766
    %v2437 = vpop.f32.mrb[0].mxu0
    %v2438 = vadd.f32 %v1429, %v2437
    %v2439 = vpop.f32.mrb[0].mxu0
    %2440 = vmatprep.mubr.f32.mxu0 0.0
    %2441 = vmatmul.mubr.f32.gmra.mrb[0].mxu0 %v1769
    %v2442 = vpop.f32.mrb[0].mxu0
    %v2443 = vadd.f32 %v1429, %v2442
    %v2444 = vpop.f32.mrb[0].mxu0
    %2445 = vmatprep.mubr.f32.mxu0 0.0
    %2446 = vmatmul.mubr.f32.gmra.mrb[0].mxu0 %v1772
    %v2447 = vpop.f32.mrb[0].mxu0
    %v2448 = vadd.f32 %v1429, %v2447
    %v2449 = vpop.f32.mrb[0].mxu0
    %2450 = vmatprep.mubr.f32.mxu0 0.0
    %2451 = vmatmul.mubr.f32.gmra.mrb[0].mxu0 %v1775
    %v2452 = vpop.f32.mrb[0].mxu0
    %v2453 = vadd.f32 %v1429, %v2452
    %v2454 = vpop.f32.mrb[0].mxu0
    %2455 = vmatprep.mubr.f32.mxu0 0.0
    %2456 = vmatmul.mubr.f32.gmra.mrb[0].mxu0 %v1778
    %v2457 = vpop.f32.mrb[0].mxu0
    %v2458 = vadd.f32 %v1429, %v2457
    %v2459 = vpop.f32.mrb[0].mxu0
    %2460 = vmatprep.mubr.f32.mxu0 0.0
    %2461 = vmatmul.mubr.f32.gmra.mrb[0].mxu0 %v1781
    %v2462 = vpop.f32.mrb[0].mxu0
    %v2463 = vadd.f32 %v1429, %v2462
    %v2464 = vpop.f32.mrb[0].mxu0
    %2465 = vmatprep.mubr.f32.mxu0 0.0
    %2466 = vmatmul.mubr.f32.gmra.mrb[0].mxu0 %v1784
    %v2467 = vpop.f32.mrb[0].mxu0
    %v2468 = vadd.f32 %v1429, %v2467
    %v2469 = vpop.f32.mrb[0].mxu0
    %2470 = vmatprep.mubr.f32.mxu0 0.0
    %2471 = vmatmul.mubr.f32.gmra.mrb[0].mxu0 %v1787
    %v2472 = vpop.f32.mrb[0].mxu0
    %v2473 = vadd.f32 %v1429, %v2472
    %v2474 = vpop.f32.mrb[0].mxu0
    %2475 = vmatprep.mubr.f32.mxu0 0.0
    %2476 = vmatmul.mubr.f32.gmra.mrb[0].mxu0 %v1790
    %v2477 = vpop.f32.mrb[0].mxu0
    %v2478 = vadd.f32 %v1429, %v2477
    %v2479 = vpop.f32.mrb[0].mxu0
    %2480 = vmatprep.mubr.f32.mxu0 0.0
    %2481 = vmatmul.mubr.f32.gmra.mrb[0].mxu0 %v1793
    %v2482 = vpop.f32.mrb[0].mxu0
    %v2483 = vadd.f32 %v1429, %v2482
    %v2484 = vpop.f32.mrb[0].mxu0
    %2485 = vmatprep.mubr.f32.mxu0 0.0
    %2486 = vmatmul.mubr.f32.gmra.mrb[0].mxu0 %v1796
    %v2487 = vpop.f32.mrb[0].mxu0
    %v2488 = vadd.f32 %v1429, %v2487
    %v2489 = vpop.f32.mrb[0].mxu0
    %2490 = vmatprep.mubr.f32.mxu0 0.0
    %2491 = vmatmul.mubr.f32.gmra.mrb[0].mxu0 %v1799
    %v2492 = vpop.f32.mrb[0].mxu0
    %v2493 = vadd.f32 %v1429, %v2492
    %v2494 = vpop.f32.mrb[0].mxu0
    %2495 = vmatprep.mubr.f32.mxu0 0.0
    %2496 = vmatmul.mubr.f32.gmra.mrb[0].mxu0 %v1802
    %v2497 = vpop.f32.mrb[0].mxu0
    %v2498 = vadd.f32 %v1429, %v2497
    %v2499 = vpop.f32.mrb[0].mxu0
    %2500 = vmatprep.mubr.f32.mxu0 0.0
    %2501 = vmatmul.mubr.f32.gmra.mrb[0].mxu0 %v1805
    %v2502 = vpop.f32.mrb[0].mxu0
    %v2503 = vadd.f32 %v1429, %v2502
    %v2504 = vpop.f32.mrb[0].mxu0
    %2505 = vmatprep.mubr.f32.mxu0 0.0
    %2506 = vmatmul.mubr.f32.gmra.mrb[0].mxu0 %v1808
    %v2507 = vpop.f32.mrb[0].mxu0
    %v2508 = vadd.f32 %v1429, %v2507
    %v2509 = vpop.f32.mrb[0].mxu0
    %2510 = vmatprep.mubr.f32.mxu0 0.0
    %2511 = vmatmul.mubr.f32.gmra.mrb[0].mxu0 %v1811
    %v2512 = vpop.f32.mrb[0].mxu0
    %v2513 = vadd.f32 %v1429, %v2512
    %v2514 = vpop.f32.mrb[0].mxu0
    %2515 = vmatprep.mubr.f32.mxu0 0.0
    %2516 = vmatmul.mubr.f32.gmra.mrb[0].mxu0 %v1814
    %v2517 = vpop.f32.mrb[0].mxu0
    %v2518 = vadd.f32 %v1429, %v2517
    %v2519 = vpop.f32.mrb[0].mxu0
    %2520 = vdwg.mxu0
    %v2521 = vmax.f32 %v1883, 0.0
    %v2522 = vmax.f32 %v1888, 0.0
    %v2523 = vmax.f32 %v1893, 0.0
    %v2524 = vmax.f32 %v1898, 0.0
    %v2525 = vmax.f32 %v1903, 0.0
    %v2526 = vmax.f32 %v1908, 0.0
    %v2527 = vmax.f32 %v1913, 0.0
    %v2528 = vmax.f32 %v1918, 0.0
    %v2529 = vmax.f32 %v1923, 0.0
    %v2530 = vmax.f32 %v1928, 0.0
    %v2531 = vmax.f32 %v1933, 0.0
    %v2532 = vmax.f32 %v1938, 0.0
    %v2533 = vmax.f32 %v1943, 0.0
    %v2534 = vmax.f32 %v1948, 0.0
    %v2535 = vmax.f32 %v1953, 0.0
    %v2536 = vmax.f32 %v1958, 0.0
    %v2537 = vmax.f32 %v1963, 0.0
    %v2538 = vmax.f32 %v1968, 0.0
    %v2539 = vmax.f32 %v1973, 0.0
    %v2540 = vmax.f32 %v1978, 0.0
    %v2541 = vmax.f32 %v1983, 0.0
    %v2542 = vmax.f32 %v1988, 0.0
    %v2543 = vmax.f32 %v1993, 0.0
    %v2544 = vmax.f32 %v1998, 0.0
    %v2545 = vmax.f32 %v2003, 0.0
    %v2546 = vmax.f32 %v2008, 0.0
    %v2547 = vmax.f32 %v2013, 0.0
    %v2548 = vmax.f32 %v2018, 0.0
    %v2549 = vmax.f32 %v2023, 0.0
    %v2550 = vmax.f32 %v2028, 0.0
    %v2551 = vmax.f32 %v2033, 0.0
    %v2552 = vmax.f32 %v2038, 0.0
    %v2553 = vmax.f32 %v2043, 0.0
    %v2554 = vmax.f32 %v2048, 0.0
    %v2555 = vmax.f32 %v2053, 0.0
    %v2556 = vmax.f32 %v2058, 0.0
    %v2557 = vmax.f32 %v2063, 0.0
    %v2558 = vmax.f32 %v2068, 0.0
    %v2559 = vmax.f32 %v2073, 0.0
    %v2560 = vmax.f32 %v2078, 0.0
    %v2561 = vmax.f32 %v2083, 0.0
    %v2562 = vmax.f32 %v2088, 0.0
    %v2563 = vmax.f32 %v2093, 0.0
    %v2564 = vmax.f32 %v2098, 0.0
    %v2565 = vmax.f32 %v2103, 0.0
    %v2566 = vmax.f32 %v2108, 0.0
    %v2567 = vmax.f32 %v2113, 0.0
    %v2568 = vmax.f32 %v2118, 0.0
    %v2569 = vmax.f32 %v2123, 0.0
    %v2570 = vmax.f32 %v2128, 0.0
    %v2571 = vmax.f32 %v2133, 0.0
    %v2572 = vmax.f32 %v2138, 0.0
    %v2573 = vmax.f32 %v2143, 0.0
    %v2574 = vmax.f32 %v2148, 0.0
    %v2575 = vmax.f32 %v2153, 0.0
    %v2576 = vmax.f32 %v2158, 0.0
    %v2577 = vmax.f32 %v2163, 0.0
    %v2578 = vmax.f32 %v2168, 0.0
    %v2579 = vmax.f32 %v2173, 0.0
    %v2580 = vmax.f32 %v2178, 0.0
    %v2581 = vmax.f32 %v2183, 0.0
    %v2582 = vmax.f32 %v2188, 0.0
    %v2583 = vmax.f32 %v2193, 0.0
    %v2584 = vmax.f32 %v2198, 0.0
    %v2585 = vmax.f32 %v2203, 0.0
    %v2586 = vmax.f32 %v2208, 0.0
    %v2587 = vmax.f32 %v2213, 0.0
    %v2588 = vmax.f32 %v2218, 0.0
    %v2589 = vmax.f32 %v2223, 0.0
    %v2590 = vmax.f32 %v2228, 0.0
    %v2591 = vmax.f32 %v2233, 0.0
    %v2592 = vmax.f32 %v2238, 0.0
    %v2593 = vmax.f32 %v2243, 0.0
    %v2594 = vmax.f32 %v2248, 0.0
    %v2595 = vmax.f32 %v2253, 0.0
    %v2596 = vmax.f32 %v2258, 0.0
    %v2597 = vmax.f32 %v2263, 0.0
    %v2598 = vmax.f32 %v2268, 0.0
    %v2599 = vmax.f32 %v2273, 0.0
    %v2600 = vmax.f32 %v2278, 0.0
    %v2601 = vmax.f32 %v2283, 0.0
    %v2602 = vmax.f32 %v2288, 0.0
    %v2603 = vmax.f32 %v2293, 0.0
    %v2604 = vmax.f32 %v2298, 0.0
    %v2605 = vmax.f32 %v2303, 0.0
    %v2606 = vmax.f32 %v2308, 0.0
    %v2607 = vmax.f32 %v2313, 0.0
    %v2608 = vmax.f32 %v2318, 0.0
    %v2609 = vmax.f32 %v2323, 0.0
    %v2610 = vmax.f32 %v2328, 0.0
    %v2611 = vmax.f32 %v2333, 0.0
    %v2612 = vmax.f32 %v2338, 0.0
    %v2613 = vmax.f32 %v2343, 0.0
    %v2614 = vmax.f32 %v2348, 0.0
    %v2615 = vmax.f32 %v2353, 0.0
    %v2616 = vmax.f32 %v2358, 0.0
    %v2617 = vmax.f32 %v2363, 0.0
    %v2618 = vmax.f32 %v2368, 0.0
    %v2619 = vmax.f32 %v2373, 0.0
    %v2620 = vmax.f32 %v2378, 0.0
    %v2621 = vmax.f32 %v2383, 0.0
    %v2622 = vmax.f32 %v2388, 0.0
    %v2623 = vmax.f32 %v2393, 0.0
    %v2624 = vmax.f32 %v2398, 0.0
    %v2625 = vmax.f32 %v2403, 0.0
    %v2626 = vmax.f32 %v2408, 0.0
    %v2627 = vmax.f32 %v2413, 0.0
    %v2628 = vmax.f32 %v2418, 0.0
    %v2629 = vmax.f32 %v2423, 0.0
    %v2630 = vmax.f32 %v2428, 0.0
    %v2631 = vmax.f32 %v2433, 0.0
    %v2632 = vmax.f32 %v2438, 0.0
    %v2633 = vmax.f32 %v2443, 0.0
    %v2634 = vmax.f32 %v2448, 0.0
    %v2635 = vmax.f32 %v2453, 0.0
    %v2636 = vmax.f32 %v2458, 0.0
    %v2637 = vmax.f32 %v2463, 0.0
    %v2638 = vmax.f32 %v2468, 0.0
    %v2639 = vmax.f32 %v2473, 0.0
    %v2640 = vmax.f32 %v2478, 0.0
    %v2641 = vmax.f32 %v2483, 0.0
    %v2642 = vmax.f32 %v2488, 0.0
    %v2643 = vmax.f32 %v2493, 0.0
    %v2644 = vmax.f32 %v2498, 0.0
    %v2645 = vmax.f32 %v2503, 0.0
    %v2646 = vmax.f32 %v2508, 0.0
    %v2647 = vmax.f32 %v2513, 0.0
    %v2648 = vmax.f32 %v2518, 0.0
    %v2649 = vld [vmem:[%s7] sm:$0xff]
    %v2650 = vld [vmem:[%s7 + $0x8] sm:$0xff]
    %v2651 = vld [vmem:[%s7 + $0x10] sm:$0xff]
    %v2652 = vld [vmem:[%s7 + $0x18] sm:$0xff]
    %v2653 = vld [vmem:[%s8] sm:$0x1]
    %v2655 = vlaneseq
    %v2656 = vshrl.u32 %v2655, 7
    %v2657 = vsub.s32 0, %v2656
    %v2658 = vrot.slane %v2653, %v2657
    %v2661 = vsel %vm1431, %v2521, 0
    %v2664 = vsel %vm1431, %v2522, 0
    %v2667 = vsel %vm1431, %v2523, 0
    %v2670 = vsel %vm1431, %v2524, 0
    %v2673 = vsel %vm1431, %v2525, 0
    %v2676 = vsel %vm1431, %v2526, 0
    %v2679 = vsel %vm1431, %v2527, 0
    %v2682 = vsel %vm1431, %v2528, 0
    %v2685 = vsel %vm1431, %v2529, 0
    %v2688 = vsel %vm1431, %v2530, 0
    %v2691 = vsel %vm1431, %v2531, 0
    %v2694 = vsel %vm1431, %v2532, 0
    %v2697 = vsel %vm1431, %v2533, 0
    %v2700 = vsel %vm1431, %v2534, 0
    %v2703 = vsel %vm1431, %v2535, 0
    %v2706 = vsel %vm1431, %v2536, 0
    %v2709 = vsel %vm1431, %v2537, 0
    %v2712 = vsel %vm1431, %v2538, 0
    %v2715 = vsel %vm1431, %v2539, 0
    %v2718 = vsel %vm1431, %v2540, 0
    %v2721 = vsel %vm1431, %v2541, 0
    %v2724 = vsel %vm1431, %v2542, 0
    %v2727 = vsel %vm1431, %v2543, 0
    %v2730 = vsel %vm1431, %v2544, 0
    %v2733 = vsel %vm1431, %v2545, 0
    %v2736 = vsel %vm1431, %v2546, 0
    %v2739 = vsel %vm1431, %v2547, 0
    %v2742 = vsel %vm1431, %v2548, 0
    %v2745 = vsel %vm1431, %v2549, 0
    %v2748 = vsel %vm1431, %v2550, 0
    %v2751 = vsel %vm1431, %v2551, 0
    %v2754 = vsel %vm1431, %v2552, 0
    %v2757 = vsel %vm1431, %v2553, 0
    %v2760 = vsel %vm1431, %v2554, 0
    %v2763 = vsel %vm1431, %v2555, 0
    %v2766 = vsel %vm1431, %v2556, 0
    %v2769 = vsel %vm1431, %v2557, 0
    %v2772 = vsel %vm1431, %v2558, 0
    %v2775 = vsel %vm1431, %v2559, 0
    %v2778 = vsel %vm1431, %v2560, 0
    %v2781 = vsel %vm1431, %v2561, 0
    %v2784 = vsel %vm1431, %v2562, 0
    %v2787 = vsel %vm1431, %v2563, 0
    %v2790 = vsel %vm1431, %v2564, 0
    %v2793 = vsel %vm1431, %v2565, 0
    %v2796 = vsel %vm1431, %v2566, 0
    %v2799 = vsel %vm1431, %v2567, 0
    %v2802 = vsel %vm1431, %v2568, 0
    %v2805 = vsel %vm1431, %v2569, 0
    %v2808 = vsel %vm1431, %v2570, 0
    %v2811 = vsel %vm1431, %v2571, 0
    %v2814 = vsel %vm1431, %v2572, 0
    %v2817 = vsel %vm1431, %v2573, 0
    %v2820 = vsel %vm1431, %v2574, 0
    %v2823 = vsel %vm1431, %v2575, 0
    %v2826 = vsel %vm1431, %v2576, 0
    %v2829 = vsel %vm1431, %v2577, 0
    %v2832 = vsel %vm1431, %v2578, 0
    %v2835 = vsel %vm1431, %v2579, 0
    %v2838 = vsel %vm1431, %v2580, 0
    %v2841 = vsel %vm1431, %v2581, 0
    %v2844 = vsel %vm1431, %v2582, 0
    %v2847 = vsel %vm1431, %v2583, 0
    %v2850 = vsel %vm1431, %v2584, 0
    %v2853 = vsel %vm1431, %v2585, 0
    %v2856 = vsel %vm1431, %v2586, 0
    %v2859 = vsel %vm1431, %v2587, 0
    %v2862 = vsel %vm1431, %v2588, 0
    %v2865 = vsel %vm1431, %v2589, 0
    %v2868 = vsel %vm1431, %v2590, 0
    %v2871 = vsel %vm1431, %v2591, 0
    %v2874 = vsel %vm1431, %v2592, 0
    %v2877 = vsel %vm1431, %v2593, 0
    %v2880 = vsel %vm1431, %v2594, 0
    %v2883 = vsel %vm1431, %v2595, 0
    %v2886 = vsel %vm1431, %v2596, 0
    %v2889 = vsel %vm1431, %v2597, 0
    %v2892 = vsel %vm1431, %v2598, 0
    %v2895 = vsel %vm1431, %v2599, 0
    %v2898 = vsel %vm1431, %v2600, 0
    %v2901 = vsel %vm1431, %v2601, 0
    %v2904 = vsel %vm1431, %v2602, 0
    %v2907 = vsel %vm1431, %v2603, 0
    %v2910 = vsel %vm1431, %v2604, 0
    %v2913 = vsel %vm1431, %v2605, 0
    %v2916 = vsel %vm1431, %v2606, 0
    %v2919 = vsel %vm1431, %v2607, 0
    %v2922 = vsel %vm1431, %v2608, 0
    %v2925 = vsel %vm1431, %v2609, 0
    %v2928 = vsel %vm1431, %v2610, 0
    %v2931 = vsel %vm1431, %v2611, 0
    %v2934 = vsel %vm1431, %v2612, 0
    %v2937 = vsel %vm1431, %v2613, 0
    %v2940 = vsel %vm1431, %v2614, 0
    %v2943 = vsel %vm1431, %v2615, 0
    %v2946 = vsel %vm1431, %v2616, 0
    %v2949 = vsel %vm1431, %v2617, 0
    %v2952 = vsel %vm1431, %v2618, 0
    %v2955 = vsel %vm1431, %v2619, 0
    %v2958 = vsel %vm1431, %v2620, 0
    %v2961 = vsel %vm1431, %v2621, 0
    %v2964 = vsel %vm1431, %v2622, 0
    %v2967 = vsel %vm1431, %v2623, 0
    %v2970 = vsel %vm1431, %v2624, 0
    %v2973 = vsel %vm1431, %v2625, 0
    %v2976 = vsel %vm1431, %v2626, 0
    %v2979 = vsel %vm1431, %v2627, 0
    %v2982 = vsel %vm1431, %v2628, 0
    %v2985 = vsel %vm1431, %v2629, 0
    %v2988 = vsel %vm1431, %v2630, 0
    %v2991 = vsel %vm1431, %v2631, 0
    %v2994 = vsel %vm1431, %v2632, 0
    %v2997 = vsel %vm1431, %v2633, 0
    %v3000 = vsel %vm1431, %v2634, 0
    %v3003 = vsel %vm1431, %v2635, 0
    %v3006 = vsel %vm1431, %v2636, 0
    %v3009 = vsel %vm1431, %v2637, 0
    %v3012 = vsel %vm1431, %v2638, 0
    %v3015 = vsel %vm1431, %v2639, 0
    %v3018 = vsel %vm1431, %v2640, 0
    %v3021 = vsel %vm1431, %v2641, 0
    %v3024 = vsel %vm1431, %v2642, 0
    %v3027 = vsel %vm1431, %v2643, 0
    %v3030 = vsel %vm1431, %v2644, 0
    %v3033 = vsel %vm1431, %v2645, 0
    %v3036 = vsel %vm1431, %v2646, 0
    %v3039 = vsel %vm1431, %v2647, 0
    %v3042 = vsel %vm1431, %v2648, 0
    %3044 = vmatprep.subr.mxu0 0.0
    %3045 = vmatpush1.msra.mxu0 %v2649
    %3046 = vmatprep.subr.mxu0 0.0
    %3047 = vmatpush1.msra.mxu0 %v2650
    %3048 = vmatprep.subr.mxu0 0.0
    %3049 = vmatpush1.msra.mxu0 %v2651
    %3050 = vmatprep.subr.mxu0 0.0
    %3051 = vmatpush1.msra.mxu0 %v2652
    %3052 = vmatprep.subr.mxu0 0.0
    %3053 = vmatpush1.msra.mxu0 0.0
    %3054 = vmatprep.subr.mxu0 0.0
    %3055 = vmatpush1.msra.mxu0 0.0
    %3056 = vmatprep.subr.mxu0 0.0
    %3057 = vmatpush1.msra.mxu0 0.0
    %3058 = vmatprep.subr.mxu0 0.0
    %3059 = vmatpush1.msra.mxu0 0.0
    %3060 = vmatprep.subr.mxu0 0.0
    %3061 = vmatpush1.msra.mxu0 0.0
    %3062 = vmatprep.subr.mxu0 0.0
    %3063 = vmatpush1.msra.mxu0 0.0
    %3064 = vmatprep.subr.mxu0 0.0
    %3065 = vmatpush1.msra.mxu0 0.0
    %3066 = vmatprep.subr.mxu0 0.0
    %3067 = vmatpush1.msra.mxu0 0.0
    %3068 = vmatprep.subr.mxu0 0.0
    %3069 = vmatpush1.msra.mxu0 0.0
    %3070 = vmatprep.subr.mxu0 0.0
    %3071 = vmatpush1.msra.mxu0 0.0
    %3072 = vmatprep.subr.mxu0 0.0
    %3073 = vmatpush1.msra.mxu0 0.0
    %3074 = vmatprep.subr.mxu0 0.0
    %3075 = vmatpush1.msra.mxu0 0.0
    %3076 = vmatprep.subr.mxu0 0.0
    %3077 = vmatpush1.msra.mxu0 0.0
    %3078 = vmatprep.subr.mxu0 0.0
    %3079 = vmatpush1.msra.mxu0 0.0
    %3080 = vmatprep.subr.mxu0 0.0
    %3081 = vmatpush1.msra.mxu0 0.0
    %3082 = vmatprep.subr.mxu0 0.0
    %3083 = vmatpush1.msra.mxu0 0.0
    %3084 = vmatprep.subr.mxu0 0.0
    %3085 = vmatpush1.msra.mxu0 0.0
    %3086 = vmatprep.subr.mxu0 0.0
    %3087 = vmatpush1.msra.mxu0 0.0
    %3088 = vmatprep.subr.mxu0 0.0
    %3089 = vmatpush1.msra.mxu0 0.0
    %3090 = vmatprep.subr.mxu0 0.0
    %3091 = vmatpush1.msra.mxu0 0.0
    %3092 = vmatprep.subr.mxu0 0.0
    %3093 = vmatpush1.msra.mxu0 0.0
    %3094 = vmatprep.subr.mxu0 0.0
    %3095 = vmatpush1.msra.mxu0 0.0
    %3096 = vmatprep.subr.mxu0 0.0
    %3097 = vmatpush1.msra.mxu0 0.0
    %3098 = vmatprep.subr.mxu0 0.0
    %3099 = vmatpush1.msra.mxu0 0.0
    %3100 = vmatprep.subr.mxu0 0.0
    %3101 = vmatpush1.msra.mxu0 0.0
    %3102 = vmatprep.subr.mxu0 0.0
    %3103 = vmatpush1.msra.mxu0 0.0
    %3104 = vmatprep.subr.mxu0 0.0
    %3105 = vmatpush1.msra.mxu0 0.0
    %3106 = vmatprep.subr.mxu0 0.0
    %3107 = vmatpush1.msra.mxu0 0.0
    %3108 = vmatprep.mubr.f32.mxu0 0.0
    %3109 = vmatmul.mubr.f32.gmra.mrb[0].mxu0 %v2661
    %v3110 = vpop.f32.mrb[0].mxu0
    %v3111 = vadd.f32 %v2658, %v3110
    %v3112 = vpop.f32.mrb[0].mxu0
    %3113 = vmatprep.mubr.f32.mxu0 0.0
    %3114 = vmatmul.mubr.f32.gmra.mrb[0].mxu0 %v2664
    %v3115 = vpop.f32.mrb[0].mxu0
    %v3116 = vadd.f32 %v2658, %v3115
    %v3117 = vpop.f32.mrb[0].mxu0
    %3118 = vmatprep.mubr.f32.mxu0 0.0
    %3119 = vmatmul.mubr.f32.gmra.mrb[0].mxu0 %v2667
    %v3120 = vpop.f32.mrb[0].mxu0
    %v3121 = vadd.f32 %v2658, %v3120
    %v3122 = vpop.f32.mrb[0].mxu0
    %3123 = vmatprep.mubr.f32.mxu0 0.0
    %3124 = vmatmul.mubr.f32.gmra.mrb[0].mxu0 %v2670
    %v3125 = vpop.f32.mrb[0].mxu0
    %v3126 = vadd.f32 %v2658, %v3125
    %v3127 = vpop.f32.mrb[0].mxu0
    %3128 = vmatprep.mubr.f32.mxu0 0.0
    %3129 = vmatmul.mubr.f32.gmra.mrb[0].mxu0 %v2673
    %v3130 = vpop.f32.mrb[0].mxu0
    %v3131 = vadd.f32 %v2658, %v3130
    %v3132 = vpop.f32.mrb[0].mxu0
    %3133 = vmatprep.mubr.f32.mxu0 0.0
    %3134 = vmatmul.mubr.f32.gmra.mrb[0].mxu0 %v2676
    %v3135 = vpop.f32.mrb[0].mxu0
    %v3136 = vadd.f32 %v2658, %v3135
    %v3137 = vpop.f32.mrb[0].mxu0
    %3138 = vmatprep.mubr.f32.mxu0 0.0
    %3139 = vmatmul.mubr.f32.gmra.mrb[0].mxu0 %v2679
    %v3140 = vpop.f32.mrb[0].mxu0
    %v3141 = vadd.f32 %v2658, %v3140
    %v3142 = vpop.f32.mrb[0].mxu0
    %3143 = vmatprep.mubr.f32.mxu0 0.0
    %3144 = vmatmul.mubr.f32.gmra.mrb[0].mxu0 %v2682
    %v3145 = vpop.f32.mrb[0].mxu0
    %v3146 = vadd.f32 %v2658, %v3145
    %v3147 = vpop.f32.mrb[0].mxu0
    %3148 = vmatprep.mubr.f32.mxu0 0.0
    %3149 = vmatmul.mubr.f32.gmra.mrb[0].mxu0 %v2685
    %v3150 = vpop.f32.mrb[0].mxu0
    %v3151 = vadd.f32 %v2658, %v3150
    %v3152 = vpop.f32.mrb[0].mxu0
    %3153 = vmatprep.mubr.f32.mxu0 0.0
    %3154 = vmatmul.mubr.f32.gmra.mrb[0].mxu0 %v2688
    %v3155 = vpop.f32.mrb[0].mxu0
    %v3156 = vadd.f32 %v2658, %v3155
    %v3157 = vpop.f32.mrb[0].mxu0
    %3158 = vmatprep.mubr.f32.mxu0 0.0
    %3159 = vmatmul.mubr.f32.gmra.mrb[0].mxu0 %v2691
    %v3160 = vpop.f32.mrb[0].mxu0
    %v3161 = vadd.f32 %v2658, %v3160
    %v3162 = vpop.f32.mrb[0].mxu0
    %3163 = vmatprep.mubr.f32.mxu0 0.0
    %3164 = vmatmul.mubr.f32.gmra.mrb[0].mxu0 %v2694
    %v3165 = vpop.f32.mrb[0].mxu0
    %v3166 = vadd.f32 %v2658, %v3165
    %v3167 = vpop.f32.mrb[0].mxu0
    %3168 = vmatprep.mubr.f32.mxu0 0.0
    %3169 = vmatmul.mubr.f32.gmra.mrb[0].mxu0 %v2697
    %v3170 = vpop.f32.mrb[0].mxu0
    %v3171 = vadd.f32 %v2658, %v3170
    %v3172 = vpop.f32.mrb[0].mxu0
    %3173 = vmatprep.mubr.f32.mxu0 0.0
    %3174 = vmatmul.mubr.f32.gmra.mrb[0].mxu0 %v2700
    %v3175 = vpop.f32.mrb[0].mxu0
    %v3176 = vadd.f32 %v2658, %v3175
    %v3177 = vpop.f32.mrb[0].mxu0
    %3178 = vmatprep.mubr.f32.mxu0 0.0
    %3179 = vmatmul.mubr.f32.gmra.mrb[0].mxu0 %v2703
    %v3180 = vpop.f32.mrb[0].mxu0
    %v3181 = vadd.f32 %v2658, %v3180
    %v3182 = vpop.f32.mrb[0].mxu0
    %3183 = vmatprep.mubr.f32.mxu0 0.0
    %3184 = vmatmul.mubr.f32.gmra.mrb[0].mxu0 %v2706
    %v3185 = vpop.f32.mrb[0].mxu0
    %v3186 = vadd.f32 %v2658, %v3185
    %v3187 = vpop.f32.mrb[0].mxu0
    %3188 = vmatprep.mubr.f32.mxu0 0.0
    %3189 = vmatmul.mubr.f32.gmra.mrb[0].mxu0 %v2709
    %v3190 = vpop.f32.mrb[0].mxu0
    %v3191 = vadd.f32 %v2658, %v3190
    %v3192 = vpop.f32.mrb[0].mxu0
    %3193 = vmatprep.mubr.f32.mxu0 0.0
    %3194 = vmatmul.mubr.f32.gmra.mrb[0].mxu0 %v2712
    %v3195 = vpop.f32.mrb[0].mxu0
    %v3196 = vadd.f32 %v2658, %v3195
    %v3197 = vpop.f32.mrb[0].mxu0
    %3198 = vmatprep.mubr.f32.mxu0 0.0
    %3199 = vmatmul.mubr.f32.gmra.mrb[0].mxu0 %v2715
    %v3200 = vpop.f32.mrb[0].mxu0
    %v3201 = vadd.f32 %v2658, %v3200
    %v3202 = vpop.f32.mrb[0].mxu0
    %3203 = vmatprep.mubr.f32.mxu0 0.0
    %3204 = vmatmul.mubr.f32.gmra.mrb[0].mxu0 %v2718
    %v3205 = vpop.f32.mrb[0].mxu0
    %v3206 = vadd.f32 %v2658, %v3205
    %v3207 = vpop.f32.mrb[0].mxu0
    %3208 = vmatprep.mubr.f32.mxu0 0.0
    %3209 = vmatmul.mubr.f32.gmra.mrb[0].mxu0 %v2721
    %v3210 = vpop.f32.mrb[0].mxu0
    %v3211 = vadd.f32 %v2658, %v3210
    %v3212 = vpop.f32.mrb[0].mxu0
    %3213 = vmatprep.mubr.f32.mxu0 0.0
    %3214 = vmatmul.mubr.f32.gmra.mrb[0].mxu0 %v2724
    %v3215 = vpop.f32.mrb[0].mxu0
    %v3216 = vadd.f32 %v2658, %v3215
    %v3217 = vpop.f32.mrb[0].mxu0
    %3218 = vmatprep.mubr.f32.mxu0 0.0
    %3219 = vmatmul.mubr.f32.gmra.mrb[0].mxu0 %v2727
    %v3220 = vpop.f32.mrb[0].mxu0
    %v3221 = vadd.f32 %v2658, %v3220
    %v3222 = vpop.f32.mrb[0].mxu0
    %3223 = vmatprep.mubr.f32.mxu0 0.0
    %3224 = vmatmul.mubr.f32.gmra.mrb[0].mxu0 %v2730
    %v3225 = vpop.f32.mrb[0].mxu0
    %v3226 = vadd.f32 %v2658, %v3225
    %v3227 = vpop.f32.mrb[0].mxu0
    %3228 = vmatprep.mubr.f32.mxu0 0.0
    %3229 = vmatmul.mubr.f32.gmra.mrb[0].mxu0 %v2733
    %v3230 = vpop.f32.mrb[0].mxu0
    %v3231 = vadd.f32 %v2658, %v3230
    %v3232 = vpop.f32.mrb[0].mxu0
    %3233 = vmatprep.mubr.f32.mxu0 0.0
    %3234 = vmatmul.mubr.f32.gmra.mrb[0].mxu0 %v2736
    %v3235 = vpop.f32.mrb[0].mxu0
    %v3236 = vadd.f32 %v2658, %v3235
    %v3237 = vpop.f32.mrb[0].mxu0
    %3238 = vmatprep.mubr.f32.mxu0 0.0
    %3239 = vmatmul.mubr.f32.gmra.mrb[0].mxu0 %v2739
    %v3240 = vpop.f32.mrb[0].mxu0
    %v3241 = vadd.f32 %v2658, %v3240
    %v3242 = vpop.f32.mrb[0].mxu0
    %3243 = vmatprep.mubr.f32.mxu0 0.0
    %3244 = vmatmul.mubr.f32.gmra.mrb[0].mxu0 %v2742
    %v3245 = vpop.f32.mrb[0].mxu0
    %v3246 = vadd.f32 %v2658, %v3245
    %v3247 = vpop.f32.mrb[0].mxu0
    %3248 = vmatprep.mubr.f32.mxu0 0.0
    %3249 = vmatmul.mubr.f32.gmra.mrb[0].mxu0 %v2745
    %v3250 = vpop.f32.mrb[0].mxu0
    %v3251 = vadd.f32 %v2658, %v3250
    %v3252 = vpop.f32.mrb[0].mxu0
    %3253 = vmatprep.mubr.f32.mxu0 0.0
    %3254 = vmatmul.mubr.f32.gmra.mrb[0].mxu0 %v2748
    %v3255 = vpop.f32.mrb[0].mxu0
    %v3256 = vadd.f32 %v2658, %v3255
    %v3257 = vpop.f32.mrb[0].mxu0
    %3258 = vmatprep.mubr.f32.mxu0 0.0
    %3259 = vmatmul.mubr.f32.gmra.mrb[0].mxu0 %v2751
    %v3260 = vpop.f32.mrb[0].mxu0
    %v3261 = vadd.f32 %v2658, %v3260
    %v3262 = vpop.f32.mrb[0].mxu0
    %3263 = vmatprep.mubr.f32.mxu0 0.0
    %3264 = vmatmul.mubr.f32.gmra.mrb[0].mxu0 %v2754
    %v3265 = vpop.f32.mrb[0].mxu0
    %v3266 = vadd.f32 %v2658, %v3265
    %v3267 = vpop.f32.mrb[0].mxu0
    %3268 = vmatprep.mubr.f32.mxu0 0.0
    %3269 = vmatmul.mubr.f32.gmra.mrb[0].mxu0 %v2757
    %v3270 = vpop.f32.mrb[0].mxu0
    %v3271 = vadd.f32 %v2658, %v3270
    %v3272 = vpop.f32.mrb[0].mxu0
    %3273 = vmatprep.mubr.f32.mxu0 0.0
    %3274 = vmatmul.mubr.f32.gmra.mrb[0].mxu0 %v2760
    %v3275 = vpop.f32.mrb[0].mxu0
    %v3276 = vadd.f32 %v2658, %v3275
    %v3277 = vpop.f32.mrb[0].mxu0
    %3278 = vmatprep.mubr.f32.mxu0 0.0
    %3279 = vmatmul.mubr.f32.gmra.mrb[0].mxu0 %v2763
    %v3280 = vpop.f32.mrb[0].mxu0
    %v3281 = vadd.f32 %v2658, %v3280
    %v3282 = vpop.f32.mrb[0].mxu0
    %3283 = vmatprep.mubr.f32.mxu0 0.0
    %3284 = vmatmul.mubr.f32.gmra.mrb[0].mxu0 %v2766
    %v3285 = vpop.f32.mrb[0].mxu0
    %v3286 = vadd.f32 %v2658, %v3285
    %v3287 = vpop.f32.mrb[0].mxu0
    %3288 = vmatprep.mubr.f32.mxu0 0.0
    %3289 = vmatmul.mubr.f32.gmra.mrb[0].mxu0 %v2769
    %v3290 = vpop.f32.mrb[0].mxu0
    %v3291 = vadd.f32 %v2658, %v3290
    %v3292 = vpop.f32.mrb[0].mxu0
    %3293 = vmatprep.mubr.f32.mxu0 0.0
    %3294 = vmatmul.mubr.f32.gmra.mrb[0].mxu0 %v2772
    %v3295 = vpop.f32.mrb[0].mxu0
    %v3296 = vadd.f32 %v2658, %v3295
    %v3297 = vpop.f32.mrb[0].mxu0
    %3298 = vmatprep.mubr.f32.mxu0 0.0
    %3299 = vmatmul.mubr.f32.gmra.mrb[0].mxu0 %v2775
    %v3300 = vpop.f32.mrb[0].mxu0
    %v3301 = vadd.f32 %v2658, %v3300
    %v3302 = vpop.f32.mrb[0].mxu0
    %3303 = vmatprep.mubr.f32.mxu0 0.0
    %3304 = vmatmul.mubr.f32.gmra.mrb[0].mxu0 %v2778
    %v3305 = vpop.f32.mrb[0].mxu0
    %v3306 = vadd.f32 %v2658, %v3305
    %v3307 = vpop.f32.mrb[0].mxu0
    %3308 = vmatprep.mubr.f32.mxu0 0.0
    %3309 = vmatmul.mubr.f32.gmra.mrb[0].mxu0 %v2781
    %v3310 = vpop.f32.mrb[0].mxu0
    %v3311 = vadd.f32 %v2658, %v3310
    %v3312 = vpop.f32.mrb[0].mxu0
    %3313 = vmatprep.mubr.f32.mxu0 0.0
    %3314 = vmatmul.mubr.f32.gmra.mrb[0].mxu0 %v2784
    %v3315 = vpop.f32.mrb[0].mxu0
    %v3316 = vadd.f32 %v2658, %v3315
    %v3317 = vpop.f32.mrb[0].mxu0
    %3318 = vmatprep.mubr.f32.mxu0 0.0
    %3319 = vmatmul.mubr.f32.gmra.mrb[0].mxu0 %v2787
    %v3320 = vpop.f32.mrb[0].mxu0
    %v3321 = vadd.f32 %v2658, %v3320
    %v3322 = vpop.f32.mrb[0].mxu0
    %3323 = vmatprep.mubr.f32.mxu0 0.0
    %3324 = vmatmul.mubr.f32.gmra.mrb[0].mxu0 %v2790
    %v3325 = vpop.f32.mrb[0].mxu0
    %v3326 = vadd.f32 %v2658, %v3325
    %v3327 = vpop.f32.mrb[0].mxu0
    %3328 = vmatprep.mubr.f32.mxu0 0.0
    %3329 = vmatmul.mubr.f32.gmra.mrb[0].mxu0 %v2793
    %v3330 = vpop.f32.mrb[0].mxu0
    %v3331 = vadd.f32 %v2658, %v3330
    %v3332 = vpop.f32.mrb[0].mxu0
    %3333 = vmatprep.mubr.f32.mxu0 0.0
    %3334 = vmatmul.mubr.f32.gmra.mrb[0].mxu0 %v2796
    %v3335 = vpop.f32.mrb[0].mxu0
    %v3336 = vadd.f32 %v2658, %v3335
    %v3337 = vpop.f32.mrb[0].mxu0
    %3338 = vmatprep.mubr.f32.mxu0 0.0
    %3339 = vmatmul.mubr.f32.gmra.mrb[0].mxu0 %v2799
    %v3340 = vpop.f32.mrb[0].mxu0
    %v3341 = vadd.f32 %v2658, %v3340
    %v3342 = vpop.f32.mrb[0].mxu0
    %3343 = vmatprep.mubr.f32.mxu0 0.0
    %3344 = vmatmul.mubr.f32.gmra.mrb[0].mxu0 %v2802
    %v3345 = vpop.f32.mrb[0].mxu0
    %v3346 = vadd.f32 %v2658, %v3345
    %v3347 = vpop.f32.mrb[0].mxu0
    %3348 = vmatprep.mubr.f32.mxu0 0.0
    %3349 = vmatmul.mubr.f32.gmra.mrb[0].mxu0 %v2805
    %v3350 = vpop.f32.mrb[0].mxu0
    %v3351 = vadd.f32 %v2658, %v3350
    %v3352 = vpop.f32.mrb[0].mxu0
    %3353 = vmatprep.mubr.f32.mxu0 0.0
    %3354 = vmatmul.mubr.f32.gmra.mrb[0].mxu0 %v2808
    %v3355 = vpop.f32.mrb[0].mxu0
    %v3356 = vadd.f32 %v2658, %v3355
    %v3357 = vpop.f32.mrb[0].mxu0
    %3358 = vmatprep.mubr.f32.mxu0 0.0
    %3359 = vmatmul.mubr.f32.gmra.mrb[0].mxu0 %v2811
    %v3360 = vpop.f32.mrb[0].mxu0
    %v3361 = vadd.f32 %v2658, %v3360
    %v3362 = vpop.f32.mrb[0].mxu0
    %3363 = vmatprep.mubr.f32.mxu0 0.0
    %3364 = vmatmul.mubr.f32.gmra.mrb[0].mxu0 %v2814
    %v3365 = vpop.f32.mrb[0].mxu0
    %v3366 = vadd.f32 %v2658, %v3365
    %v3367 = vpop.f32.mrb[0].mxu0
    %3368 = vmatprep.mubr.f32.mxu0 0.0
    %3369 = vmatmul.mubr.f32.gmra.mrb[0].mxu0 %v2817
    %v3370 = vpop.f32.mrb[0].mxu0
    %v3371 = vadd.f32 %v2658, %v3370
    %v3372 = vpop.f32.mrb[0].mxu0
    %3373 = vmatprep.mubr.f32.mxu0 0.0
    %3374 = vmatmul.mubr.f32.gmra.mrb[0].mxu0 %v2820
    %v3375 = vpop.f32.mrb[0].mxu0
    %v3376 = vadd.f32 %v2658, %v3375
    %v3377 = vpop.f32.mrb[0].mxu0
    %3378 = vmatprep.mubr.f32.mxu0 0.0
    %3379 = vmatmul.mubr.f32.gmra.mrb[0].mxu0 %v2823
    %v3380 = vpop.f32.mrb[0].mxu0
    %v3381 = vadd.f32 %v2658, %v3380
    %v3382 = vpop.f32.mrb[0].mxu0
    %3383 = vmatprep.mubr.f32.mxu0 0.0
    %3384 = vmatmul.mubr.f32.gmra.mrb[0].mxu0 %v2826
    %v3385 = vpop.f32.mrb[0].mxu0
    %v3386 = vadd.f32 %v2658, %v3385
    %v3387 = vpop.f32.mrb[0].mxu0
    %3388 = vmatprep.mubr.f32.mxu0 0.0
    %3389 = vmatmul.mubr.f32.gmra.mrb[0].mxu0 %v2829
    %v3390 = vpop.f32.mrb[0].mxu0
    %v3391 = vadd.f32 %v2658, %v3390
    %v3392 = vpop.f32.mrb[0].mxu0
    %3393 = vmatprep.mubr.f32.mxu0 0.0
    %3394 = vmatmul.mubr.f32.gmra.mrb[0].mxu0 %v2832
    %v3395 = vpop.f32.mrb[0].mxu0
    %v3396 = vadd.f32 %v2658, %v3395
    %v3397 = vpop.f32.mrb[0].mxu0
    %3398 = vmatprep.mubr.f32.mxu0 0.0
    %3399 = vmatmul.mubr.f32.gmra.mrb[0].mxu0 %v2835
    %v3400 = vpop.f32.mrb[0].mxu0
    %v3401 = vadd.f32 %v2658, %v3400
    %v3402 = vpop.f32.mrb[0].mxu0
    %3403 = vmatprep.mubr.f32.mxu0 0.0
    %3404 = vmatmul.mubr.f32.gmra.mrb[0].mxu0 %v2838
    %v3405 = vpop.f32.mrb[0].mxu0
    %v3406 = vadd.f32 %v2658, %v3405
    %v3407 = vpop.f32.mrb[0].mxu0
    %3408 = vmatprep.mubr.f32.mxu0 0.0
    %3409 = vmatmul.mubr.f32.gmra.mrb[0].mxu0 %v2841
    %v3410 = vpop.f32.mrb[0].mxu0
    %v3411 = vadd.f32 %v2658, %v3410
    %v3412 = vpop.f32.mrb[0].mxu0
    %3413 = vmatprep.mubr.f32.mxu0 0.0
    %3414 = vmatmul.mubr.f32.gmra.mrb[0].mxu0 %v2844
    %v3415 = vpop.f32.mrb[0].mxu0
    %v3416 = vadd.f32 %v2658, %v3415
    %v3417 = vpop.f32.mrb[0].mxu0
    %3418 = vmatprep.mubr.f32.mxu0 0.0
    %3419 = vmatmul.mubr.f32.gmra.mrb[0].mxu0 %v2847
    %v3420 = vpop.f32.mrb[0].mxu0
    %v3421 = vadd.f32 %v2658, %v3420
    %v3422 = vpop.f32.mrb[0].mxu0
    %3423 = vmatprep.mubr.f32.mxu0 0.0
    %3424 = vmatmul.mubr.f32.gmra.mrb[0].mxu0 %v2850
    %v3425 = vpop.f32.mrb[0].mxu0
    %v3426 = vadd.f32 %v2658, %v3425
    %v3427 = vpop.f32.mrb[0].mxu0
    %3428 = vmatprep.mubr.f32.mxu0 0.0
    %3429 = vmatmul.mubr.f32.gmra.mrb[0].mxu0 %v2853
    %v3430 = vpop.f32.mrb[0].mxu0
    %v3431 = vadd.f32 %v2658, %v3430
    %v3432 = vpop.f32.mrb[0].mxu0
    %3433 = vmatprep.mubr.f32.mxu0 0.0
    %3434 = vmatmul.mubr.f32.gmra.mrb[0].mxu0 %v2856
    %v3435 = vpop.f32.mrb[0].mxu0
    %v3436 = vadd.f32 %v2658, %v3435
    %v3437 = vpop.f32.mrb[0].mxu0
    %3438 = vmatprep.mubr.f32.mxu0 0.0
    %3439 = vmatmul.mubr.f32.gmra.mrb[0].mxu0 %v2859
    %v3440 = vpop.f32.mrb[0].mxu0
    %v3441 = vadd.f32 %v2658, %v3440
    %v3442 = vpop.f32.mrb[0].mxu0
    %3443 = vmatprep.mubr.f32.mxu0 0.0
    %3444 = vmatmul.mubr.f32.gmra.mrb[0].mxu0 %v2862
    %v3445 = vpop.f32.mrb[0].mxu0
    %v3446 = vadd.f32 %v2658, %v3445
    %v3447 = vpop.f32.mrb[0].mxu0
    %3448 = vmatprep.mubr.f32.mxu0 0.0
    %3449 = vmatmul.mubr.f32.gmra.mrb[0].mxu0 %v2865
    %v3450 = vpop.f32.mrb[0].mxu0
    %v3451 = vadd.f32 %v2658, %v3450
    %v3452 = vpop.f32.mrb[0].mxu0
    %3453 = vmatprep.mubr.f32.mxu0 0.0
    %3454 = vmatmul.mubr.f32.gmra.mrb[0].mxu0 %v2868
    %v3455 = vpop.f32.mrb[0].mxu0
    %v3456 = vadd.f32 %v2658, %v3455
    %v3457 = vpop.f32.mrb[0].mxu0
    %3458 = vmatprep.mubr.f32.mxu0 0.0
    %3459 = vmatmul.mubr.f32.gmra.mrb[0].mxu0 %v2871
    %v3460 = vpop.f32.mrb[0].mxu0
    %v3461 = vadd.f32 %v2658, %v3460
    %v3462 = vpop.f32.mrb[0].mxu0
    %3463 = vmatprep.mubr.f32.mxu0 0.0
    %3464 = vmatmul.mubr.f32.gmra.mrb[0].mxu0 %v2874
    %v3465 = vpop.f32.mrb[0].mxu0
    %v3466 = vadd.f32 %v2658, %v3465
    %v3467 = vpop.f32.mrb[0].mxu0
    %3468 = vmatprep.mubr.f32.mxu0 0.0
    %3469 = vmatmul.mubr.f32.gmra.mrb[0].mxu0 %v2877
    %v3470 = vpop.f32.mrb[0].mxu0
    %v3471 = vadd.f32 %v2658, %v3470
    %v3472 = vpop.f32.mrb[0].mxu0
    %3473 = vmatprep.mubr.f32.mxu0 0.0
    %3474 = vmatmul.mubr.f32.gmra.mrb[0].mxu0 %v2880
    %v3475 = vpop.f32.mrb[0].mxu0
    %v3476 = vadd.f32 %v2658, %v3475
    %v3477 = vpop.f32.mrb[0].mxu0
    %3478 = vmatprep.mubr.f32.mxu0 0.0
    %3479 = vmatmul.mubr.f32.gmra.mrb[0].mxu0 %v2883
    %v3480 = vpop.f32.mrb[0].mxu0
    %v3481 = vadd.f32 %v2658, %v3480
    %v3482 = vpop.f32.mrb[0].mxu0
    %3483 = vmatprep.mubr.f32.mxu0 0.0
    %3484 = vmatmul.mubr.f32.gmra.mrb[0].mxu0 %v2886
    %v3485 = vpop.f32.mrb[0].mxu0
    %v3486 = vadd.f32 %v2658, %v3485
    %v3487 = vpop.f32.mrb[0].mxu0
    %3488 = vmatprep.mubr.f32.mxu0 0.0
    %3489 = vmatmul.mubr.f32.gmra.mrb[0].mxu0 %v2889
    %v3490 = vpop.f32.mrb[0].mxu0
    %v3491 = vadd.f32 %v2658, %v3490
    %v3492 = vpop.f32.mrb[0].mxu0
    %3493 = vmatprep.mubr.f32.mxu0 0.0
    %3494 = vmatmul.mubr.f32.gmra.mrb[0].mxu0 %v2892
    %v3495 = vpop.f32.mrb[0].mxu0
    %v3496 = vadd.f32 %v2658, %v3495
    %v3497 = vpop.f32.mrb[0].mxu0
    %3498 = vmatprep.mubr.f32.mxu0 0.0
    %3499 = vmatmul.mubr.f32.gmra.mrb[0].mxu0 %v2895
    %v3500 = vpop.f32.mrb[0].mxu0
    %v3501 = vadd.f32 %v2658, %v3500
    %v3502 = vpop.f32.mrb[0].mxu0
    %3503 = vmatprep.mubr.f32.mxu0 0.0
    %3504 = vmatmul.mubr.f32.gmra.mrb[0].mxu0 %v2898
    %v3505 = vpop.f32.mrb[0].mxu0
    %v3506 = vadd.f32 %v2658, %v3505
    %v3507 = vpop.f32.mrb[0].mxu0
    %3508 = vmatprep.mubr.f32.mxu0 0.0
    %3509 = vmatmul.mubr.f32.gmra.mrb[0].mxu0 %v2901
    %v3510 = vpop.f32.mrb[0].mxu0
    %v3511 = vadd.f32 %v2658, %v3510
    %v3512 = vpop.f32.mrb[0].mxu0
    %3513 = vmatprep.mubr.f32.mxu0 0.0
    %3514 = vmatmul.mubr.f32.gmra.mrb[0].mxu0 %v2904
    %v3515 = vpop.f32.mrb[0].mxu0
    %v3516 = vadd.f32 %v2658, %v3515
    %v3517 = vpop.f32.mrb[0].mxu0
    %3518 = vmatprep.mubr.f32.mxu0 0.0
    %3519 = vmatmul.mubr.f32.gmra.mrb[0].mxu0 %v2907
    %v3520 = vpop.f32.mrb[0].mxu0
    %v3521 = vadd.f32 %v2658, %v3520
    %v3522 = vpop.f32.mrb[0].mxu0
    %3523 = vmatprep.mubr.f32.mxu0 0.0
    %3524 = vmatmul.mubr.f32.gmra.mrb[0].mxu0 %v2910
    %v3525 = vpop.f32.mrb[0].mxu0
    %v3526 = vadd.f32 %v2658, %v3525
    %v3527 = vpop.f32.mrb[0].mxu0
    %3528 = vmatprep.mubr.f32.mxu0 0.0
    %3529 = vmatmul.mubr.f32.gmra.mrb[0].mxu0 %v2913
    %v3530 = vpop.f32.mrb[0].mxu0
    %v3531 = vadd.f32 %v2658, %v3530
    %v3532 = vpop.f32.mrb[0].mxu0
    %3533 = vmatprep.mubr.f32.mxu0 0.0
    %3534 = vmatmul.mubr.f32.gmra.mrb[0].mxu0 %v2916
    %v3535 = vpop.f32.mrb[0].mxu0
    %v3536 = vadd.f32 %v2658, %v3535
    %v3537 = vpop.f32.mrb[0].mxu0
    %3538 = vmatprep.mubr.f32.mxu0 0.0
    %3539 = vmatmul.mubr.f32.gmra.mrb[0].mxu0 %v2919
    %v3540 = vpop.f32.mrb[0].mxu0
    %v3541 = vadd.f32 %v2658, %v3540
    %v3542 = vpop.f32.mrb[0].mxu0
    %3543 = vmatprep.mubr.f32.mxu0 0.0
    %3544 = vmatmul.mubr.f32.gmra.mrb[0].mxu0 %v2922
    %v3545 = vpop.f32.mrb[0].mxu0
    %v3546 = vadd.f32 %v2658, %v3545
    %v3547 = vpop.f32.mrb[0].mxu0
    %3548 = vmatprep.mubr.f32.mxu0 0.0
    %3549 = vmatmul.mubr.f32.gmra.mrb[0].mxu0 %v2925
    %v3550 = vpop.f32.mrb[0].mxu0
    %v3551 = vadd.f32 %v2658, %v3550
    %v3552 = vpop.f32.mrb[0].mxu0
    %3553 = vmatprep.mubr.f32.mxu0 0.0
    %3554 = vmatmul.mubr.f32.gmra.mrb[0].mxu0 %v2928
    %v3555 = vpop.f32.mrb[0].mxu0
    %v3556 = vadd.f32 %v2658, %v3555
    %v3557 = vpop.f32.mrb[0].mxu0
    %3558 = vmatprep.mubr.f32.mxu0 0.0
    %3559 = vmatmul.mubr.f32.gmra.mrb[0].mxu0 %v2931
    %v3560 = vpop.f32.mrb[0].mxu0
    %v3561 = vadd.f32 %v2658, %v3560
    %v3562 = vpop.f32.mrb[0].mxu0
    %3563 = vmatprep.mubr.f32.mxu0 0.0
    %3564 = vmatmul.mubr.f32.gmra.mrb[0].mxu0 %v2934
    %v3565 = vpop.f32.mrb[0].mxu0
    %v3566 = vadd.f32 %v2658, %v3565
    %v3567 = vpop.f32.mrb[0].mxu0
    %3568 = vmatprep.mubr.f32.mxu0 0.0
    %3569 = vmatmul.mubr.f32.gmra.mrb[0].mxu0 %v2937
    %v3570 = vpop.f32.mrb[0].mxu0
    %v3571 = vadd.f32 %v2658, %v3570
    %v3572 = vpop.f32.mrb[0].mxu0
    %3573 = vmatprep.mubr.f32.mxu0 0.0
    %3574 = vmatmul.mubr.f32.gmra.mrb[0].mxu0 %v2940
    %v3575 = vpop.f32.mrb[0].mxu0
    %v3576 = vadd.f32 %v2658, %v3575
    %v3577 = vpop.f32.mrb[0].mxu0
    %3578 = vmatprep.mubr.f32.mxu0 0.0
    %3579 = vmatmul.mubr.f32.gmra.mrb[0].mxu0 %v2943
    %v3580 = vpop.f32.mrb[0].mxu0
    %v3581 = vadd.f32 %v2658, %v3580
    %v3582 = vpop.f32.mrb[0].mxu0
    %3583 = vmatprep.mubr.f32.mxu0 0.0
    %3584 = vmatmul.mubr.f32.gmra.mrb[0].mxu0 %v2946
    %v3585 = vpop.f32.mrb[0].mxu0
    %v3586 = vadd.f32 %v2658, %v3585
    %v3587 = vpop.f32.mrb[0].mxu0
    %3588 = vmatprep.mubr.f32.mxu0 0.0
    %3589 = vmatmul.mubr.f32.gmra.mrb[0].mxu0 %v2949
    %v3590 = vpop.f32.mrb[0].mxu0
    %v3591 = vadd.f32 %v2658, %v3590
    %v3592 = vpop.f32.mrb[0].mxu0
    %3593 = vmatprep.mubr.f32.mxu0 0.0
    %3594 = vmatmul.mubr.f32.gmra.mrb[0].mxu0 %v2952
    %v3595 = vpop.f32.mrb[0].mxu0
    %v3596 = vadd.f32 %v2658, %v3595
    %v3597 = vpop.f32.mrb[0].mxu0
    %3598 = vmatprep.mubr.f32.mxu0 0.0
    %3599 = vmatmul.mubr.f32.gmra.mrb[0].mxu0 %v2955
    %v3600 = vpop.f32.mrb[0].mxu0
    %v3601 = vadd.f32 %v2658, %v3600
    %v3602 = vpop.f32.mrb[0].mxu0
    %3603 = vmatprep.mubr.f32.mxu0 0.0
    %3604 = vmatmul.mubr.f32.gmra.mrb[0].mxu0 %v2958
    %v3605 = vpop.f32.mrb[0].mxu0
    %v3606 = vadd.f32 %v2658, %v3605
    %v3607 = vpop.f32.mrb[0].mxu0
    %3608 = vmatprep.mubr.f32.mxu0 0.0
    %3609 = vmatmul.mubr.f32.gmra.mrb[0].mxu0 %v2961
    %v3610 = vpop.f32.mrb[0].mxu0
    %v3611 = vadd.f32 %v2658, %v3610
    %v3612 = vpop.f32.mrb[0].mxu0
    %3613 = vmatprep.mubr.f32.mxu0 0.0
    %3614 = vmatmul.mubr.f32.gmra.mrb[0].mxu0 %v2964
    %v3615 = vpop.f32.mrb[0].mxu0
    %v3616 = vadd.f32 %v2658, %v3615
    %v3617 = vpop.f32.mrb[0].mxu0
    %3618 = vmatprep.mubr.f32.mxu0 0.0
    %3619 = vmatmul.mubr.f32.gmra.mrb[0].mxu0 %v2967
    %v3620 = vpop.f32.mrb[0].mxu0
    %v3621 = vadd.f32 %v2658, %v3620
    %v3622 = vpop.f32.mrb[0].mxu0
    %3623 = vmatprep.mubr.f32.mxu0 0.0
    %3624 = vmatmul.mubr.f32.gmra.mrb[0].mxu0 %v2970
    %v3625 = vpop.f32.mrb[0].mxu0
    %v3626 = vadd.f32 %v2658, %v3625
    %v3627 = vpop.f32.mrb[0].mxu0
    %3628 = vmatprep.mubr.f32.mxu0 0.0
    %3629 = vmatmul.mubr.f32.gmra.mrb[0].mxu0 %v2973
    %v3630 = vpop.f32.mrb[0].mxu0
    %v3631 = vadd.f32 %v2658, %v3630
    %v3632 = vpop.f32.mrb[0].mxu0
    %3633 = vmatprep.mubr.f32.mxu0 0.0
    %3634 = vmatmul.mubr.f32.gmra.mrb[0].mxu0 %v2976
    %v3635 = vpop.f32.mrb[0].mxu0
    %v3636 = vadd.f32 %v2658, %v3635
    %v3637 = vpop.f32.mrb[0].mxu0
    %3638 = vmatprep.mubr.f32.mxu0 0.0
    %3639 = vmatmul.mubr.f32.gmra.mrb[0].mxu0 %v2979
    %v3640 = vpop.f32.mrb[0].mxu0
    %v3641 = vadd.f32 %v2658, %v3640
    %v3642 = vpop.f32.mrb[0].mxu0
    %3643 = vmatprep.mubr.f32.mxu0 0.0
    %3644 = vmatmul.mubr.f32.gmra.mrb[0].mxu0 %v2982
    %v3645 = vpop.f32.mrb[0].mxu0
    %v3646 = vadd.f32 %v2658, %v3645
    %v3647 = vpop.f32.mrb[0].mxu0
    %3648 = vmatprep.mubr.f32.mxu0 0.0
    %3649 = vmatmul.mubr.f32.gmra.mrb[0].mxu0 %v2985
    %v3650 = vpop.f32.mrb[0].mxu0
    %v3651 = vadd.f32 %v2658, %v3650
    %v3652 = vpop.f32.mrb[0].mxu0
    %3653 = vmatprep.mubr.f32.mxu0 0.0
    %3654 = vmatmul.mubr.f32.gmra.mrb[0].mxu0 %v2988
    %v3655 = vpop.f32.mrb[0].mxu0
    %v3656 = vadd.f32 %v2658, %v3655
    %v3657 = vpop.f32.mrb[0].mxu0
    %3658 = vmatprep.mubr.f32.mxu0 0.0
    %3659 = vmatmul.mubr.f32.gmra.mrb[0].mxu0 %v2991
    %v3660 = vpop.f32.mrb[0].mxu0
    %v3661 = vadd.f32 %v2658, %v3660
    %v3662 = vpop.f32.mrb[0].mxu0
    %3663 = vmatprep.mubr.f32.mxu0 0.0
    %3664 = vmatmul.mubr.f32.gmra.mrb[0].mxu0 %v2994
    %v3665 = vpop.f32.mrb[0].mxu0
    %v3666 = vadd.f32 %v2658, %v3665
    %v3667 = vpop.f32.mrb[0].mxu0
    %3668 = vmatprep.mubr.f32.mxu0 0.0
    %3669 = vmatmul.mubr.f32.gmra.mrb[0].mxu0 %v2997
    %v3670 = vpop.f32.mrb[0].mxu0
    %v3671 = vadd.f32 %v2658, %v3670
    %v3672 = vpop.f32.mrb[0].mxu0
    %3673 = vmatprep.mubr.f32.mxu0 0.0
    %3674 = vmatmul.mubr.f32.gmra.mrb[0].mxu0 %v3000
    %v3675 = vpop.f32.mrb[0].mxu0
    %v3676 = vadd.f32 %v2658, %v3675
    %v3677 = vpop.f32.mrb[0].mxu0
    %3678 = vmatprep.mubr.f32.mxu0 0.0
    %3679 = vmatmul.mubr.f32.gmra.mrb[0].mxu0 %v3003
    %v3680 = vpop.f32.mrb[0].mxu0
    %v3681 = vadd.f32 %v2658, %v3680
    %v3682 = vpop.f32.mrb[0].mxu0
    %3683 = vmatprep.mubr.f32.mxu0 0.0
    %3684 = vmatmul.mubr.f32.gmra.mrb[0].mxu0 %v3006
    %v3685 = vpop.f32.mrb[0].mxu0
    %v3686 = vadd.f32 %v2658, %v3685
    %v3687 = vpop.f32.mrb[0].mxu0
    %3688 = vmatprep.mubr.f32.mxu0 0.0
    %3689 = vmatmul.mubr.f32.gmra.mrb[0].mxu0 %v3009
    %v3690 = vpop.f32.mrb[0].mxu0
    %v3691 = vadd.f32 %v2658, %v3690
    %v3692 = vpop.f32.mrb[0].mxu0
    %3693 = vmatprep.mubr.f32.mxu0 0.0
    %3694 = vmatmul.mubr.f32.gmra.mrb[0].mxu0 %v3012
    %v3695 = vpop.f32.mrb[0].mxu0
    %v3696 = vadd.f32 %v2658, %v3695
    %v3697 = vpop.f32.mrb[0].mxu0
    %3698 = vmatprep.mubr.f32.mxu0 0.0
    %3699 = vmatmul.mubr.f32.gmra.mrb[0].mxu0 %v3015
    %v3700 = vpop.f32.mrb[0].mxu0
    %v3701 = vadd.f32 %v2658, %v3700
    %v3702 = vpop.f32.mrb[0].mxu0
    %3703 = vmatprep.mubr.f32.mxu0 0.0
    %3704 = vmatmul.mubr.f32.gmra.mrb[0].mxu0 %v3018
    %v3705 = vpop.f32.mrb[0].mxu0
    %v3706 = vadd.f32 %v2658, %v3705
    %v3707 = vpop.f32.mrb[0].mxu0
    %3708 = vmatprep.mubr.f32.mxu0 0.0
    %3709 = vmatmul.mubr.f32.gmra.mrb[0].mxu0 %v3021
    %v3710 = vpop.f32.mrb[0].mxu0
    %v3711 = vadd.f32 %v2658, %v3710
    %v3712 = vpop.f32.mrb[0].mxu0
    %3713 = vmatprep.mubr.f32.mxu0 0.0
    %3714 = vmatmul.mubr.f32.gmra.mrb[0].mxu0 %v3024
    %v3715 = vpop.f32.mrb[0].mxu0
    %v3716 = vadd.f32 %v2658, %v3715
    %v3717 = vpop.f32.mrb[0].mxu0
    %3718 = vmatprep.mubr.f32.mxu0 0.0
    %3719 = vmatmul.mubr.f32.gmra.mrb[0].mxu0 %v3027
    %v3720 = vpop.f32.mrb[0].mxu0
    %v3721 = vadd.f32 %v2658, %v3720
    %v3722 = vpop.f32.mrb[0].mxu0
    %3723 = vmatprep.mubr.f32.mxu0 0.0
    %3724 = vmatmul.mubr.f32.gmra.mrb[0].mxu0 %v3030
    %v3725 = vpop.f32.mrb[0].mxu0
    %v3726 = vadd.f32 %v2658, %v3725
    %v3727 = vpop.f32.mrb[0].mxu0
    %3728 = vmatprep.mubr.f32.mxu0 0.0
    %3729 = vmatmul.mubr.f32.gmra.mrb[0].mxu0 %v3033
    %v3730 = vpop.f32.mrb[0].mxu0
    %v3731 = vadd.f32 %v2658, %v3730
    %v3732 = vpop.f32.mrb[0].mxu0
    %3733 = vmatprep.mubr.f32.mxu0 0.0
    %3734 = vmatmul.mubr.f32.gmra.mrb[0].mxu0 %v3036
    %v3735 = vpop.f32.mrb[0].mxu0
    %v3736 = vadd.f32 %v2658, %v3735
    %v3737 = vpop.f32.mrb[0].mxu0
    %3738 = vmatprep.mubr.f32.mxu0 0.0
    %3739 = vmatmul.mubr.f32.gmra.mrb[0].mxu0 %v3039
    %v3740 = vpop.f32.mrb[0].mxu0
    %v3741 = vadd.f32 %v2658, %v3740
    %v3742 = vpop.f32.mrb[0].mxu0
    %3743 = vmatprep.mubr.f32.mxu0 0.0
    %3744 = vmatmul.mubr.f32.gmra.mrb[0].mxu0 %v3042
    %v3745 = vpop.f32.mrb[0].mxu0
    %v3746 = vadd.f32 %v2658, %v3745
    %v3747 = vpop.f32.mrb[0].mxu0
    %3748 = vdwg.mxu0
    %v3749 = vmax.f32 %v3111, 0.0
    %v3750 = vmax.f32 %v3116, 0.0
    %v3751 = vmax.f32 %v3121, 0.0
    %v3752 = vmax.f32 %v3126, 0.0
    %v3753 = vmax.f32 %v3131, 0.0
    %v3754 = vmax.f32 %v3136, 0.0
    %v3755 = vmax.f32 %v3141, 0.0
    %v3756 = vmax.f32 %v3146, 0.0
    %v3757 = vmax.f32 %v3151, 0.0
    %v3758 = vmax.f32 %v3156, 0.0
    %v3759 = vmax.f32 %v3161, 0.0
    %v3760 = vmax.f32 %v3166, 0.0
    %v3761 = vmax.f32 %v3171, 0.0
    %v3762 = vmax.f32 %v3176, 0.0
    %v3763 = vmax.f32 %v3181, 0.0
    %v3764 = vmax.f32 %v3186, 0.0
    %v3765 = vmax.f32 %v3191, 0.0
    %v3766 = vmax.f32 %v3196, 0.0
    %v3767 = vmax.f32 %v3201, 0.0
    %v3768 = vmax.f32 %v3206, 0.0
    %v3769 = vmax.f32 %v3211, 0.0
    %v3770 = vmax.f32 %v3216, 0.0
    %v3771 = vmax.f32 %v3221, 0.0
    %v3772 = vmax.f32 %v3226, 0.0
    %v3773 = vmax.f32 %v3231, 0.0
    %v3774 = vmax.f32 %v3236, 0.0
    %v3775 = vmax.f32 %v3241, 0.0
    %v3776 = vmax.f32 %v3246, 0.0
    %v3777 = vmax.f32 %v3251, 0.0
    %v3778 = vmax.f32 %v3256, 0.0
    %v3779 = vmax.f32 %v3261, 0.0
    %v3780 = vmax.f32 %v3266, 0.0
    %v3781 = vmax.f32 %v3271, 0.0
    %v3782 = vmax.f32 %v3276, 0.0
    %v3783 = vmax.f32 %v3281, 0.0
    %v3784 = vmax.f32 %v3286, 0.0
    %v3785 = vmax.f32 %v3291, 0.0
    %v3786 = vmax.f32 %v3296, 0.0
    %v3787 = vmax.f32 %v3301, 0.0
    %v3788 = vmax.f32 %v3306, 0.0
    %v3789 = vmax.f32 %v3311, 0.0
    %v3790 = vmax.f32 %v3316, 0.0
    %v3791 = vmax.f32 %v3321, 0.0
    %v3792 = vmax.f32 %v3326, 0.0
    %v3793 = vmax.f32 %v3331, 0.0
    %v3794 = vmax.f32 %v3336, 0.0
    %v3795 = vmax.f32 %v3341, 0.0
    %v3796 = vmax.f32 %v3346, 0.0
    %v3797 = vmax.f32 %v3351, 0.0
    %v3798 = vmax.f32 %v3356, 0.0
    %v3799 = vmax.f32 %v3361, 0.0
    %v3800 = vmax.f32 %v3366, 0.0
    %v3801 = vmax.f32 %v3371, 0.0
    %v3802 = vmax.f32 %v3376, 0.0
    %v3803 = vmax.f32 %v3381, 0.0
    %v3804 = vmax.f32 %v3386, 0.0
    %v3805 = vmax.f32 %v3391, 0.0
    %v3806 = vmax.f32 %v3396, 0.0
    %v3807 = vmax.f32 %v3401, 0.0
    %v3808 = vmax.f32 %v3406, 0.0
    %v3809 = vmax.f32 %v3411, 0.0
    %v3810 = vmax.f32 %v3416, 0.0
    %v3811 = vmax.f32 %v3421, 0.0
    %v3812 = vmax.f32 %v3426, 0.0
    %v3813 = vmax.f32 %v3431, 0.0
    %v3814 = vmax.f32 %v3436, 0.0
    %v3815 = vmax.f32 %v3441, 0.0
    %v3816 = vmax.f32 %v3446, 0.0
    %v3817 = vmax.f32 %v3451, 0.0
    %v3818 = vmax.f32 %v3456, 0.0
    %v3819 = vmax.f32 %v3461, 0.0
    %v3820 = vmax.f32 %v3466, 0.0
    %v3821 = vmax.f32 %v3471, 0.0
    %v3822 = vmax.f32 %v3476, 0.0
    %v3823 = vmax.f32 %v3481, 0.0
    %v3824 = vmax.f32 %v3486, 0.0
    %v3825 = vmax.f32 %v3491, 0.0
    %v3826 = vmax.f32 %v3496, 0.0
    %v3827 = vmax.f32 %v3501, 0.0
    %v3828 = vmax.f32 %v3506, 0.0
    %v3829 = vmax.f32 %v3511, 0.0
    %v3830 = vmax.f32 %v3516, 0.0
    %v3831 = vmax.f32 %v3521, 0.0
    %v3832 = vmax.f32 %v3526, 0.0
    %v3833 = vmax.f32 %v3531, 0.0
    %v3834 = vmax.f32 %v3536, 0.0
    %v3835 = vmax.f32 %v3541, 0.0
    %v3836 = vmax.f32 %v3546, 0.0
    %v3837 = vmax.f32 %v3551, 0.0
    %v3838 = vmax.f32 %v3556, 0.0
    %v3839 = vmax.f32 %v3561, 0.0
    %v3840 = vmax.f32 %v3566, 0.0
    %v3841 = vmax.f32 %v3571, 0.0
    %v3842 = vmax.f32 %v3576, 0.0
    %v3843 = vmax.f32 %v3581, 0.0
    %v3844 = vmax.f32 %v3586, 0.0
    %v3845 = vmax.f32 %v3591, 0.0
    %v3846 = vmax.f32 %v3596, 0.0
    %v3847 = vmax.f32 %v3601, 0.0
    %v3848 = vmax.f32 %v3606, 0.0
    %v3849 = vmax.f32 %v3611, 0.0
    %v3850 = vmax.f32 %v3616, 0.0
    %v3851 = vmax.f32 %v3621, 0.0
    %v3852 = vmax.f32 %v3626, 0.0
    %v3853 = vmax.f32 %v3631, 0.0
    %v3854 = vmax.f32 %v3636, 0.0
    %v3855 = vmax.f32 %v3641, 0.0
    %v3856 = vmax.f32 %v3646, 0.0
    %v3857 = vmax.f32 %v3651, 0.0
    %v3858 = vmax.f32 %v3656, 0.0
    %v3859 = vmax.f32 %v3661, 0.0
    %v3860 = vmax.f32 %v3666, 0.0
    %v3861 = vmax.f32 %v3671, 0.0
    %v3862 = vmax.f32 %v3676, 0.0
    %v3863 = vmax.f32 %v3681, 0.0
    %v3864 = vmax.f32 %v3686, 0.0
    %v3865 = vmax.f32 %v3691, 0.0
    %v3866 = vmax.f32 %v3696, 0.0
    %v3867 = vmax.f32 %v3701, 0.0
    %v3868 = vmax.f32 %v3706, 0.0
    %v3869 = vmax.f32 %v3711, 0.0
    %v3870 = vmax.f32 %v3716, 0.0
    %v3871 = vmax.f32 %v3721, 0.0
    %v3872 = vmax.f32 %v3726, 0.0
    %v3873 = vmax.f32 %v3731, 0.0
    %v3874 = vmax.f32 %v3736, 0.0
    %v3875 = vmax.f32 %v3741, 0.0
    %v3876 = vmax.f32 %v3746, 0.0
    %v3877 = vld [vmem:[%s9] sm:$0xff]
    %v3878 = vld [vmem:[%s9 + $0x8] sm:$0xff]
    %v3879 = vld [vmem:[%s9 + $0x10] sm:$0xff]
    %v3880 = vld [vmem:[%s9 + $0x18] sm:$0xff]
    %v3881 = vld [vmem:[%s10] sm:$0x1]
    %v3883 = vlaneseq
    %v3884 = vshrl.u32 %v3883, 7
    %v3885 = vsub.s32 0, %v3884
    %v3886 = vrot.slane %v3881, %v3885
    %v3889 = vsel %vm1431, %v3749, 0
    %v3892 = vsel %vm1431, %v3750, 0
    %v3895 = vsel %vm1431, %v3751, 0
    %v3898 = vsel %vm1431, %v3752, 0
    %v3901 = vsel %vm1431, %v3753, 0
    %v3904 = vsel %vm1431, %v3754, 0
    %v3907 = vsel %vm1431, %v3755, 0
    %v3910 = vsel %vm1431, %v3756, 0
    %v3913 = vsel %vm1431, %v3757, 0
    %v3916 = vsel %vm1431, %v3758, 0
    %v3919 = vsel %vm1431, %v3759, 0
    %v3922 = vsel %vm1431, %v3760, 0
    %v3925 = vsel %vm1431, %v3761, 0
    %v3928 = vsel %vm1431, %v3762, 0
    %v3931 = vsel %vm1431, %v3763, 0
    %v3934 = vsel %vm1431, %v3764, 0
    %v3937 = vsel %vm1431, %v3765, 0
    %v3940 = vsel %vm1431, %v3766, 0
    %v3943 = vsel %vm1431, %v3767, 0
    %v3946 = vsel %vm1431, %v3768, 0
    %v3949 = vsel %vm1431, %v3769, 0
    %v3952 = vsel %vm1431, %v3770, 0
    %v3955 = vsel %vm1431, %v3771, 0
    %v3958 = vsel %vm1431, %v3772, 0
    %v3961 = vsel %vm1431, %v3773, 0
    %v3964 = vsel %vm1431, %v3774, 0
    %v3967 = vsel %vm1431, %v3775, 0
    %v3970 = vsel %vm1431, %v3776, 0
    %v3973 = vsel %vm1431, %v3777, 0
    %v3976 = vsel %vm1431, %v3778, 0
    %v3979 = vsel %vm1431, %v3779, 0
    %v3982 = vsel %vm1431, %v3780, 0
    %v3985 = vsel %vm1431, %v3781, 0
    %v3988 = vsel %vm1431, %v3782, 0
    %v3991 = vsel %vm1431, %v3783, 0
    %v3994 = vsel %vm1431, %v3784, 0
    %v3997 = vsel %vm1431, %v3785, 0
    %v4000 = vsel %vm1431, %v3786, 0
    %v4003 = vsel %vm1431, %v3787, 0
    %v4006 = vsel %vm1431, %v3788, 0
    %v4009 = vsel %vm1431, %v3789, 0
    %v4012 = vsel %vm1431, %v3790, 0
    %v4015 = vsel %vm1431, %v3791, 0
    %v4018 = vsel %vm1431, %v3792, 0
    %v4021 = vsel %vm1431, %v3793, 0
    %v4024 = vsel %vm1431, %v3794, 0
    %v4027 = vsel %vm1431, %v3795, 0
    %v4030 = vsel %vm1431, %v3796, 0
    %v4033 = vsel %vm1431, %v3797, 0
    %v4036 = vsel %vm1431, %v3798, 0
    %v4039 = vsel %vm1431, %v3799, 0
    %v4042 = vsel %vm1431, %v3800, 0
    %v4045 = vsel %vm1431, %v3801, 0
    %v4048 = vsel %vm1431, %v3802, 0
    %v4051 = vsel %vm1431, %v3803, 0
    %v4054 = vsel %vm1431, %v3804, 0
    %v4057 = vsel %vm1431, %v3805, 0
    %v4060 = vsel %vm1431, %v3806, 0
    %v4063 = vsel %vm1431, %v3807, 0
    %v4066 = vsel %vm1431, %v3808, 0
    %v4069 = vsel %vm1431, %v3809, 0
    %v4072 = vsel %vm1431, %v3810, 0
    %v4075 = vsel %vm1431, %v3811, 0
    %v4078 = vsel %vm1431, %v3812, 0
    %v4081 = vsel %vm1431, %v3813, 0
    %v4084 = vsel %vm1431, %v3814, 0
    %v4087 = vsel %vm1431, %v3815, 0
    %v4090 = vsel %vm1431, %v3816, 0
    %v4093 = vsel %vm1431, %v3817, 0
    %v4096 = vsel %vm1431, %v3818, 0
    %v4099 = vsel %vm1431, %v3819, 0
    %v4102 = vsel %vm1431, %v3820, 0
    %v4105 = vsel %vm1431, %v3821, 0
    %v4108 = vsel %vm1431, %v3822, 0
    %v4111 = vsel %vm1431, %v3823, 0
    %v4114 = vsel %vm1431, %v3824, 0
    %v4117 = vsel %vm1431, %v3825, 0
    %v4120 = vsel %vm1431, %v3826, 0
    %v4123 = vsel %vm1431, %v3827, 0
    %v4126 = vsel %vm1431, %v3828, 0
    %v4129 = vsel %vm1431, %v3829, 0
    %v4132 = vsel %vm1431, %v3830, 0
    %v4135 = vsel %vm1431, %v3831, 0
    %v4138 = vsel %vm1431, %v3832, 0
    %v4141 = vsel %vm1431, %v3833, 0
    %v4144 = vsel %vm1431, %v3834, 0
    %v4147 = vsel %vm1431, %v3835, 0
    %v4150 = vsel %vm1431, %v3836, 0
    %v4153 = vsel %vm1431, %v3837, 0
    %v4156 = vsel %vm1431, %v3838, 0
    %v4159 = vsel %vm1431, %v3839, 0
    %v4162 = vsel %vm1431, %v3840, 0
    %v4165 = vsel %vm1431, %v3841, 0
    %v4168 = vsel %vm1431, %v3842, 0
    %v4171 = vsel %vm1431, %v3843, 0
    %v4174 = vsel %vm1431, %v3844, 0
    %v4177 = vsel %vm1431, %v3845, 0
    %v4180 = vsel %vm1431, %v3846, 0
    %v4183 = vsel %vm1431, %v3847, 0
    %v4186 = vsel %vm1431, %v3848, 0
    %v4189 = vsel %vm1431, %v3849, 0
    %v4192 = vsel %vm1431, %v3850, 0
    %v4195 = vsel %vm1431, %v3851, 0
    %v4198 = vsel %vm1431, %v3852, 0
    %v4201 = vsel %vm1431, %v3853, 0
    %v4204 = vsel %vm1431, %v3854, 0
    %v4207 = vsel %vm1431, %v3855, 0
    %v4210 = vsel %vm1431, %v3856, 0
    %v4213 = vsel %vm1431, %v3857, 0
    %v4216 = vsel %vm1431, %v3858, 0
    %v4219 = vsel %vm1431, %v3859, 0
    %v4222 = vsel %vm1431, %v3860, 0
    %v4225 = vsel %vm1431, %v3861, 0
    %v4228 = vsel %vm1431, %v3862, 0
    %v4231 = vsel %vm1431, %v3863, 0
    %v4234 = vsel %vm1431, %v3864, 0
    %v4237 = vsel %vm1431, %v3865, 0
    %v4240 = vsel %vm1431, %v3866, 0
    %v4243 = vsel %vm1431, %v3867, 0
    %v4246 = vsel %vm1431, %v3868, 0
    %v4249 = vsel %vm1431, %v3869, 0
    %v4252 = vsel %vm1431, %v3870, 0
    %v4255 = vsel %vm1431, %v3871, 0
    %v4258 = vsel %vm1431, %v3872, 0
    %v4261 = vsel %vm1431, %v3873, 0
    %v4264 = vsel %vm1431, %v3874, 0
    %v4267 = vsel %vm1431, %v3875, 0
    %v4270 = vsel %vm1431, %v3876, 0
    %4272 = vmatprep.subr.mxu0 0.0
    %4273 = vmatpush1.msra.mxu0 %v3877
    %4274 = vmatprep.subr.mxu0 0.0
    %4275 = vmatpush1.msra.mxu0 %v3878
    %4276 = vmatprep.subr.mxu0 0.0
    %4277 = vmatpush1.msra.mxu0 %v3879
    %4278 = vmatprep.subr.mxu0 0.0
    %4279 = vmatpush1.msra.mxu0 %v3880
    %4280 = vmatprep.subr.mxu0 0.0
    %4281 = vmatpush1.msra.mxu0 0.0
    %4282 = vmatprep.subr.mxu0 0.0
    %4283 = vmatpush1.msra.mxu0 0.0
    %4284 = vmatprep.subr.mxu0 0.0
    %4285 = vmatpush1.msra.mxu0 0.0
    %4286 = vmatprep.subr.mxu0 0.0
    %4287 = vmatpush1.msra.mxu0 0.0
    %4288 = vmatprep.subr.mxu0 0.0
    %4289 = vmatpush1.msra.mxu0 0.0
    %4290 = vmatprep.subr.mxu0 0.0
    %4291 = vmatpush1.msra.mxu0 0.0
    %4292 = vmatprep.subr.mxu0 0.0
    %4293 = vmatpush1.msra.mxu0 0.0
    %4294 = vmatprep.subr.mxu0 0.0
    %4295 = vmatpush1.msra.mxu0 0.0
    %4296 = vmatprep.subr.mxu0 0.0
    %4297 = vmatpush1.msra.mxu0 0.0
    %4298 = vmatprep.subr.mxu0 0.0
    %4299 = vmatpush1.msra.mxu0 0.0
    %4300 = vmatprep.subr.mxu0 0.0
    %4301 = vmatpush1.msra.mxu0 0.0
    %4302 = vmatprep.subr.mxu0 0.0
    %4303 = vmatpush1.msra.mxu0 0.0
    %4304 = vmatprep.subr.mxu0 0.0
    %4305 = vmatpush1.msra.mxu0 0.0
    %4306 = vmatprep.subr.mxu0 0.0
    %4307 = vmatpush1.msra.mxu0 0.0
    %4308 = vmatprep.subr.mxu0 0.0
    %4309 = vmatpush1.msra.mxu0 0.0
    %4310 = vmatprep.subr.mxu0 0.0
    %4311 = vmatpush1.msra.mxu0 0.0
    %4312 = vmatprep.subr.mxu0 0.0
    %4313 = vmatpush1.msra.mxu0 0.0
    %4314 = vmatprep.subr.mxu0 0.0
    %4315 = vmatpush1.msra.mxu0 0.0
    %4316 = vmatprep.subr.mxu0 0.0
    %4317 = vmatpush1.msra.mxu0 0.0
    %4318 = vmatprep.subr.mxu0 0.0
    %4319 = vmatpush1.msra.mxu0 0.0
    %4320 = vmatprep.subr.mxu0 0.0
    %4321 = vmatpush1.msra.mxu0 0.0
    %4322 = vmatprep.subr.mxu0 0.0
    %4323 = vmatpush1.msra.mxu0 0.0
    %4324 = vmatprep.subr.mxu0 0.0
    %4325 = vmatpush1.msra.mxu0 0.0
    %4326 = vmatprep.subr.mxu0 0.0
    %4327 = vmatpush1.msra.mxu0 0.0
    %4328 = vmatprep.subr.mxu0 0.0
    %4329 = vmatpush1.msra.mxu0 0.0
    %4330 = vmatprep.subr.mxu0 0.0
    %4331 = vmatpush1.msra.mxu0 0.0
    %4332 = vmatprep.subr.mxu0 0.0
    %4333 = vmatpush1.msra.mxu0 0.0
    %4334 = vmatprep.subr.mxu0 0.0
    %4335 = vmatpush1.msra.mxu0 0.0
    %4336 = vmatprep.mubr.f32.mxu0 0.0
    %4337 = vmatmul.mubr.f32.gmra.mrb[0].mxu0 %v3889
    %v4338 = vpop.f32.mrb[0].mxu0
    %v4339 = vadd.f32 %v3886, %v4338
    %v4340 = vpop.f32.mrb[0].mxu0
    %4341 = vmatprep.mubr.f32.mxu0 0.0
    %4342 = vmatmul.mubr.f32.gmra.mrb[0].mxu0 %v3892
    %v4343 = vpop.f32.mrb[0].mxu0
    %v4344 = vadd.f32 %v3886, %v4343
    %v4345 = vpop.f32.mrb[0].mxu0
    %4346 = vmatprep.mubr.f32.mxu0 0.0
    %4347 = vmatmul.mubr.f32.gmra.mrb[0].mxu0 %v3895
    %v4348 = vpop.f32.mrb[0].mxu0
    %v4349 = vadd.f32 %v3886, %v4348
    %v4350 = vpop.f32.mrb[0].mxu0
    %4351 = vmatprep.mubr.f32.mxu0 0.0
    %4352 = vmatmul.mubr.f32.gmra.mrb[0].mxu0 %v3898
    %v4353 = vpop.f32.mrb[0].mxu0
    %v4354 = vadd.f32 %v3886, %v4353
    %v4355 = vpop.f32.mrb[0].mxu0
    %4356 = vmatprep.mubr.f32.mxu0 0.0
    %4357 = vmatmul.mubr.f32.gmra.mrb[0].mxu0 %v3901
    %v4358 = vpop.f32.mrb[0].mxu0
    %v4359 = vadd.f32 %v3886, %v4358
    %v4360 = vpop.f32.mrb[0].mxu0
    %4361 = vmatprep.mubr.f32.mxu0 0.0
    %4362 = vmatmul.mubr.f32.gmra.mrb[0].mxu0 %v3904
    %v4363 = vpop.f32.mrb[0].mxu0
    %v4364 = vadd.f32 %v3886, %v4363
    %v4365 = vpop.f32.mrb[0].mxu0
    %4366 = vmatprep.mubr.f32.mxu0 0.0
    %4367 = vmatmul.mubr.f32.gmra.mrb[0].mxu0 %v3907
    %v4368 = vpop.f32.mrb[0].mxu0
    %v4369 = vadd.f32 %v3886, %v4368
    %v4370 = vpop.f32.mrb[0].mxu0
    %4371 = vmatprep.mubr.f32.mxu0 0.0
    %4372 = vmatmul.mubr.f32.gmra.mrb[0].mxu0 %v3910
    %v4373 = vpop.f32.mrb[0].mxu0
    %v4374 = vadd.f32 %v3886, %v4373
    %v4375 = vpop.f32.mrb[0].mxu0
    %4376 = vmatprep.mubr.f32.mxu0 0.0
    %4377 = vmatmul.mubr.f32.gmra.mrb[0].mxu0 %v3913
    %v4378 = vpop.f32.mrb[0].mxu0
    %v4379 = vadd.f32 %v3886, %v4378
    %v4380 = vpop.f32.mrb[0].mxu0
    %4381 = vmatprep.mubr.f32.mxu0 0.0
    %4382 = vmatmul.mubr.f32.gmra.mrb[0].mxu0 %v3916
    %v4383 = vpop.f32.mrb[0].mxu0
    %v4384 = vadd.f32 %v3886, %v4383
    %v4385 = vpop.f32.mrb[0].mxu0
    %4386 = vmatprep.mubr.f32.mxu0 0.0
    %4387 = vmatmul.mubr.f32.gmra.mrb[0].mxu0 %v3919
    %v4388 = vpop.f32.mrb[0].mxu0
    %v4389 = vadd.f32 %v3886, %v4388
    %v4390 = vpop.f32.mrb[0].mxu0
    %4391 = vmatprep.mubr.f32.mxu0 0.0
    %4392 = vmatmul.mubr.f32.gmra.mrb[0].mxu0 %v3922
    %v4393 = vpop.f32.mrb[0].mxu0
    %v4394 = vadd.f32 %v3886, %v4393
    %v4395 = vpop.f32.mrb[0].mxu0
    %4396 = vmatprep.mubr.f32.mxu0 0.0
    %4397 = vmatmul.mubr.f32.gmra.mrb[0].mxu0 %v3925
    %v4398 = vpop.f32.mrb[0].mxu0
    %v4399 = vadd.f32 %v3886, %v4398
    %v4400 = vpop.f32.mrb[0].mxu0
    %4401 = vmatprep.mubr.f32.mxu0 0.0
    %4402 = vmatmul.mubr.f32.gmra.mrb[0].mxu0 %v3928
    %v4403 = vpop.f32.mrb[0].mxu0
    %v4404 = vadd.f32 %v3886, %v4403
    %v4405 = vpop.f32.mrb[0].mxu0
    %4406 = vmatprep.mubr.f32.mxu0 0.0
    %4407 = vmatmul.mubr.f32.gmra.mrb[0].mxu0 %v3931
    %v4408 = vpop.f32.mrb[0].mxu0
    %v4409 = vadd.f32 %v3886, %v4408
    %v4410 = vpop.f32.mrb[0].mxu0
    %4411 = vmatprep.mubr.f32.mxu0 0.0
    %4412 = vmatmul.mubr.f32.gmra.mrb[0].mxu0 %v3934
    %v4413 = vpop.f32.mrb[0].mxu0
    %v4414 = vadd.f32 %v3886, %v4413
    %v4415 = vpop.f32.mrb[0].mxu0
    %4416 = vmatprep.mubr.f32.mxu0 0.0
    %4417 = vmatmul.mubr.f32.gmra.mrb[0].mxu0 %v3937
    %v4418 = vpop.f32.mrb[0].mxu0
    %v4419 = vadd.f32 %v3886, %v4418
    %v4420 = vpop.f32.mrb[0].mxu0
    %4421 = vmatprep.mubr.f32.mxu0 0.0
    %4422 = vmatmul.mubr.f32.gmra.mrb[0].mxu0 %v3940
    %v4423 = vpop.f32.mrb[0].mxu0
    %v4424 = vadd.f32 %v3886, %v4423
    %v4425 = vpop.f32.mrb[0].mxu0
    %4426 = vmatprep.mubr.f32.mxu0 0.0
    %4427 = vmatmul.mubr.f32.gmra.mrb[0].mxu0 %v3943
    %v4428 = vpop.f32.mrb[0].mxu0
    %v4429 = vadd.f32 %v3886, %v4428
    %v4430 = vpop.f32.mrb[0].mxu0
    %4431 = vmatprep.mubr.f32.mxu0 0.0
    %4432 = vmatmul.mubr.f32.gmra.mrb[0].mxu0 %v3946
    %v4433 = vpop.f32.mrb[0].mxu0
    %v4434 = vadd.f32 %v3886, %v4433
    %v4435 = vpop.f32.mrb[0].mxu0
    %4436 = vmatprep.mubr.f32.mxu0 0.0
    %4437 = vmatmul.mubr.f32.gmra.mrb[0].mxu0 %v3949
    %v4438 = vpop.f32.mrb[0].mxu0
    %v4439 = vadd.f32 %v3886, %v4438
    %v4440 = vpop.f32.mrb[0].mxu0
    %4441 = vmatprep.mubr.f32.mxu0 0.0
    %4442 = vmatmul.mubr.f32.gmra.mrb[0].mxu0 %v3952
    %v4443 = vpop.f32.mrb[0].mxu0
    %v4444 = vadd.f32 %v3886, %v4443
    %v4445 = vpop.f32.mrb[0].mxu0
    %4446 = vmatprep.mubr.f32.mxu0 0.0
    %4447 = vmatmul.mubr.f32.gmra.mrb[0].mxu0 %v3955
    %v4448 = vpop.f32.mrb[0].mxu0
    %v4449 = vadd.f32 %v3886, %v4448
    %v4450 = vpop.f32.mrb[0].mxu0
    %4451 = vmatprep.mubr.f32.mxu0 0.0
    %4452 = vmatmul.mubr.f32.gmra.mrb[0].mxu0 %v3958
    %v4453 = vpop.f32.mrb[0].mxu0
    %v4454 = vadd.f32 %v3886, %v4453
    %v4455 = vpop.f32.mrb[0].mxu0
    %4456 = vmatprep.mubr.f32.mxu0 0.0
    %4457 = vmatmul.mubr.f32.gmra.mrb[0].mxu0 %v3961
    %v4458 = vpop.f32.mrb[0].mxu0
    %v4459 = vadd.f32 %v3886, %v4458
    %v4460 = vpop.f32.mrb[0].mxu0
    %4461 = vmatprep.mubr.f32.mxu0 0.0
    %4462 = vmatmul.mubr.f32.gmra.mrb[0].mxu0 %v3964
    %v4463 = vpop.f32.mrb[0].mxu0
    %v4464 = vadd.f32 %v3886, %v4463
    %v4465 = vpop.f32.mrb[0].mxu0
    %4466 = vmatprep.mubr.f32.mxu0 0.0
    %4467 = vmatmul.mubr.f32.gmra.mrb[0].mxu0 %v3967
    %v4468 = vpop.f32.mrb[0].mxu0
    %v4469 = vadd.f32 %v3886, %v4468
    %v4470 = vpop.f32.mrb[0].mxu0
    %4471 = vmatprep.mubr.f32.mxu0 0.0
    %4472 = vmatmul.mubr.f32.gmra.mrb[0].mxu0 %v3970
    %v4473 = vpop.f32.mrb[0].mxu0
    %v4474 = vadd.f32 %v3886, %v4473
    %v4475 = vpop.f32.mrb[0].mxu0
    %4476 = vmatprep.mubr.f32.mxu0 0.0
    %4477 = vmatmul.mubr.f32.gmra.mrb[0].mxu0 %v3973
    %v4478 = vpop.f32.mrb[0].mxu0
    %v4479 = vadd.f32 %v3886, %v4478
    %v4480 = vpop.f32.mrb[0].mxu0
    %4481 = vmatprep.mubr.f32.mxu0 0.0
    %4482 = vmatmul.mubr.f32.gmra.mrb[0].mxu0 %v3976
    %v4483 = vpop.f32.mrb[0].mxu0
    %v4484 = vadd.f32 %v3886, %v4483
    %v4485 = vpop.f32.mrb[0].mxu0
    %4486 = vmatprep.mubr.f32.mxu0 0.0
    %4487 = vmatmul.mubr.f32.gmra.mrb[0].mxu0 %v3979
    %v4488 = vpop.f32.mrb[0].mxu0
    %v4489 = vadd.f32 %v3886, %v4488
    %v4490 = vpop.f32.mrb[0].mxu0
    %4491 = vmatprep.mubr.f32.mxu0 0.0
    %4492 = vmatmul.mubr.f32.gmra.mrb[0].mxu0 %v3982
    %v4493 = vpop.f32.mrb[0].mxu0
    %v4494 = vadd.f32 %v3886, %v4493
    %v4495 = vpop.f32.mrb[0].mxu0
    %4496 = vmatprep.mubr.f32.mxu0 0.0
    %4497 = vmatmul.mubr.f32.gmra.mrb[0].mxu0 %v3985
    %v4498 = vpop.f32.mrb[0].mxu0
    %v4499 = vadd.f32 %v3886, %v4498
    %v4500 = vpop.f32.mrb[0].mxu0
    %4501 = vmatprep.mubr.f32.mxu0 0.0
    %4502 = vmatmul.mubr.f32.gmra.mrb[0].mxu0 %v3988
    %v4503 = vpop.f32.mrb[0].mxu0
    %v4504 = vadd.f32 %v3886, %v4503
    %v4505 = vpop.f32.mrb[0].mxu0
    %4506 = vmatprep.mubr.f32.mxu0 0.0
    %4507 = vmatmul.mubr.f32.gmra.mrb[0].mxu0 %v3991
    %v4508 = vpop.f32.mrb[0].mxu0
    %v4509 = vadd.f32 %v3886, %v4508
    %v4510 = vpop.f32.mrb[0].mxu0
    %4511 = vmatprep.mubr.f32.mxu0 0.0
    %4512 = vmatmul.mubr.f32.gmra.mrb[0].mxu0 %v3994
    %v4513 = vpop.f32.mrb[0].mxu0
    %v4514 = vadd.f32 %v3886, %v4513
    %v4515 = vpop.f32.mrb[0].mxu0
    %4516 = vmatprep.mubr.f32.mxu0 0.0
    %4517 = vmatmul.mubr.f32.gmra.mrb[0].mxu0 %v3997
    %v4518 = vpop.f32.mrb[0].mxu0
    %v4519 = vadd.f32 %v3886, %v4518
    %v4520 = vpop.f32.mrb[0].mxu0
    %4521 = vmatprep.mubr.f32.mxu0 0.0
    %4522 = vmatmul.mubr.f32.gmra.mrb[0].mxu0 %v4000
    %v4523 = vpop.f32.mrb[0].mxu0
    %v4524 = vadd.f32 %v3886, %v4523
    %v4525 = vpop.f32.mrb[0].mxu0
    %4526 = vmatprep.mubr.f32.mxu0 0.0
    %4527 = vmatmul.mubr.f32.gmra.mrb[0].mxu0 %v4003
    %v4528 = vpop.f32.mrb[0].mxu0
    %v4529 = vadd.f32 %v3886, %v4528
    %v4530 = vpop.f32.mrb[0].mxu0
    %4531 = vmatprep.mubr.f32.mxu0 0.0
    %4532 = vmatmul.mubr.f32.gmra.mrb[0].mxu0 %v4006
    %v4533 = vpop.f32.mrb[0].mxu0
    %v4534 = vadd.f32 %v3886, %v4533
    %v4535 = vpop.f32.mrb[0].mxu0
    %4536 = vmatprep.mubr.f32.mxu0 0.0
    %4537 = vmatmul.mubr.f32.gmra.mrb[0].mxu0 %v4009
    %v4538 = vpop.f32.mrb[0].mxu0
    %v4539 = vadd.f32 %v3886, %v4538
    %v4540 = vpop.f32.mrb[0].mxu0
    %4541 = vmatprep.mubr.f32.mxu0 0.0
    %4542 = vmatmul.mubr.f32.gmra.mrb[0].mxu0 %v4012
    %v4543 = vpop.f32.mrb[0].mxu0
    %v4544 = vadd.f32 %v3886, %v4543
    %v4545 = vpop.f32.mrb[0].mxu0
    %4546 = vmatprep.mubr.f32.mxu0 0.0
    %4547 = vmatmul.mubr.f32.gmra.mrb[0].mxu0 %v4015
    %v4548 = vpop.f32.mrb[0].mxu0
    %v4549 = vadd.f32 %v3886, %v4548
    %v4550 = vpop.f32.mrb[0].mxu0
    %4551 = vmatprep.mubr.f32.mxu0 0.0
    %4552 = vmatmul.mubr.f32.gmra.mrb[0].mxu0 %v4018
    %v4553 = vpop.f32.mrb[0].mxu0
    %v4554 = vadd.f32 %v3886, %v4553
    %v4555 = vpop.f32.mrb[0].mxu0
    %4556 = vmatprep.mubr.f32.mxu0 0.0
    %4557 = vmatmul.mubr.f32.gmra.mrb[0].mxu0 %v4021
    %v4558 = vpop.f32.mrb[0].mxu0
    %v4559 = vadd.f32 %v3886, %v4558
    %v4560 = vpop.f32.mrb[0].mxu0
    %4561 = vmatprep.mubr.f32.mxu0 0.0
    %4562 = vmatmul.mubr.f32.gmra.mrb[0].mxu0 %v4024
    %v4563 = vpop.f32.mrb[0].mxu0
    %v4564 = vadd.f32 %v3886, %v4563
    %v4565 = vpop.f32.mrb[0].mxu0
    %4566 = vmatprep.mubr.f32.mxu0 0.0
    %4567 = vmatmul.mubr.f32.gmra.mrb[0].mxu0 %v4027
    %v4568 = vpop.f32.mrb[0].mxu0
    %v4569 = vadd.f32 %v3886, %v4568
    %v4570 = vpop.f32.mrb[0].mxu0
    %4571 = vmatprep.mubr.f32.mxu0 0.0
    %4572 = vmatmul.mubr.f32.gmra.mrb[0].mxu0 %v4030
    %v4573 = vpop.f32.mrb[0].mxu0
    %v4574 = vadd.f32 %v3886, %v4573
    %v4575 = vpop.f32.mrb[0].mxu0
    %4576 = vmatprep.mubr.f32.mxu0 0.0
    %4577 = vmatmul.mubr.f32.gmra.mrb[0].mxu0 %v4033
    %v4578 = vpop.f32.mrb[0].mxu0
    %v4579 = vadd.f32 %v3886, %v4578
    %v4580 = vpop.f32.mrb[0].mxu0
    %4581 = vmatprep.mubr.f32.mxu0 0.0
    %4582 = vmatmul.mubr.f32.gmra.mrb[0].mxu0 %v4036
    %v4583 = vpop.f32.mrb[0].mxu0
    %v4584 = vadd.f32 %v3886, %v4583
    %v4585 = vpop.f32.mrb[0].mxu0
    %4586 = vmatprep.mubr.f32.mxu0 0.0
    %4587 = vmatmul.mubr.f32.gmra.mrb[0].mxu0 %v4039
    %v4588 = vpop.f32.mrb[0].mxu0
    %v4589 = vadd.f32 %v3886, %v4588
    %v4590 = vpop.f32.mrb[0].mxu0
    %4591 = vmatprep.mubr.f32.mxu0 0.0
    %4592 = vmatmul.mubr.f32.gmra.mrb[0].mxu0 %v4042
    %v4593 = vpop.f32.mrb[0].mxu0
    %v4594 = vadd.f32 %v3886, %v4593
    %v4595 = vpop.f32.mrb[0].mxu0
    %4596 = vmatprep.mubr.f32.mxu0 0.0
    %4597 = vmatmul.mubr.f32.gmra.mrb[0].mxu0 %v4045
    %v4598 = vpop.f32.mrb[0].mxu0
    %v4599 = vadd.f32 %v3886, %v4598
    %v4600 = vpop.f32.mrb[0].mxu0
    %4601 = vmatprep.mubr.f32.mxu0 0.0
    %4602 = vmatmul.mubr.f32.gmra.mrb[0].mxu0 %v4048
    %v4603 = vpop.f32.mrb[0].mxu0
    %v4604 = vadd.f32 %v3886, %v4603
    %v4605 = vpop.f32.mrb[0].mxu0
    %4606 = vmatprep.mubr.f32.mxu0 0.0
    %4607 = vmatmul.mubr.f32.gmra.mrb[0].mxu0 %v4051
    %v4608 = vpop.f32.mrb[0].mxu0
    %v4609 = vadd.f32 %v3886, %v4608
    %v4610 = vpop.f32.mrb[0].mxu0
    %4611 = vmatprep.mubr.f32.mxu0 0.0
    %4612 = vmatmul.mubr.f32.gmra.mrb[0].mxu0 %v4054
    %v4613 = vpop.f32.mrb[0].mxu0
    %v4614 = vadd.f32 %v3886, %v4613
    %v4615 = vpop.f32.mrb[0].mxu0
    %4616 = vmatprep.mubr.f32.mxu0 0.0
    %4617 = vmatmul.mubr.f32.gmra.mrb[0].mxu0 %v4057
    %v4618 = vpop.f32.mrb[0].mxu0
    %v4619 = vadd.f32 %v3886, %v4618
    %v4620 = vpop.f32.mrb[0].mxu0
    %4621 = vmatprep.mubr.f32.mxu0 0.0
    %4622 = vmatmul.mubr.f32.gmra.mrb[0].mxu0 %v4060
    %v4623 = vpop.f32.mrb[0].mxu0
    %v4624 = vadd.f32 %v3886, %v4623
    %v4625 = vpop.f32.mrb[0].mxu0
    %4626 = vmatprep.mubr.f32.mxu0 0.0
    %4627 = vmatmul.mubr.f32.gmra.mrb[0].mxu0 %v4063
    %v4628 = vpop.f32.mrb[0].mxu0
    %v4629 = vadd.f32 %v3886, %v4628
    %v4630 = vpop.f32.mrb[0].mxu0
    %4631 = vmatprep.mubr.f32.mxu0 0.0
    %4632 = vmatmul.mubr.f32.gmra.mrb[0].mxu0 %v4066
    %v4633 = vpop.f32.mrb[0].mxu0
    %v4634 = vadd.f32 %v3886, %v4633
    %v4635 = vpop.f32.mrb[0].mxu0
    %4636 = vmatprep.mubr.f32.mxu0 0.0
    %4637 = vmatmul.mubr.f32.gmra.mrb[0].mxu0 %v4069
    %v4638 = vpop.f32.mrb[0].mxu0
    %v4639 = vadd.f32 %v3886, %v4638
    %v4640 = vpop.f32.mrb[0].mxu0
    %4641 = vmatprep.mubr.f32.mxu0 0.0
    %4642 = vmatmul.mubr.f32.gmra.mrb[0].mxu0 %v4072
    %v4643 = vpop.f32.mrb[0].mxu0
    %v4644 = vadd.f32 %v3886, %v4643
    %v4645 = vpop.f32.mrb[0].mxu0
    %4646 = vmatprep.mubr.f32.mxu0 0.0
    %4647 = vmatmul.mubr.f32.gmra.mrb[0].mxu0 %v4075
    %v4648 = vpop.f32.mrb[0].mxu0
    %v4649 = vadd.f32 %v3886, %v4648
    %v4650 = vpop.f32.mrb[0].mxu0
    %4651 = vmatprep.mubr.f32.mxu0 0.0
    %4652 = vmatmul.mubr.f32.gmra.mrb[0].mxu0 %v4078
    %v4653 = vpop.f32.mrb[0].mxu0
    %v4654 = vadd.f32 %v3886, %v4653
    %v4655 = vpop.f32.mrb[0].mxu0
    %4656 = vmatprep.mubr.f32.mxu0 0.0
    %4657 = vmatmul.mubr.f32.gmra.mrb[0].mxu0 %v4081
    %v4658 = vpop.f32.mrb[0].mxu0
    %v4659 = vadd.f32 %v3886, %v4658
    %v4660 = vpop.f32.mrb[0].mxu0
    %4661 = vmatprep.mubr.f32.mxu0 0.0
    %4662 = vmatmul.mubr.f32.gmra.mrb[0].mxu0 %v4084
    %v4663 = vpop.f32.mrb[0].mxu0
    %v4664 = vadd.f32 %v3886, %v4663
    %v4665 = vpop.f32.mrb[0].mxu0
    %4666 = vmatprep.mubr.f32.mxu0 0.0
    %4667 = vmatmul.mubr.f32.gmra.mrb[0].mxu0 %v4087
    %v4668 = vpop.f32.mrb[0].mxu0
    %v4669 = vadd.f32 %v3886, %v4668
    %v4670 = vpop.f32.mrb[0].mxu0
    %4671 = vmatprep.mubr.f32.mxu0 0.0
    %4672 = vmatmul.mubr.f32.gmra.mrb[0].mxu0 %v4090
    %v4673 = vpop.f32.mrb[0].mxu0
    %v4674 = vadd.f32 %v3886, %v4673
    %v4675 = vpop.f32.mrb[0].mxu0
    %4676 = vmatprep.mubr.f32.mxu0 0.0
    %4677 = vmatmul.mubr.f32.gmra.mrb[0].mxu0 %v4093
    %v4678 = vpop.f32.mrb[0].mxu0
    %v4679 = vadd.f32 %v3886, %v4678
    %v4680 = vpop.f32.mrb[0].mxu0
    %4681 = vmatprep.mubr.f32.mxu0 0.0
    %4682 = vmatmul.mubr.f32.gmra.mrb[0].mxu0 %v4096
    %v4683 = vpop.f32.mrb[0].mxu0
    %v4684 = vadd.f32 %v3886, %v4683
    %v4685 = vpop.f32.mrb[0].mxu0
    %4686 = vmatprep.mubr.f32.mxu0 0.0
    %4687 = vmatmul.mubr.f32.gmra.mrb[0].mxu0 %v4099
    %v4688 = vpop.f32.mrb[0].mxu0
    %v4689 = vadd.f32 %v3886, %v4688
    %v4690 = vpop.f32.mrb[0].mxu0
    %4691 = vmatprep.mubr.f32.mxu0 0.0
    %4692 = vmatmul.mubr.f32.gmra.mrb[0].mxu0 %v4102
    %v4693 = vpop.f32.mrb[0].mxu0
    %v4694 = vadd.f32 %v3886, %v4693
    %v4695 = vpop.f32.mrb[0].mxu0
    %4696 = vmatprep.mubr.f32.mxu0 0.0
    %4697 = vmatmul.mubr.f32.gmra.mrb[0].mxu0 %v4105
    %v4698 = vpop.f32.mrb[0].mxu0
    %v4699 = vadd.f32 %v3886, %v4698
    %v4700 = vpop.f32.mrb[0].mxu0
    %4701 = vmatprep.mubr.f32.mxu0 0.0
    %4702 = vmatmul.mubr.f32.gmra.mrb[0].mxu0 %v4108
    %v4703 = vpop.f32.mrb[0].mxu0
    %v4704 = vadd.f32 %v3886, %v4703
    %v4705 = vpop.f32.mrb[0].mxu0
    %4706 = vmatprep.mubr.f32.mxu0 0.0
    %4707 = vmatmul.mubr.f32.gmra.mrb[0].mxu0 %v4111
    %v4708 = vpop.f32.mrb[0].mxu0
    %v4709 = vadd.f32 %v3886, %v4708
    %v4710 = vpop.f32.mrb[0].mxu0
    %4711 = vmatprep.mubr.f32.mxu0 0.0
    %4712 = vmatmul.mubr.f32.gmra.mrb[0].mxu0 %v4114
    %v4713 = vpop.f32.mrb[0].mxu0
    %v4714 = vadd.f32 %v3886, %v4713
    %v4715 = vpop.f32.mrb[0].mxu0
    %4716 = vmatprep.mubr.f32.mxu0 0.0
    %4717 = vmatmul.mubr.f32.gmra.mrb[0].mxu0 %v4117
    %v4718 = vpop.f32.mrb[0].mxu0
    %v4719 = vadd.f32 %v3886, %v4718
    %v4720 = vpop.f32.mrb[0].mxu0
    %4721 = vmatprep.mubr.f32.mxu0 0.0
    %4722 = vmatmul.mubr.f32.gmra.mrb[0].mxu0 %v4120
    %v4723 = vpop.f32.mrb[0].mxu0
    %v4724 = vadd.f32 %v3886, %v4723
    %v4725 = vpop.f32.mrb[0].mxu0
    %4726 = vmatprep.mubr.f32.mxu0 0.0
    %4727 = vmatmul.mubr.f32.gmra.mrb[0].mxu0 %v4123
    %v4728 = vpop.f32.mrb[0].mxu0
    %v4729 = vadd.f32 %v3886, %v4728
    %v4730 = vpop.f32.mrb[0].mxu0
    %4731 = vmatprep.mubr.f32.mxu0 0.0
    %4732 = vmatmul.mubr.f32.gmra.mrb[0].mxu0 %v4126
    %v4733 = vpop.f32.mrb[0].mxu0
    %v4734 = vadd.f32 %v3886, %v4733
    %v4735 = vpop.f32.mrb[0].mxu0
    %4736 = vmatprep.mubr.f32.mxu0 0.0
    %4737 = vmatmul.mubr.f32.gmra.mrb[0].mxu0 %v4129
    %v4738 = vpop.f32.mrb[0].mxu0
    %v4739 = vadd.f32 %v3886, %v4738
    %v4740 = vpop.f32.mrb[0].mxu0
    %4741 = vmatprep.mubr.f32.mxu0 0.0
    %4742 = vmatmul.mubr.f32.gmra.mrb[0].mxu0 %v4132
    %v4743 = vpop.f32.mrb[0].mxu0
    %v4744 = vadd.f32 %v3886, %v4743
    %v4745 = vpop.f32.mrb[0].mxu0
    %4746 = vmatprep.mubr.f32.mxu0 0.0
    %4747 = vmatmul.mubr.f32.gmra.mrb[0].mxu0 %v4135
    %v4748 = vpop.f32.mrb[0].mxu0
    %v4749 = vadd.f32 %v3886, %v4748
    %v4750 = vpop.f32.mrb[0].mxu0
    %4751 = vmatprep.mubr.f32.mxu0 0.0
    %4752 = vmatmul.mubr.f32.gmra.mrb[0].mxu0 %v4138
    %v4753 = vpop.f32.mrb[0].mxu0
    %v4754 = vadd.f32 %v3886, %v4753
    %v4755 = vpop.f32.mrb[0].mxu0
    %4756 = vmatprep.mubr.f32.mxu0 0.0
    %4757 = vmatmul.mubr.f32.gmra.mrb[0].mxu0 %v4141
    %v4758 = vpop.f32.mrb[0].mxu0
    %v4759 = vadd.f32 %v3886, %v4758
    %v4760 = vpop.f32.mrb[0].mxu0
    %4761 = vmatprep.mubr.f32.mxu0 0.0
    %4762 = vmatmul.mubr.f32.gmra.mrb[0].mxu0 %v4144
    %v4763 = vpop.f32.mrb[0].mxu0
    %v4764 = vadd.f32 %v3886, %v4763
    %v4765 = vpop.f32.mrb[0].mxu0
    %4766 = vmatprep.mubr.f32.mxu0 0.0
    %4767 = vmatmul.mubr.f32.gmra.mrb[0].mxu0 %v4147
    %v4768 = vpop.f32.mrb[0].mxu0
    %v4769 = vadd.f32 %v3886, %v4768
    %v4770 = vpop.f32.mrb[0].mxu0
    %4771 = vmatprep.mubr.f32.mxu0 0.0
    %4772 = vmatmul.mubr.f32.gmra.mrb[0].mxu0 %v4150
    %v4773 = vpop.f32.mrb[0].mxu0
    %v4774 = vadd.f32 %v3886, %v4773
    %v4775 = vpop.f32.mrb[0].mxu0
    %4776 = vmatprep.mubr.f32.mxu0 0.0
    %4777 = vmatmul.mubr.f32.gmra.mrb[0].mxu0 %v4153
    %v4778 = vpop.f32.mrb[0].mxu0
    %v4779 = vadd.f32 %v3886, %v4778
    %v4780 = vpop.f32.mrb[0].mxu0
    %4781 = vmatprep.mubr.f32.mxu0 0.0
    %4782 = vmatmul.mubr.f32.gmra.mrb[0].mxu0 %v4156
    %v4783 = vpop.f32.mrb[0].mxu0
    %v4784 = vadd.f32 %v3886, %v4783
    %v4785 = vpop.f32.mrb[0].mxu0
    %4786 = vmatprep.mubr.f32.mxu0 0.0
    %4787 = vmatmul.mubr.f32.gmra.mrb[0].mxu0 %v4159
    %v4788 = vpop.f32.mrb[0].mxu0
    %v4789 = vadd.f32 %v3886, %v4788
    %v4790 = vpop.f32.mrb[0].mxu0
    %4791 = vmatprep.mubr.f32.mxu0 0.0
    %4792 = vmatmul.mubr.f32.gmra.mrb[0].mxu0 %v4162
    %v4793 = vpop.f32.mrb[0].mxu0
    %v4794 = vadd.f32 %v3886, %v4793
    %v4795 = vpop.f32.mrb[0].mxu0
    %4796 = vmatprep.mubr.f32.mxu0 0.0
    %4797 = vmatmul.mubr.f32.gmra.mrb[0].mxu0 %v4165
    %v4798 = vpop.f32.mrb[0].mxu0
    %v4799 = vadd.f32 %v3886, %v4798
    %v4800 = vpop.f32.mrb[0].mxu0
    %4801 = vmatprep.mubr.f32.mxu0 0.0
    %4802 = vmatmul.mubr.f32.gmra.mrb[0].mxu0 %v4168
    %v4803 = vpop.f32.mrb[0].mxu0
    %v4804 = vadd.f32 %v3886, %v4803
    %v4805 = vpop.f32.mrb[0].mxu0
    %4806 = vmatprep.mubr.f32.mxu0 0.0
    %4807 = vmatmul.mubr.f32.gmra.mrb[0].mxu0 %v4171
    %v4808 = vpop.f32.mrb[0].mxu0
    %v4809 = vadd.f32 %v3886, %v4808
    %v4810 = vpop.f32.mrb[0].mxu0
    %4811 = vmatprep.mubr.f32.mxu0 0.0
    %4812 = vmatmul.mubr.f32.gmra.mrb[0].mxu0 %v4174
    %v4813 = vpop.f32.mrb[0].mxu0
    %v4814 = vadd.f32 %v3886, %v4813
    %v4815 = vpop.f32.mrb[0].mxu0
    %4816 = vmatprep.mubr.f32.mxu0 0.0
    %4817 = vmatmul.mubr.f32.gmra.mrb[0].mxu0 %v4177
    %v4818 = vpop.f32.mrb[0].mxu0
    %v4819 = vadd.f32 %v3886, %v4818
    %v4820 = vpop.f32.mrb[0].mxu0
    %4821 = vmatprep.mubr.f32.mxu0 0.0
    %4822 = vmatmul.mubr.f32.gmra.mrb[0].mxu0 %v4180
    %v4823 = vpop.f32.mrb[0].mxu0
    %v4824 = vadd.f32 %v3886, %v4823
    %v4825 = vpop.f32.mrb[0].mxu0
    %4826 = vmatprep.mubr.f32.mxu0 0.0
    %4827 = vmatmul.mubr.f32.gmra.mrb[0].mxu0 %v4183
    %v4828 = vpop.f32.mrb[0].mxu0
    %v4829 = vadd.f32 %v3886, %v4828
    %v4830 = vpop.f32.mrb[0].mxu0
    %4831 = vmatprep.mubr.f32.mxu0 0.0
    %4832 = vmatmul.mubr.f32.gmra.mrb[0].mxu0 %v4186
    %v4833 = vpop.f32.mrb[0].mxu0
    %v4834 = vadd.f32 %v3886, %v4833
    %v4835 = vpop.f32.mrb[0].mxu0
    %4836 = vmatprep.mubr.f32.mxu0 0.0
    %4837 = vmatmul.mubr.f32.gmra.mrb[0].mxu0 %v4189
    %v4838 = vpop.f32.mrb[0].mxu0
    %v4839 = vadd.f32 %v3886, %v4838
    %v4840 = vpop.f32.mrb[0].mxu0
    %4841 = vmatprep.mubr.f32.mxu0 0.0
    %4842 = vmatmul.mubr.f32.gmra.mrb[0].mxu0 %v4192
    %v4843 = vpop.f32.mrb[0].mxu0
    %v4844 = vadd.f32 %v3886, %v4843
    %v4845 = vpop.f32.mrb[0].mxu0
    %4846 = vmatprep.mubr.f32.mxu0 0.0
    %4847 = vmatmul.mubr.f32.gmra.mrb[0].mxu0 %v4195
    %v4848 = vpop.f32.mrb[0].mxu0
    %v4849 = vadd.f32 %v3886, %v4848
    %v4850 = vpop.f32.mrb[0].mxu0
    %4851 = vmatprep.mubr.f32.mxu0 0.0
    %4852 = vmatmul.mubr.f32.gmra.mrb[0].mxu0 %v4198
    %v4853 = vpop.f32.mrb[0].mxu0
    %v4854 = vadd.f32 %v3886, %v4853
    %v4855 = vpop.f32.mrb[0].mxu0
    %4856 = vmatprep.mubr.f32.mxu0 0.0
    %4857 = vmatmul.mubr.f32.gmra.mrb[0].mxu0 %v4201
    %v4858 = vpop.f32.mrb[0].mxu0
    %v4859 = vadd.f32 %v3886, %v4858
    %v4860 = vpop.f32.mrb[0].mxu0
    %4861 = vmatprep.mubr.f32.mxu0 0.0
    %4862 = vmatmul.mubr.f32.gmra.mrb[0].mxu0 %v4204
    %v4863 = vpop.f32.mrb[0].mxu0
    %v4864 = vadd.f32 %v3886, %v4863
    %v4865 = vpop.f32.mrb[0].mxu0
    %4866 = vmatprep.mubr.f32.mxu0 0.0
    %4867 = vmatmul.mubr.f32.gmra.mrb[0].mxu0 %v4207
    %v4868 = vpop.f32.mrb[0].mxu0
    %v4869 = vadd.f32 %v3886, %v4868
    %v4870 = vpop.f32.mrb[0].mxu0
    %4871 = vmatprep.mubr.f32.mxu0 0.0
    %4872 = vmatmul.mubr.f32.gmra.mrb[0].mxu0 %v4210
    %v4873 = vpop.f32.mrb[0].mxu0
    %v4874 = vadd.f32 %v3886, %v4873
    %v4875 = vpop.f32.mrb[0].mxu0
    %4876 = vmatprep.mubr.f32.mxu0 0.0
    %4877 = vmatmul.mubr.f32.gmra.mrb[0].mxu0 %v4213
    %v4878 = vpop.f32.mrb[0].mxu0
    %v4879 = vadd.f32 %v3886, %v4878
    %v4880 = vpop.f32.mrb[0].mxu0
    %4881 = vmatprep.mubr.f32.mxu0 0.0
    %4882 = vmatmul.mubr.f32.gmra.mrb[0].mxu0 %v4216
    %v4883 = vpop.f32.mrb[0].mxu0
    %v4884 = vadd.f32 %v3886, %v4883
    %v4885 = vpop.f32.mrb[0].mxu0
    %4886 = vmatprep.mubr.f32.mxu0 0.0
    %4887 = vmatmul.mubr.f32.gmra.mrb[0].mxu0 %v4219
    %v4888 = vpop.f32.mrb[0].mxu0
    %v4889 = vadd.f32 %v3886, %v4888
    %v4890 = vpop.f32.mrb[0].mxu0
    %4891 = vmatprep.mubr.f32.mxu0 0.0
    %4892 = vmatmul.mubr.f32.gmra.mrb[0].mxu0 %v4222
    %v4893 = vpop.f32.mrb[0].mxu0
    %v4894 = vadd.f32 %v3886, %v4893
    %v4895 = vpop.f32.mrb[0].mxu0
    %4896 = vmatprep.mubr.f32.mxu0 0.0
    %4897 = vmatmul.mubr.f32.gmra.mrb[0].mxu0 %v4225
    %v4898 = vpop.f32.mrb[0].mxu0
    %v4899 = vadd.f32 %v3886, %v4898
    %v4900 = vpop.f32.mrb[0].mxu0
    %4901 = vmatprep.mubr.f32.mxu0 0.0
    %4902 = vmatmul.mubr.f32.gmra.mrb[0].mxu0 %v4228
    %v4903 = vpop.f32.mrb[0].mxu0
    %v4904 = vadd.f32 %v3886, %v4903
    %v4905 = vpop.f32.mrb[0].mxu0
    %4906 = vmatprep.mubr.f32.mxu0 0.0
    %4907 = vmatmul.mubr.f32.gmra.mrb[0].mxu0 %v4231
    %v4908 = vpop.f32.mrb[0].mxu0
    %v4909 = vadd.f32 %v3886, %v4908
    %v4910 = vpop.f32.mrb[0].mxu0
    %4911 = vmatprep.mubr.f32.mxu0 0.0
    %4912 = vmatmul.mubr.f32.gmra.mrb[0].mxu0 %v4234
    %v4913 = vpop.f32.mrb[0].mxu0
    %v4914 = vadd.f32 %v3886, %v4913
    %v4915 = vpop.f32.mrb[0].mxu0
    %4916 = vmatprep.mubr.f32.mxu0 0.0
    %4917 = vmatmul.mubr.f32.gmra.mrb[0].mxu0 %v4237
    %v4918 = vpop.f32.mrb[0].mxu0
    %v4919 = vadd.f32 %v3886, %v4918
    %v4920 = vpop.f32.mrb[0].mxu0
    %4921 = vmatprep.mubr.f32.mxu0 0.0
    %4922 = vmatmul.mubr.f32.gmra.mrb[0].mxu0 %v4240
    %v4923 = vpop.f32.mrb[0].mxu0
    %v4924 = vadd.f32 %v3886, %v4923
    %v4925 = vpop.f32.mrb[0].mxu0
    %4926 = vmatprep.mubr.f32.mxu0 0.0
    %4927 = vmatmul.mubr.f32.gmra.mrb[0].mxu0 %v4243
    %v4928 = vpop.f32.mrb[0].mxu0
    %v4929 = vadd.f32 %v3886, %v4928
    %v4930 = vpop.f32.mrb[0].mxu0
    %4931 = vmatprep.mubr.f32.mxu0 0.0
    %4932 = vmatmul.mubr.f32.gmra.mrb[0].mxu0 %v4246
    %v4933 = vpop.f32.mrb[0].mxu0
    %v4934 = vadd.f32 %v3886, %v4933
    %v4935 = vpop.f32.mrb[0].mxu0
    %4936 = vmatprep.mubr.f32.mxu0 0.0
    %4937 = vmatmul.mubr.f32.gmra.mrb[0].mxu0 %v4249
    %v4938 = vpop.f32.mrb[0].mxu0
    %v4939 = vadd.f32 %v3886, %v4938
    %v4940 = vpop.f32.mrb[0].mxu0
    %4941 = vmatprep.mubr.f32.mxu0 0.0
    %4942 = vmatmul.mubr.f32.gmra.mrb[0].mxu0 %v4252
    %v4943 = vpop.f32.mrb[0].mxu0
    %v4944 = vadd.f32 %v3886, %v4943
    %v4945 = vpop.f32.mrb[0].mxu0
    %4946 = vmatprep.mubr.f32.mxu0 0.0
    %4947 = vmatmul.mubr.f32.gmra.mrb[0].mxu0 %v4255
    %v4948 = vpop.f32.mrb[0].mxu0
    %v4949 = vadd.f32 %v3886, %v4948
    %v4950 = vpop.f32.mrb[0].mxu0
    %4951 = vmatprep.mubr.f32.mxu0 0.0
    %4952 = vmatmul.mubr.f32.gmra.mrb[0].mxu0 %v4258
    %v4953 = vpop.f32.mrb[0].mxu0
    %v4954 = vadd.f32 %v3886, %v4953
    %v4955 = vpop.f32.mrb[0].mxu0
    %4956 = vmatprep.mubr.f32.mxu0 0.0
    %4957 = vmatmul.mubr.f32.gmra.mrb[0].mxu0 %v4261
    %v4958 = vpop.f32.mrb[0].mxu0
    %v4959 = vadd.f32 %v3886, %v4958
    %v4960 = vpop.f32.mrb[0].mxu0
    %4961 = vmatprep.mubr.f32.mxu0 0.0
    %4962 = vmatmul.mubr.f32.gmra.mrb[0].mxu0 %v4264
    %v4963 = vpop.f32.mrb[0].mxu0
    %v4964 = vadd.f32 %v3886, %v4963
    %v4965 = vpop.f32.mrb[0].mxu0
    %4966 = vmatprep.mubr.f32.mxu0 0.0
    %4967 = vmatmul.mubr.f32.gmra.mrb[0].mxu0 %v4267
    %v4968 = vpop.f32.mrb[0].mxu0
    %v4969 = vadd.f32 %v3886, %v4968
    %v4970 = vpop.f32.mrb[0].mxu0
    %4971 = vmatprep.mubr.f32.mxu0 0.0
    %4972 = vmatmul.mubr.f32.gmra.mrb[0].mxu0 %v4270
    %v4973 = vpop.f32.mrb[0].mxu0
    %v4974 = vadd.f32 %v3886, %v4973
    %v4975 = vpop.f32.mrb[0].mxu0
    %4976 = vdwg.mxu0
    %v4977 = vld [vmem:[%s1] sm:$0xff]
    %v4978 = vld [vmem:[%s1 + $0x8] sm:$0xff]
    %v4979 = vld [vmem:[%s1 + $0x10] sm:$0xff]
    %v4980 = vld [vmem:[%s1 + $0x18] sm:$0xff]
    %v4981 = vld [vmem:[%s1 + $0x20] sm:$0xff]
    %v4982 = vld [vmem:[%s1 + $0x28] sm:$0xff]
    %v4983 = vld [vmem:[%s1 + $0x30] sm:$0xff]
    %v4984 = vld [vmem:[%s1 + $0x38] sm:$0xff]
    %v4985 = vld [vmem:[%s1 + $0x40] sm:$0xff]
    %v4986 = vld [vmem:[%s1 + $0x48] sm:$0xff]
    %v4987 = vld [vmem:[%s1 + $0x50] sm:$0xff]
    %v4988 = vld [vmem:[%s1 + $0x58] sm:$0xff]
    %v4989 = vld [vmem:[%s1 + $0x60] sm:$0xff]
    %v4990 = vld [vmem:[%s1 + $0x68] sm:$0xff]
    %v4991 = vld [vmem:[%s1 + $0x70] sm:$0xff]
    %v4992 = vld [vmem:[%s1 + $0x78] sm:$0xff]
    %v4993 = vld [vmem:[%s1 + $0x80] sm:$0xff]
    %v4994 = vld [vmem:[%s1 + $0x88] sm:$0xff]
    %v4995 = vld [vmem:[%s1 + $0x90] sm:$0xff]
    %v4996 = vld [vmem:[%s1 + $0x98] sm:$0xff]
    %v4997 = vld [vmem:[%s1 + $0xa0] sm:$0xff]
    %v4998 = vld [vmem:[%s1 + $0xa8] sm:$0xff]
    %v4999 = vld [vmem:[%s1 + $0xb0] sm:$0xff]
    %v5000 = vld [vmem:[%s1 + $0xb8] sm:$0xff]
    %v5001 = vld [vmem:[%s1 + $0xc0] sm:$0xff]
    %v5002 = vld [vmem:[%s1 + $0xc8] sm:$0xff]
    %v5003 = vld [vmem:[%s1 + $0xd0] sm:$0xff]
    %v5004 = vld [vmem:[%s1 + $0xd8] sm:$0xff]
    %v5005 = vld [vmem:[%s1 + $0xe0] sm:$0xff]
    %v5006 = vld [vmem:[%s1 + $0xe8] sm:$0xff]
    %v5007 = vld [vmem:[%s1 + $0xf0] sm:$0xff]
    %v5008 = vld [vmem:[%s1 + $0xf8] sm:$0xff]
    %v5009 = vld [vmem:[%s1 + $0x100] sm:$0xff]
    %v5010 = vld [vmem:[%s1 + $0x108] sm:$0xff]
    %v5011 = vld [vmem:[%s1 + $0x110] sm:$0xff]
    %v5012 = vld [vmem:[%s1 + $0x118] sm:$0xff]
    %v5013 = vld [vmem:[%s1 + $0x120] sm:$0xff]
    %v5014 = vld [vmem:[%s1 + $0x128] sm:$0xff]
    %v5015 = vld [vmem:[%s1 + $0x130] sm:$0xff]
    %v5016 = vld [vmem:[%s1 + $0x138] sm:$0xff]
    %v5017 = vld [vmem:[%s1 + $0x140] sm:$0xff]
    %v5018 = vld [vmem:[%s1 + $0x148] sm:$0xff]
    %v5019 = vld [vmem:[%s1 + $0x150] sm:$0xff]
    %v5020 = vld [vmem:[%s1 + $0x158] sm:$0xff]
    %v5021 = vld [vmem:[%s1 + $0x160] sm:$0xff]
    %v5022 = vld [vmem:[%s1 + $0x168] sm:$0xff]
    %v5023 = vld [vmem:[%s1 + $0x170] sm:$0xff]
    %v5024 = vld [vmem:[%s1 + $0x178] sm:$0xff]
    %v5025 = vld [vmem:[%s1 + $0x180] sm:$0xff]
    %v5026 = vld [vmem:[%s1 + $0x188] sm:$0xff]
    %v5027 = vld [vmem:[%s1 + $0x190] sm:$0xff]
    %v5028 = vld [vmem:[%s1 + $0x198] sm:$0xff]
    %v5029 = vld [vmem:[%s1 + $0x1a0] sm:$0xff]
    %v5030 = vld [vmem:[%s1 + $0x1a8] sm:$0xff]
    %v5031 = vld [vmem:[%s1 + $0x1b0] sm:$0xff]
    %v5032 = vld [vmem:[%s1 + $0x1b8] sm:$0xff]
    %v5033 = vld [vmem:[%s1 + $0x1c0] sm:$0xff]
    %v5034 = vld [vmem:[%s1 + $0x1c8] sm:$0xff]
    %v5035 = vld [vmem:[%s1 + $0x1d0] sm:$0xff]
    %v5036 = vld [vmem:[%s1 + $0x1d8] sm:$0xff]
    %v5037 = vld [vmem:[%s1 + $0x1e0] sm:$0xff]
    %v5038 = vld [vmem:[%s1 + $0x1e8] sm:$0xff]
    %v5039 = vld [vmem:[%s1 + $0x1f0] sm:$0xff]
    %v5040 = vld [vmem:[%s1 + $0x1f8] sm:$0xff]
    %v5041 = vld [vmem:[%s1 + $0x200] sm:$0xff]
    %v5042 = vld [vmem:[%s1 + $0x208] sm:$0xff]
    %v5043 = vld [vmem:[%s1 + $0x210] sm:$0xff]
    %v5044 = vld [vmem:[%s1 + $0x218] sm:$0xff]
    %v5045 = vld [vmem:[%s1 + $0x220] sm:$0xff]
    %v5046 = vld [vmem:[%s1 + $0x228] sm:$0xff]
    %v5047 = vld [vmem:[%s1 + $0x230] sm:$0xff]
    %v5048 = vld [vmem:[%s1 + $0x238] sm:$0xff]
    %v5049 = vld [vmem:[%s1 + $0x240] sm:$0xff]
    %v5050 = vld [vmem:[%s1 + $0x248] sm:$0xff]
    %v5051 = vld [vmem:[%s1 + $0x250] sm:$0xff]
    %v5052 = vld [vmem:[%s1 + $0x258] sm:$0xff]
    %v5053 = vld [vmem:[%s1 + $0x260] sm:$0xff]
    %v5054 = vld [vmem:[%s1 + $0x268] sm:$0xff]
    %v5055 = vld [vmem:[%s1 + $0x270] sm:$0xff]
    %v5056 = vld [vmem:[%s1 + $0x278] sm:$0xff]
    %v5057 = vld [vmem:[%s1 + $0x280] sm:$0xff]
    %v5058 = vld [vmem:[%s1 + $0x288] sm:$0xff]
    %v5059 = vld [vmem:[%s1 + $0x290] sm:$0xff]
    %v5060 = vld [vmem:[%s1 + $0x298] sm:$0xff]
    %v5061 = vld [vmem:[%s1 + $0x2a0] sm:$0xff]
    %v5062 = vld [vmem:[%s1 + $0x2a8] sm:$0xff]
    %v5063 = vld [vmem:[%s1 + $0x2b0] sm:$0xff]
    %v5064 = vld [vmem:[%s1 + $0x2b8] sm:$0xff]
    %v5065 = vld [vmem:[%s1 + $0x2c0] sm:$0xff]
    %v5066 = vld [vmem:[%s1 + $0x2c8] sm:$0xff]
    %v5067 = vld [vmem:[%s1 + $0x2d0] sm:$0xff]
    %v5068 = vld [vmem:[%s1 + $0x2d8] sm:$0xff]
    %v5069 = vld [vmem:[%s1 + $0x2e0] sm:$0xff]
    %v5070 = vld [vmem:[%s1 + $0x2e8] sm:$0xff]
    %v5071 = vld [vmem:[%s1 + $0x2f0] sm:$0xff]
    %v5072 = vld [vmem:[%s1 + $0x2f8] sm:$0xff]
    %v5073 = vld [vmem:[%s1 + $0x300] sm:$0xff]
    %v5074 = vld [vmem:[%s1 + $0x308] sm:$0xff]
    %v5075 = vld [vmem:[%s1 + $0x310] sm:$0xff]
    %v5076 = vld [vmem:[%s1 + $0x318] sm:$0xff]
    %v5077 = vld [vmem:[%s1 + $0x320] sm:$0xff]
    %v5078 = vld [vmem:[%s1 + $0x328] sm:$0xff]
    %v5079 = vld [vmem:[%s1 + $0x330] sm:$0xff]
    %v5080 = vld [vmem:[%s1 + $0x338] sm:$0xff]
    %v5081 = vld [vmem:[%s1 + $0x340] sm:$0xff]
    %v5082 = vld [vmem:[%s1 + $0x348] sm:$0xff]
    %v5083 = vld [vmem:[%s1 + $0x350] sm:$0xff]
    %v5084 = vld [vmem:[%s1 + $0x358] sm:$0xff]
    %v5085 = vld [vmem:[%s1 + $0x360] sm:$0xff]
    %v5086 = vld [vmem:[%s1 + $0x368] sm:$0xff]
    %v5087 = vld [vmem:[%s1 + $0x370] sm:$0xff]
    %v5088 = vld [vmem:[%s1 + $0x378] sm:$0xff]
    %v5089 = vld [vmem:[%s1 + $0x380] sm:$0xff]
    %v5090 = vld [vmem:[%s1 + $0x388] sm:$0xff]
    %v5091 = vld [vmem:[%s1 + $0x390] sm:$0xff]
    %v5092 = vld [vmem:[%s1 + $0x398] sm:$0xff]
    %v5093 = vld [vmem:[%s1 + $0x3a0] sm:$0xff]
    %v5094 = vld [vmem:[%s1 + $0x3a8] sm:$0xff]
    %v5095 = vld [vmem:[%s1 + $0x3b0] sm:$0xff]
    %v5096 = vld [vmem:[%s1 + $0x3b8] sm:$0xff]
    %v5097 = vld [vmem:[%s1 + $0x3c0] sm:$0xff]
    %v5098 = vld [vmem:[%s1 + $0x3c8] sm:$0xff]
    %v5099 = vld [vmem:[%s1 + $0x3d0] sm:$0xff]
    %v5100 = vld [vmem:[%s1 + $0x3d8] sm:$0xff]
    %v5101 = vld [vmem:[%s1 + $0x3e0] sm:$0xff]
    %v5102 = vld [vmem:[%s1 + $0x3e8] sm:$0xff]
    %v5103 = vld [vmem:[%s1 + $0x3f0] sm:$0xff]
    %v5104 = vld [vmem:[%s1 + $0x3f8] sm:$0xff]
    %5106 = vset.pattern.permute.xlu0 0
    %5107 = vperm.xlu0 %5106, %v4977
    %v5108 = vpop.permute.xlu0 %5107
    %5111 = vset.pattern.permute.xlu0 0
    %5112 = vperm.xlu0 %5111, %v4978
    %v5113 = vpop.permute.xlu0 %5112
    %5116 = vset.pattern.permute.xlu0 0
    %5117 = vperm.xlu0 %5116, %v4979
    %v5118 = vpop.permute.xlu0 %5117
    %5121 = vset.pattern.permute.xlu0 0
    %5122 = vperm.xlu0 %5121, %v4980
    %v5123 = vpop.permute.xlu0 %5122
    %5126 = vset.pattern.permute.xlu0 0
    %5127 = vperm.xlu0 %5126, %v4981
    %v5128 = vpop.permute.xlu0 %5127
    %5131 = vset.pattern.permute.xlu0 0
    %5132 = vperm.xlu0 %5131, %v4982
    %v5133 = vpop.permute.xlu0 %5132
    %5136 = vset.pattern.permute.xlu0 0
    %5137 = vperm.xlu0 %5136, %v4983
    %v5138 = vpop.permute.xlu0 %5137
    %5141 = vset.pattern.permute.xlu0 0
    %5142 = vperm.xlu0 %5141, %v4984
    %v5143 = vpop.permute.xlu0 %5142
    %5146 = vset.pattern.permute.xlu0 0
    %5147 = vperm.xlu0 %5146, %v4985
    %v5148 = vpop.permute.xlu0 %5147
    %5151 = vset.pattern.permute.xlu0 0
    %5152 = vperm.xlu0 %5151, %v4986
    %v5153 = vpop.permute.xlu0 %5152
    %5156 = vset.pattern.permute.xlu0 0
    %5157 = vperm.xlu0 %5156, %v4987
    %v5158 = vpop.permute.xlu0 %5157
    %5161 = vset.pattern.permute.xlu0 0
    %5162 = vperm.xlu0 %5161, %v4988
    %v5163 = vpop.permute.xlu0 %5162
    %5166 = vset.pattern.permute.xlu0 0
    %5167 = vperm.xlu0 %5166, %v4989
    %v5168 = vpop.permute.xlu0 %5167
    %5171 = vset.pattern.permute.xlu0 0
    %5172 = vperm.xlu0 %5171, %v4990
    %v5173 = vpop.permute.xlu0 %5172
    %5176 = vset.pattern.permute.xlu0 0
    %5177 = vperm.xlu0 %5176, %v4991
    %v5178 = vpop.permute.xlu0 %5177
    %5181 = vset.pattern.permute.xlu0 0
    %5182 = vperm.xlu0 %5181, %v4992
    %v5183 = vpop.permute.xlu0 %5182
    %5186 = vset.pattern.permute.xlu0 0
    %5187 = vperm.xlu0 %5186, %v4993
    %v5188 = vpop.permute.xlu0 %5187
    %5191 = vset.pattern.permute.xlu0 0
    %5192 = vperm.xlu0 %5191, %v4994
    %v5193 = vpop.permute.xlu0 %5192
    %5196 = vset.pattern.permute.xlu0 0
    %5197 = vperm.xlu0 %5196, %v4995
    %v5198 = vpop.permute.xlu0 %5197
    %5201 = vset.pattern.permute.xlu0 0
    %5202 = vperm.xlu0 %5201, %v4996
    %v5203 = vpop.permute.xlu0 %5202
    %5206 = vset.pattern.permute.xlu0 0
    %5207 = vperm.xlu0 %5206, %v4997
    %v5208 = vpop.permute.xlu0 %5207
    %5211 = vset.pattern.permute.xlu0 0
    %5212 = vperm.xlu0 %5211, %v4998
    %v5213 = vpop.permute.xlu0 %5212
    %5216 = vset.pattern.permute.xlu0 0
    %5217 = vperm.xlu0 %5216, %v4999
    %v5218 = vpop.permute.xlu0 %5217
    %5221 = vset.pattern.permute.xlu0 0
    %5222 = vperm.xlu0 %5221, %v5000
    %v5223 = vpop.permute.xlu0 %5222
    %5226 = vset.pattern.permute.xlu0 0
    %5227 = vperm.xlu0 %5226, %v5001
    %v5228 = vpop.permute.xlu0 %5227
    %5231 = vset.pattern.permute.xlu0 0
    %5232 = vperm.xlu0 %5231, %v5002
    %v5233 = vpop.permute.xlu0 %5232
    %5236 = vset.pattern.permute.xlu0 0
    %5237 = vperm.xlu0 %5236, %v5003
    %v5238 = vpop.permute.xlu0 %5237
    %5241 = vset.pattern.permute.xlu0 0
    %5242 = vperm.xlu0 %5241, %v5004
    %v5243 = vpop.permute.xlu0 %5242
    %5246 = vset.pattern.permute.xlu0 0
    %5247 = vperm.xlu0 %5246, %v5005
    %v5248 = vpop.permute.xlu0 %5247
    %5251 = vset.pattern.permute.xlu0 0
    %5252 = vperm.xlu0 %5251, %v5006
    %v5253 = vpop.permute.xlu0 %5252
    %5256 = vset.pattern.permute.xlu0 0
    %5257 = vperm.xlu0 %5256, %v5007
    %v5258 = vpop.permute.xlu0 %5257
    %5261 = vset.pattern.permute.xlu0 0
    %5262 = vperm.xlu0 %5261, %v5008
    %v5263 = vpop.permute.xlu0 %5262
    %5266 = vset.pattern.permute.xlu0 0
    %5267 = vperm.xlu0 %5266, %v5009
    %v5268 = vpop.permute.xlu0 %5267
    %5271 = vset.pattern.permute.xlu0 0
    %5272 = vperm.xlu0 %5271, %v5010
    %v5273 = vpop.permute.xlu0 %5272
    %5276 = vset.pattern.permute.xlu0 0
    %5277 = vperm.xlu0 %5276, %v5011
    %v5278 = vpop.permute.xlu0 %5277
    %5281 = vset.pattern.permute.xlu0 0
    %5282 = vperm.xlu0 %5281, %v5012
    %v5283 = vpop.permute.xlu0 %5282
    %5286 = vset.pattern.permute.xlu0 0
    %5287 = vperm.xlu0 %5286, %v5013
    %v5288 = vpop.permute.xlu0 %5287
    %5291 = vset.pattern.permute.xlu0 0
    %5292 = vperm.xlu0 %5291, %v5014
    %v5293 = vpop.permute.xlu0 %5292
    %5296 = vset.pattern.permute.xlu0 0
    %5297 = vperm.xlu0 %5296, %v5015
    %v5298 = vpop.permute.xlu0 %5297
    %5301 = vset.pattern.permute.xlu0 0
    %5302 = vperm.xlu0 %5301, %v5016
    %v5303 = vpop.permute.xlu0 %5302
    %5306 = vset.pattern.permute.xlu0 0
    %5307 = vperm.xlu0 %5306, %v5017
    %v5308 = vpop.permute.xlu0 %5307
    %5311 = vset.pattern.permute.xlu0 0
    %5312 = vperm.xlu0 %5311, %v5018
    %v5313 = vpop.permute.xlu0 %5312
    %5316 = vset.pattern.permute.xlu0 0
    %5317 = vperm.xlu0 %5316, %v5019
    %v5318 = vpop.permute.xlu0 %5317
    %5321 = vset.pattern.permute.xlu0 0
    %5322 = vperm.xlu0 %5321, %v5020
    %v5323 = vpop.permute.xlu0 %5322
    %5326 = vset.pattern.permute.xlu0 0
    %5327 = vperm.xlu0 %5326, %v5021
    %v5328 = vpop.permute.xlu0 %5327
    %5331 = vset.pattern.permute.xlu0 0
    %5332 = vperm.xlu0 %5331, %v5022
    %v5333 = vpop.permute.xlu0 %5332
    %5336 = vset.pattern.permute.xlu0 0
    %5337 = vperm.xlu0 %5336, %v5023
    %v5338 = vpop.permute.xlu0 %5337
    %5341 = vset.pattern.permute.xlu0 0
    %5342 = vperm.xlu0 %5341, %v5024
    %v5343 = vpop.permute.xlu0 %5342
    %5346 = vset.pattern.permute.xlu0 0
    %5347 = vperm.xlu0 %5346, %v5025
    %v5348 = vpop.permute.xlu0 %5347
    %5351 = vset.pattern.permute.xlu0 0
    %5352 = vperm.xlu0 %5351, %v5026
    %v5353 = vpop.permute.xlu0 %5352
    %5356 = vset.pattern.permute.xlu0 0
    %5357 = vperm.xlu0 %5356, %v5027
    %v5358 = vpop.permute.xlu0 %5357
    %5361 = vset.pattern.permute.xlu0 0
    %5362 = vperm.xlu0 %5361, %v5028
    %v5363 = vpop.permute.xlu0 %5362
    %5366 = vset.pattern.permute.xlu0 0
    %5367 = vperm.xlu0 %5366, %v5029
    %v5368 = vpop.permute.xlu0 %5367
    %5371 = vset.pattern.permute.xlu0 0
    %5372 = vperm.xlu0 %5371, %v5030
    %v5373 = vpop.permute.xlu0 %5372
    %5376 = vset.pattern.permute.xlu0 0
    %5377 = vperm.xlu0 %5376, %v5031
    %v5378 = vpop.permute.xlu0 %5377
    %5381 = vset.pattern.permute.xlu0 0
    %5382 = vperm.xlu0 %5381, %v5032
    %v5383 = vpop.permute.xlu0 %5382
    %5386 = vset.pattern.permute.xlu0 0
    %5387 = vperm.xlu0 %5386, %v5033
    %v5388 = vpop.permute.xlu0 %5387
    %5391 = vset.pattern.permute.xlu0 0
    %5392 = vperm.xlu0 %5391, %v5034
    %v5393 = vpop.permute.xlu0 %5392
    %5396 = vset.pattern.permute.xlu0 0
    %5397 = vperm.xlu0 %5396, %v5035
    %v5398 = vpop.permute.xlu0 %5397
    %5401 = vset.pattern.permute.xlu0 0
    %5402 = vperm.xlu0 %5401, %v5036
    %v5403 = vpop.permute.xlu0 %5402
    %5406 = vset.pattern.permute.xlu0 0
    %5407 = vperm.xlu0 %5406, %v5037
    %v5408 = vpop.permute.xlu0 %5407
    %5411 = vset.pattern.permute.xlu0 0
    %5412 = vperm.xlu0 %5411, %v5038
    %v5413 = vpop.permute.xlu0 %5412
    %5416 = vset.pattern.permute.xlu0 0
    %5417 = vperm.xlu0 %5416, %v5039
    %v5418 = vpop.permute.xlu0 %5417
    %5421 = vset.pattern.permute.xlu0 0
    %5422 = vperm.xlu0 %5421, %v5040
    %v5423 = vpop.permute.xlu0 %5422
    %5426 = vset.pattern.permute.xlu0 0
    %5427 = vperm.xlu0 %5426, %v5041
    %v5428 = vpop.permute.xlu0 %5427
    %5431 = vset.pattern.permute.xlu0 0
    %5432 = vperm.xlu0 %5431, %v5042
    %v5433 = vpop.permute.xlu0 %5432
    %5436 = vset.pattern.permute.xlu0 0
    %5437 = vperm.xlu0 %5436, %v5043
    %v5438 = vpop.permute.xlu0 %5437
    %5441 = vset.pattern.permute.xlu0 0
    %5442 = vperm.xlu0 %5441, %v5044
    %v5443 = vpop.permute.xlu0 %5442
    %5446 = vset.pattern.permute.xlu0 0
    %5447 = vperm.xlu0 %5446, %v5045
    %v5448 = vpop.permute.xlu0 %5447
    %5451 = vset.pattern.permute.xlu0 0
    %5452 = vperm.xlu0 %5451, %v5046
    %v5453 = vpop.permute.xlu0 %5452
    %5456 = vset.pattern.permute.xlu0 0
    %5457 = vperm.xlu0 %5456, %v5047
    %v5458 = vpop.permute.xlu0 %5457
    %5461 = vset.pattern.permute.xlu0 0
    %5462 = vperm.xlu0 %5461, %v5048
    %v5463 = vpop.permute.xlu0 %5462
    %5466 = vset.pattern.permute.xlu0 0
    %5467 = vperm.xlu0 %5466, %v5049
    %v5468 = vpop.permute.xlu0 %5467
    %5471 = vset.pattern.permute.xlu0 0
    %5472 = vperm.xlu0 %5471, %v5050
    %v5473 = vpop.permute.xlu0 %5472
    %5476 = vset.pattern.permute.xlu0 0
    %5477 = vperm.xlu0 %5476, %v5051
    %v5478 = vpop.permute.xlu0 %5477
    %5481 = vset.pattern.permute.xlu0 0
    %5482 = vperm.xlu0 %5481, %v5052
    %v5483 = vpop.permute.xlu0 %5482
    %5486 = vset.pattern.permute.xlu0 0
    %5487 = vperm.xlu0 %5486, %v5053
    %v5488 = vpop.permute.xlu0 %5487
    %5491 = vset.pattern.permute.xlu0 0
    %5492 = vperm.xlu0 %5491, %v5054
    %v5493 = vpop.permute.xlu0 %5492
    %5496 = vset.pattern.permute.xlu0 0
    %5497 = vperm.xlu0 %5496, %v5055
    %v5498 = vpop.permute.xlu0 %5497
    %5501 = vset.pattern.permute.xlu0 0
    %5502 = vperm.xlu0 %5501, %v5056
    %v5503 = vpop.permute.xlu0 %5502
    %5506 = vset.pattern.permute.xlu0 0
    %5507 = vperm.xlu0 %5506, %v5057
    %v5508 = vpop.permute.xlu0 %5507
    %5511 = vset.pattern.permute.xlu0 0
    %5512 = vperm.xlu0 %5511, %v5058
    %v5513 = vpop.permute.xlu0 %5512
    %5516 = vset.pattern.permute.xlu0 0
    %5517 = vperm.xlu0 %5516, %v5059
    %v5518 = vpop.permute.xlu0 %5517
    %5521 = vset.pattern.permute.xlu0 0
    %5522 = vperm.xlu0 %5521, %v5060
    %v5523 = vpop.permute.xlu0 %5522
    %5526 = vset.pattern.permute.xlu0 0
    %5527 = vperm.xlu0 %5526, %v5061
    %v5528 = vpop.permute.xlu0 %5527
    %5531 = vset.pattern.permute.xlu0 0
    %5532 = vperm.xlu0 %5531, %v5062
    %v5533 = vpop.permute.xlu0 %5532
    %5536 = vset.pattern.permute.xlu0 0
    %5537 = vperm.xlu0 %5536, %v5063
    %v5538 = vpop.permute.xlu0 %5537
    %5541 = vset.pattern.permute.xlu0 0
    %5542 = vperm.xlu0 %5541, %v5064
    %v5543 = vpop.permute.xlu0 %5542
    %5546 = vset.pattern.permute.xlu0 0
    %5547 = vperm.xlu0 %5546, %v5065
    %v5548 = vpop.permute.xlu0 %5547
    %5551 = vset.pattern.permute.xlu0 0
    %5552 = vperm.xlu0 %5551, %v5066
    %v5553 = vpop.permute.xlu0 %5552
    %5556 = vset.pattern.permute.xlu0 0
    %5557 = vperm.xlu0 %5556, %v5067
    %v5558 = vpop.permute.xlu0 %5557
    %5561 = vset.pattern.permute.xlu0 0
    %5562 = vperm.xlu0 %5561, %v5068
    %v5563 = vpop.permute.xlu0 %5562
    %5566 = vset.pattern.permute.xlu0 0
    %5567 = vperm.xlu0 %5566, %v5069
    %v5568 = vpop.permute.xlu0 %5567
    %5571 = vset.pattern.permute.xlu0 0
    %5572 = vperm.xlu0 %5571, %v5070
    %v5573 = vpop.permute.xlu0 %5572
    %5576 = vset.pattern.permute.xlu0 0
    %5577 = vperm.xlu0 %5576, %v5071
    %v5578 = vpop.permute.xlu0 %5577
    %5581 = vset.pattern.permute.xlu0 0
    %5582 = vperm.xlu0 %5581, %v5072
    %v5583 = vpop.permute.xlu0 %5582
    %5586 = vset.pattern.permute.xlu0 0
    %5587 = vperm.xlu0 %5586, %v5073
    %v5588 = vpop.permute.xlu0 %5587
    %5591 = vset.pattern.permute.xlu0 0
    %5592 = vperm.xlu0 %5591, %v5074
    %v5593 = vpop.permute.xlu0 %5592
    %5596 = vset.pattern.permute.xlu0 0
    %5597 = vperm.xlu0 %5596, %v5075
    %v5598 = vpop.permute.xlu0 %5597
    %5601 = vset.pattern.permute.xlu0 0
    %5602 = vperm.xlu0 %5601, %v5076
    %v5603 = vpop.permute.xlu0 %5602
    %5606 = vset.pattern.permute.xlu0 0
    %5607 = vperm.xlu0 %5606, %v5077
    %v5608 = vpop.permute.xlu0 %5607
    %5611 = vset.pattern.permute.xlu0 0
    %5612 = vperm.xlu0 %5611, %v5078
    %v5613 = vpop.permute.xlu0 %5612
    %5616 = vset.pattern.permute.xlu0 0
    %5617 = vperm.xlu0 %5616, %v5079
    %v5618 = vpop.permute.xlu0 %5617
    %5621 = vset.pattern.permute.xlu0 0
    %5622 = vperm.xlu0 %5621, %v5080
    %v5623 = vpop.permute.xlu0 %5622
    %5626 = vset.pattern.permute.xlu0 0
    %5627 = vperm.xlu0 %5626, %v5081
    %v5628 = vpop.permute.xlu0 %5627
    %5631 = vset.pattern.permute.xlu0 0
    %5632 = vperm.xlu0 %5631, %v5082
    %v5633 = vpop.permute.xlu0 %5632
    %5636 = vset.pattern.permute.xlu0 0
    %5637 = vperm.xlu0 %5636, %v5083
    %v5638 = vpop.permute.xlu0 %5637
    %5641 = vset.pattern.permute.xlu0 0
    %5642 = vperm.xlu0 %5641, %v5084
    %v5643 = vpop.permute.xlu0 %5642
    %5646 = vset.pattern.permute.xlu0 0
    %5647 = vperm.xlu0 %5646, %v5085
    %v5648 = vpop.permute.xlu0 %5647
    %5651 = vset.pattern.permute.xlu0 0
    %5652 = vperm.xlu0 %5651, %v5086
    %v5653 = vpop.permute.xlu0 %5652
    %5656 = vset.pattern.permute.xlu0 0
    %5657 = vperm.xlu0 %5656, %v5087
    %v5658 = vpop.permute.xlu0 %5657
    %5661 = vset.pattern.permute.xlu0 0
    %5662 = vperm.xlu0 %5661, %v5088
    %v5663 = vpop.permute.xlu0 %5662
    %5666 = vset.pattern.permute.xlu0 0
    %5667 = vperm.xlu0 %5666, %v5089
    %v5668 = vpop.permute.xlu0 %5667
    %5671 = vset.pattern.permute.xlu0 0
    %5672 = vperm.xlu0 %5671, %v5090
    %v5673 = vpop.permute.xlu0 %5672
    %5676 = vset.pattern.permute.xlu0 0
    %5677 = vperm.xlu0 %5676, %v5091
    %v5678 = vpop.permute.xlu0 %5677
    %5681 = vset.pattern.permute.xlu0 0
    %5682 = vperm.xlu0 %5681, %v5092
    %v5683 = vpop.permute.xlu0 %5682
    %5686 = vset.pattern.permute.xlu0 0
    %5687 = vperm.xlu0 %5686, %v5093
    %v5688 = vpop.permute.xlu0 %5687
    %5691 = vset.pattern.permute.xlu0 0
    %5692 = vperm.xlu0 %5691, %v5094
    %v5693 = vpop.permute.xlu0 %5692
    %5696 = vset.pattern.permute.xlu0 0
    %5697 = vperm.xlu0 %5696, %v5095
    %v5698 = vpop.permute.xlu0 %5697
    %5701 = vset.pattern.permute.xlu0 0
    %5702 = vperm.xlu0 %5701, %v5096
    %v5703 = vpop.permute.xlu0 %5702
    %5706 = vset.pattern.permute.xlu0 0
    %5707 = vperm.xlu0 %5706, %v5097
    %v5708 = vpop.permute.xlu0 %5707
    %5711 = vset.pattern.permute.xlu0 0
    %5712 = vperm.xlu0 %5711, %v5098
    %v5713 = vpop.permute.xlu0 %5712
    %5716 = vset.pattern.permute.xlu0 0
    %5717 = vperm.xlu0 %5716, %v5099
    %v5718 = vpop.permute.xlu0 %5717
    %5721 = vset.pattern.permute.xlu0 0
    %5722 = vperm.xlu0 %5721, %v5100
    %v5723 = vpop.permute.xlu0 %5722
    %5726 = vset.pattern.permute.xlu0 0
    %5727 = vperm.xlu0 %5726, %v5101
    %v5728 = vpop.permute.xlu0 %5727
    %5731 = vset.pattern.permute.xlu0 0
    %5732 = vperm.xlu0 %5731, %v5102
    %v5733 = vpop.permute.xlu0 %5732
    %5736 = vset.pattern.permute.xlu0 0
    %5737 = vperm.xlu0 %5736, %v5103
    %v5738 = vpop.permute.xlu0 %5737
    %5741 = vset.pattern.permute.xlu0 0
    %5742 = vperm.xlu0 %5741, %v5104
    %v5743 = vpop.permute.xlu0 %5742
    %v5745 = vmul.f32 %v4339, %v5108
    %v5746 = vmul.f32 %v4344, %v5113
    %v5747 = vmul.f32 %v4349, %v5118
    %v5748 = vmul.f32 %v4354, %v5123
    %v5749 = vmul.f32 %v4359, %v5128
    %v5750 = vmul.f32 %v4364, %v5133
    %v5751 = vmul.f32 %v4369, %v5138
    %v5752 = vmul.f32 %v4374, %v5143
    %v5753 = vmul.f32 %v4379, %v5148
    %v5754 = vmul.f32 %v4384, %v5153
    %v5755 = vmul.f32 %v4389, %v5158
    %v5756 = vmul.f32 %v4394, %v5163
    %v5757 = vmul.f32 %v4399, %v5168
    %v5758 = vmul.f32 %v4404, %v5173
    %v5759 = vmul.f32 %v4409, %v5178
    %v5760 = vmul.f32 %v4414, %v5183
    %v5761 = vmul.f32 %v4419, %v5188
    %v5762 = vmul.f32 %v4424, %v5193
    %v5763 = vmul.f32 %v4429, %v5198
    %v5764 = vmul.f32 %v4434, %v5203
    %v5765 = vmul.f32 %v4439, %v5208
    %v5766 = vmul.f32 %v4444, %v5213
    %v5767 = vmul.f32 %v4449, %v5218
    %v5768 = vmul.f32 %v4454, %v5223
    %v5769 = vmul.f32 %v4459, %v5228
    %v5770 = vmul.f32 %v4464, %v5233
    %v5771 = vmul.f32 %v4469, %v5238
    %v5772 = vmul.f32 %v4474, %v5243
    %v5773 = vmul.f32 %v4479, %v5248
    %v5774 = vmul.f32 %v4484, %v5253
    %v5775 = vmul.f32 %v4489, %v5258
    %v5776 = vmul.f32 %v4494, %v5263
    %v5777 = vmul.f32 %v4499, %v5268
    %v5778 = vmul.f32 %v4504, %v5273
    %v5779 = vmul.f32 %v4509, %v5278
    %v5780 = vmul.f32 %v4514, %v5283
    %v5781 = vmul.f32 %v4519, %v5288
    %v5782 = vmul.f32 %v4524, %v5293
    %v5783 = vmul.f32 %v4529, %v5298
    %v5784 = vmul.f32 %v4534, %v5303
    %v5785 = vmul.f32 %v4539, %v5308
    %v5786 = vmul.f32 %v4544, %v5313
    %v5787 = vmul.f32 %v4549, %v5318
    %v5788 = vmul.f32 %v4554, %v5323
    %v5789 = vmul.f32 %v4559, %v5328
    %v5790 = vmul.f32 %v4564, %v5333
    %v5791 = vmul.f32 %v4569, %v5338
    %v5792 = vmul.f32 %v4574, %v5343
    %v5793 = vmul.f32 %v4579, %v5348
    %v5794 = vmul.f32 %v4584, %v5353
    %v5795 = vmul.f32 %v4589, %v5358
    %v5796 = vmul.f32 %v4594, %v5363
    %v5797 = vmul.f32 %v4599, %v5368
    %v5798 = vmul.f32 %v4604, %v5373
    %v5799 = vmul.f32 %v4609, %v5378
    %v5800 = vmul.f32 %v4614, %v5383
    %v5801 = vmul.f32 %v4619, %v5388
    %v5802 = vmul.f32 %v4624, %v5393
    %v5803 = vmul.f32 %v4629, %v5398
    %v5804 = vmul.f32 %v4634, %v5403
    %v5805 = vmul.f32 %v4639, %v5408
    %v5806 = vmul.f32 %v4644, %v5413
    %v5807 = vmul.f32 %v4649, %v5418
    %v5808 = vmul.f32 %v4654, %v5423
    %v5809 = vmul.f32 %v4659, %v5428
    %v5810 = vmul.f32 %v4664, %v5433
    %v5811 = vmul.f32 %v4669, %v5438
    %v5812 = vmul.f32 %v4674, %v5443
    %v5813 = vmul.f32 %v4679, %v5448
    %v5814 = vmul.f32 %v4684, %v5453
    %v5815 = vmul.f32 %v4689, %v5458
    %v5816 = vmul.f32 %v4694, %v5463
    %v5817 = vmul.f32 %v4699, %v5468
    %v5818 = vmul.f32 %v4704, %v5473
    %v5819 = vmul.f32 %v4709, %v5478
    %v5820 = vmul.f32 %v4714, %v5483
    %v5821 = vmul.f32 %v4719, %v5488
    %v5822 = vmul.f32 %v4724, %v5493
    %v5823 = vmul.f32 %v4729, %v5498
    %v5824 = vmul.f32 %v4734, %v5503
    %v5825 = vmul.f32 %v4739, %v5508
    %v5826 = vmul.f32 %v4744, %v5513
    %v5827 = vmul.f32 %v4749, %v5518
    %v5828 = vmul.f32 %v4754, %v5523
    %v5829 = vmul.f32 %v4759, %v5528
    %v5830 = vmul.f32 %v4764, %v5533
    %v5831 = vmul.f32 %v4769, %v5538
    %v5832 = vmul.f32 %v4774, %v5543
    %v5833 = vmul.f32 %v4779, %v5548
    %v5834 = vmul.f32 %v4784, %v5553
    %v5835 = vmul.f32 %v4789, %v5558
    %v5836 = vmul.f32 %v4794, %v5563
    %v5837 = vmul.f32 %v4799, %v5568
    %v5838 = vmul.f32 %v4804, %v5573
    %v5839 = vmul.f32 %v4809, %v5578
    %v5840 = vmul.f32 %v4814, %v5583
    %v5841 = vmul.f32 %v4819, %v5588
    %v5842 = vmul.f32 %v4824, %v5593
    %v5843 = vmul.f32 %v4829, %v5598
    %v5844 = vmul.f32 %v4834, %v5603
    %v5845 = vmul.f32 %v4839, %v5608
    %v5846 = vmul.f32 %v4844, %v5613
    %v5847 = vmul.f32 %v4849, %v5618
    %v5848 = vmul.f32 %v4854, %v5623
    %v5849 = vmul.f32 %v4859, %v5628
    %v5850 = vmul.f32 %v4864, %v5633
    %v5851 = vmul.f32 %v4869, %v5638
    %v5852 = vmul.f32 %v4874, %v5643
    %v5853 = vmul.f32 %v4879, %v5648
    %v5854 = vmul.f32 %v4884, %v5653
    %v5855 = vmul.f32 %v4889, %v5658
    %v5856 = vmul.f32 %v4894, %v5663
    %v5857 = vmul.f32 %v4899, %v5668
    %v5858 = vmul.f32 %v4904, %v5673
    %v5859 = vmul.f32 %v4909, %v5678
    %v5860 = vmul.f32 %v4914, %v5683
    %v5861 = vmul.f32 %v4919, %v5688
    %v5862 = vmul.f32 %v4924, %v5693
    %v5863 = vmul.f32 %v4929, %v5698
    %v5864 = vmul.f32 %v4934, %v5703
    %v5865 = vmul.f32 %v4939, %v5708
    %v5866 = vmul.f32 %v4944, %v5713
    %v5867 = vmul.f32 %v4949, %v5718
    %v5868 = vmul.f32 %v4954, %v5723
    %v5869 = vmul.f32 %v4959, %v5728
    %v5870 = vmul.f32 %v4964, %v5733
    %v5871 = vmul.f32 %v4969, %v5738
    %v5872 = vmul.f32 %v4974, %v5743
    %v5873 = vld [vmem:[%s2] sm:$0xff]
    %v5874 = vld [vmem:[%s2 + $0x8] sm:$0xff]
    %v5875 = vld [vmem:[%s2 + $0x10] sm:$0xff]
    %v5876 = vld [vmem:[%s2 + $0x18] sm:$0xff]
    %v5877 = vld [vmem:[%s2 + $0x20] sm:$0xff]
    %v5878 = vld [vmem:[%s2 + $0x28] sm:$0xff]
    %v5879 = vld [vmem:[%s2 + $0x30] sm:$0xff]
    %v5880 = vld [vmem:[%s2 + $0x38] sm:$0xff]
    %v5881 = vld [vmem:[%s2 + $0x40] sm:$0xff]
    %v5882 = vld [vmem:[%s2 + $0x48] sm:$0xff]
    %v5883 = vld [vmem:[%s2 + $0x50] sm:$0xff]
    %v5884 = vld [vmem:[%s2 + $0x58] sm:$0xff]
    %v5885 = vld [vmem:[%s2 + $0x60] sm:$0xff]
    %v5886 = vld [vmem:[%s2 + $0x68] sm:$0xff]
    %v5887 = vld [vmem:[%s2 + $0x70] sm:$0xff]
    %v5888 = vld [vmem:[%s2 + $0x78] sm:$0xff]
    %v5889 = vld [vmem:[%s2 + $0x80] sm:$0xff]
    %v5890 = vld [vmem:[%s2 + $0x88] sm:$0xff]
    %v5891 = vld [vmem:[%s2 + $0x90] sm:$0xff]
    %v5892 = vld [vmem:[%s2 + $0x98] sm:$0xff]
    %v5893 = vld [vmem:[%s2 + $0xa0] sm:$0xff]
    %v5894 = vld [vmem:[%s2 + $0xa8] sm:$0xff]
    %v5895 = vld [vmem:[%s2 + $0xb0] sm:$0xff]
    %v5896 = vld [vmem:[%s2 + $0xb8] sm:$0xff]
    %v5897 = vld [vmem:[%s2 + $0xc0] sm:$0xff]
    %v5898 = vld [vmem:[%s2 + $0xc8] sm:$0xff]
    %v5899 = vld [vmem:[%s2 + $0xd0] sm:$0xff]
    %v5900 = vld [vmem:[%s2 + $0xd8] sm:$0xff]
    %v5901 = vld [vmem:[%s2 + $0xe0] sm:$0xff]
    %v5902 = vld [vmem:[%s2 + $0xe8] sm:$0xff]
    %v5903 = vld [vmem:[%s2 + $0xf0] sm:$0xff]
    %v5904 = vld [vmem:[%s2 + $0xf8] sm:$0xff]
    %v5905 = vld [vmem:[%s2 + $0x100] sm:$0xff]
    %v5906 = vld [vmem:[%s2 + $0x108] sm:$0xff]
    %v5907 = vld [vmem:[%s2 + $0x110] sm:$0xff]
    %v5908 = vld [vmem:[%s2 + $0x118] sm:$0xff]
    %v5909 = vld [vmem:[%s2 + $0x120] sm:$0xff]
    %v5910 = vld [vmem:[%s2 + $0x128] sm:$0xff]
    %v5911 = vld [vmem:[%s2 + $0x130] sm:$0xff]
    %v5912 = vld [vmem:[%s2 + $0x138] sm:$0xff]
    %v5913 = vld [vmem:[%s2 + $0x140] sm:$0xff]
    %v5914 = vld [vmem:[%s2 + $0x148] sm:$0xff]
    %v5915 = vld [vmem:[%s2 + $0x150] sm:$0xff]
    %v5916 = vld [vmem:[%s2 + $0x158] sm:$0xff]
    %v5917 = vld [vmem:[%s2 + $0x160] sm:$0xff]
    %v5918 = vld [vmem:[%s2 + $0x168] sm:$0xff]
    %v5919 = vld [vmem:[%s2 + $0x170] sm:$0xff]
    %v5920 = vld [vmem:[%s2 + $0x178] sm:$0xff]
    %v5921 = vld [vmem:[%s2 + $0x180] sm:$0xff]
    %v5922 = vld [vmem:[%s2 + $0x188] sm:$0xff]
    %v5923 = vld [vmem:[%s2 + $0x190] sm:$0xff]
    %v5924 = vld [vmem:[%s2 + $0x198] sm:$0xff]
    %v5925 = vld [vmem:[%s2 + $0x1a0] sm:$0xff]
    %v5926 = vld [vmem:[%s2 + $0x1a8] sm:$0xff]
    %v5927 = vld [vmem:[%s2 + $0x1b0] sm:$0xff]
    %v5928 = vld [vmem:[%s2 + $0x1b8] sm:$0xff]
    %v5929 = vld [vmem:[%s2 + $0x1c0] sm:$0xff]
    %v5930 = vld [vmem:[%s2 + $0x1c8] sm:$0xff]
    %v5931 = vld [vmem:[%s2 + $0x1d0] sm:$0xff]
    %v5932 = vld [vmem:[%s2 + $0x1d8] sm:$0xff]
    %v5933 = vld [vmem:[%s2 + $0x1e0] sm:$0xff]
    %v5934 = vld [vmem:[%s2 + $0x1e8] sm:$0xff]
    %v5935 = vld [vmem:[%s2 + $0x1f0] sm:$0xff]
    %v5936 = vld [vmem:[%s2 + $0x1f8] sm:$0xff]
    %v5937 = vld [vmem:[%s2 + $0x200] sm:$0xff]
    %v5938 = vld [vmem:[%s2 + $0x208] sm:$0xff]
    %v5939 = vld [vmem:[%s2 + $0x210] sm:$0xff]
    %v5940 = vld [vmem:[%s2 + $0x218] sm:$0xff]
    %v5941 = vld [vmem:[%s2 + $0x220] sm:$0xff]
    %v5942 = vld [vmem:[%s2 + $0x228] sm:$0xff]
    %v5943 = vld [vmem:[%s2 + $0x230] sm:$0xff]
    %v5944 = vld [vmem:[%s2 + $0x238] sm:$0xff]
    %v5945 = vld [vmem:[%s2 + $0x240] sm:$0xff]
    %v5946 = vld [vmem:[%s2 + $0x248] sm:$0xff]
    %v5947 = vld [vmem:[%s2 + $0x250] sm:$0xff]
    %v5948 = vld [vmem:[%s2 + $0x258] sm:$0xff]
    %v5949 = vld [vmem:[%s2 + $0x260] sm:$0xff]
    %v5950 = vld [vmem:[%s2 + $0x268] sm:$0xff]
    %v5951 = vld [vmem:[%s2 + $0x270] sm:$0xff]
    %v5952 = vld [vmem:[%s2 + $0x278] sm:$0xff]
    %v5953 = vld [vmem:[%s2 + $0x280] sm:$0xff]
    %v5954 = vld [vmem:[%s2 + $0x288] sm:$0xff]
    %v5955 = vld [vmem:[%s2 + $0x290] sm:$0xff]
    %v5956 = vld [vmem:[%s2 + $0x298] sm:$0xff]
    %v5957 = vld [vmem:[%s2 + $0x2a0] sm:$0xff]
    %v5958 = vld [vmem:[%s2 + $0x2a8] sm:$0xff]
    %v5959 = vld [vmem:[%s2 + $0x2b0] sm:$0xff]
    %v5960 = vld [vmem:[%s2 + $0x2b8] sm:$0xff]
    %v5961 = vld [vmem:[%s2 + $0x2c0] sm:$0xff]
    %v5962 = vld [vmem:[%s2 + $0x2c8] sm:$0xff]
    %v5963 = vld [vmem:[%s2 + $0x2d0] sm:$0xff]
    %v5964 = vld [vmem:[%s2 + $0x2d8] sm:$0xff]
    %v5965 = vld [vmem:[%s2 + $0x2e0] sm:$0xff]
    %v5966 = vld [vmem:[%s2 + $0x2e8] sm:$0xff]
    %v5967 = vld [vmem:[%s2 + $0x2f0] sm:$0xff]
    %v5968 = vld [vmem:[%s2 + $0x2f8] sm:$0xff]
    %v5969 = vld [vmem:[%s2 + $0x300] sm:$0xff]
    %v5970 = vld [vmem:[%s2 + $0x308] sm:$0xff]
    %v5971 = vld [vmem:[%s2 + $0x310] sm:$0xff]
    %v5972 = vld [vmem:[%s2 + $0x318] sm:$0xff]
    %v5973 = vld [vmem:[%s2 + $0x320] sm:$0xff]
    %v5974 = vld [vmem:[%s2 + $0x328] sm:$0xff]
    %v5975 = vld [vmem:[%s2 + $0x330] sm:$0xff]
    %v5976 = vld [vmem:[%s2 + $0x338] sm:$0xff]
    %v5977 = vld [vmem:[%s2 + $0x340] sm:$0xff]
    %v5978 = vld [vmem:[%s2 + $0x348] sm:$0xff]
    %v5979 = vld [vmem:[%s2 + $0x350] sm:$0xff]
    %v5980 = vld [vmem:[%s2 + $0x358] sm:$0xff]
    %v5981 = vld [vmem:[%s2 + $0x360] sm:$0xff]
    %v5982 = vld [vmem:[%s2 + $0x368] sm:$0xff]
    %v5983 = vld [vmem:[%s2 + $0x370] sm:$0xff]
    %v5984 = vld [vmem:[%s2 + $0x378] sm:$0xff]
    %v5985 = vld [vmem:[%s2 + $0x380] sm:$0xff]
    %v5986 = vld [vmem:[%s2 + $0x388] sm:$0xff]
    %v5987 = vld [vmem:[%s2 + $0x390] sm:$0xff]
    %v5988 = vld [vmem:[%s2 + $0x398] sm:$0xff]
    %v5989 = vld [vmem:[%s2 + $0x3a0] sm:$0xff]
    %v5990 = vld [vmem:[%s2 + $0x3a8] sm:$0xff]
    %v5991 = vld [vmem:[%s2 + $0x3b0] sm:$0xff]
    %v5992 = vld [vmem:[%s2 + $0x3b8] sm:$0xff]
    %v5993 = vld [vmem:[%s2 + $0x3c0] sm:$0xff]
    %v5994 = vld [vmem:[%s2 + $0x3c8] sm:$0xff]
    %v5995 = vld [vmem:[%s2 + $0x3d0] sm:$0xff]
    %v5996 = vld [vmem:[%s2 + $0x3d8] sm:$0xff]
    %v5997 = vld [vmem:[%s2 + $0x3e0] sm:$0xff]
    %v5998 = vld [vmem:[%s2 + $0x3e8] sm:$0xff]
    %v5999 = vld [vmem:[%s2 + $0x3f0] sm:$0xff]
    %v6000 = vld [vmem:[%s2 + $0x3f8] sm:$0xff]
    %6001 = vmatprep.subr.mxu0 0.0
    %6002 = vmatpush1.msra.mxu0 %v5745
    %6003 = vmatprep.subr.mxu0 0.0
    %6004 = vmatpush1.msra.mxu0 %v5746
    %6005 = vmatprep.subr.mxu0 0.0
    %6006 = vmatpush1.msra.mxu0 %v5747
    %6007 = vmatprep.subr.mxu0 0.0
    %6008 = vmatpush1.msra.mxu0 %v5748
    %6009 = vmatprep.subr.mxu0 0.0
    %6010 = vmatpush1.msra.mxu0 %v5749
    %6011 = vmatprep.subr.mxu0 0.0
    %6012 = vmatpush1.msra.mxu0 %v5750
    %6013 = vmatprep.subr.mxu0 0.0
    %6014 = vmatpush1.msra.mxu0 %v5751
    %6015 = vmatprep.subr.mxu0 0.0
    %6016 = vmatpush1.msra.mxu0 %v5752
    %6017 = vmatprep.subr.mxu0 0.0
    %6018 = vmatpush1.msra.mxu0 %v5753
    %6019 = vmatprep.subr.mxu0 0.0
    %6020 = vmatpush1.msra.mxu0 %v5754
    %6021 = vmatprep.subr.mxu0 0.0
    %6022 = vmatpush1.msra.mxu0 %v5755
    %6023 = vmatprep.subr.mxu0 0.0
    %6024 = vmatpush1.msra.mxu0 %v5756
    %6025 = vmatprep.subr.mxu0 0.0
    %6026 = vmatpush1.msra.mxu0 %v5757
    %6027 = vmatprep.subr.mxu0 0.0
    %6028 = vmatpush1.msra.mxu0 %v5758
    %6029 = vmatprep.subr.mxu0 0.0
    %6030 = vmatpush1.msra.mxu0 %v5759
    %6031 = vmatprep.subr.mxu0 0.0
    %6032 = vmatpush1.msra.mxu0 %v5760
    %6033 = vmatprep.subr.mxu0 0.0
    %6034 = vmatpush1.msra.mxu0 %v5761
    %6035 = vmatprep.subr.mxu0 0.0
    %6036 = vmatpush1.msra.mxu0 %v5762
    %6037 = vmatprep.subr.mxu0 0.0
    %6038 = vmatpush1.msra.mxu0 %v5763
    %6039 = vmatprep.subr.mxu0 0.0
    %6040 = vmatpush1.msra.mxu0 %v5764
    %6041 = vmatprep.subr.mxu0 0.0
    %6042 = vmatpush1.msra.mxu0 %v5765
    %6043 = vmatprep.subr.mxu0 0.0
    %6044 = vmatpush1.msra.mxu0 %v5766
    %6045 = vmatprep.subr.mxu0 0.0
    %6046 = vmatpush1.msra.mxu0 %v5767
    %6047 = vmatprep.subr.mxu0 0.0
    %6048 = vmatpush1.msra.mxu0 %v5768
    %6049 = vmatprep.subr.mxu0 0.0
    %6050 = vmatpush1.msra.mxu0 %v5769
    %6051 = vmatprep.subr.mxu0 0.0
    %6052 = vmatpush1.msra.mxu0 %v5770
    %6053 = vmatprep.subr.mxu0 0.0
    %6054 = vmatpush1.msra.mxu0 %v5771
    %6055 = vmatprep.subr.mxu0 0.0
    %6056 = vmatpush1.msra.mxu0 %v5772
    %6057 = vmatprep.subr.mxu0 0.0
    %6058 = vmatpush1.msra.mxu0 %v5773
    %6059 = vmatprep.subr.mxu0 0.0
    %6060 = vmatpush1.msra.mxu0 %v5774
    %6061 = vmatprep.subr.mxu0 0.0
    %6062 = vmatpush1.msra.mxu0 %v5775
    %6063 = vmatprep.subr.mxu0 0.0
    %6064 = vmatpush1.msra.mxu0 %v5776
    %6065 = vmatprep.mubr.f32.mxu0 %v5874
    %6066 = vmatmul.mubr.f32.gmra.mrb[0].mxu0 %v5873
    %v6067 = vpop.f32.mrb[0].mxu0
    %v6068 = vadd.f32 0.0, %v6067
    %v6069 = vpop.f32.mrb[0].mxu0
    %6070 = vmatprep.mubr.f32.mxu0 %v5882
    %6071 = vmatmul.mubr.f32.gmra.mrb[0].mxu0 %v5881
    %v6072 = vpop.f32.mrb[0].mxu0
    %v6073 = vadd.f32 0.0, %v6072
    %v6074 = vpop.f32.mrb[0].mxu0
    %6075 = vmatprep.mubr.f32.mxu0 %v5890
    %6076 = vmatmul.mubr.f32.gmra.mrb[0].mxu0 %v5889
    %v6077 = vpop.f32.mrb[0].mxu0
    %v6078 = vadd.f32 0.0, %v6077
    %v6079 = vpop.f32.mrb[0].mxu0
    %6080 = vmatprep.mubr.f32.mxu0 %v5898
    %6081 = vmatmul.mubr.f32.gmra.mrb[0].mxu0 %v5897
    %v6082 = vpop.f32.mrb[0].mxu0
    %v6083 = vadd.f32 0.0, %v6082
    %v6084 = vpop.f32.mrb[0].mxu0
    %6085 = vmatprep.mubr.f32.mxu0 %v5906
    %6086 = vmatmul.mubr.f32.gmra.mrb[0].mxu0 %v5905
    %v6087 = vpop.f32.mrb[0].mxu0
    %v6088 = vadd.f32 0.0, %v6087
    %v6089 = vpop.f32.mrb[0].mxu0
    %6090 = vmatprep.mubr.f32.mxu0 %v5914
    %6091 = vmatmul.mubr.f32.gmra.mrb[0].mxu0 %v5913
    %v6092 = vpop.f32.mrb[0].mxu0
    %v6093 = vadd.f32 0.0, %v6092
    %v6094 = vpop.f32.mrb[0].mxu0
    %6095 = vmatprep.mubr.f32.mxu0 %v5922
    %6096 = vmatmul.mubr.f32.gmra.mrb[0].mxu0 %v5921
    %v6097 = vpop.f32.mrb[0].mxu0
    %v6098 = vadd.f32 0.0, %v6097
    %v6099 = vpop.f32.mrb[0].mxu0
    %6100 = vmatprep.mubr.f32.mxu0 %v5930
    %6101 = vmatmul.mubr.f32.gmra.mrb[0].mxu0 %v5929
    %v6102 = vpop.f32.mrb[0].mxu0
    %v6103 = vadd.f32 0.0, %v6102
    %v6104 = vpop.f32.mrb[0].mxu0
    %6105 = vmatprep.mubr.f32.mxu0 %v5938
    %6106 = vmatmul.mubr.f32.gmra.mrb[0].mxu0 %v5937
    %v6107 = vpop.f32.mrb[0].mxu0
    %v6108 = vadd.f32 0.0, %v6107
    %v6109 = vpop.f32.mrb[0].mxu0
    %6110 = vmatprep.mubr.f32.mxu0 %v5946
    %6111 = vmatmul.mubr.f32.gmra.mrb[0].mxu0 %v5945
    %v6112 = vpop.f32.mrb[0].mxu0
    %v6113 = vadd.f32 0.0, %v6112
    %v6114 = vpop.f32.mrb[0].mxu0
    %6115 = vmatprep.mubr.f32.mxu0 %v5954
    %6116 = vmatmul.mubr.f32.gmra.mrb[0].mxu0 %v5953
    %v6117 = vpop.f32.mrb[0].mxu0
    %v6118 = vadd.f32 0.0, %v6117
    %v6119 = vpop.f32.mrb[0].mxu0
    %6120 = vmatprep.mubr.f32.mxu0 %v5962
    %6121 = vmatmul.mubr.f32.gmra.mrb[0].mxu0 %v5961
    %v6122 = vpop.f32.mrb[0].mxu0
    %v6123 = vadd.f32 0.0, %v6122
    %v6124 = vpop.f32.mrb[0].mxu0
    %6125 = vmatprep.mubr.f32.mxu0 %v5970
    %6126 = vmatmul.mubr.f32.gmra.mrb[0].mxu0 %v5969
    %v6127 = vpop.f32.mrb[0].mxu0
    %v6128 = vadd.f32 0.0, %v6127
    %v6129 = vpop.f32.mrb[0].mxu0
    %6130 = vmatprep.mubr.f32.mxu0 %v5978
    %6131 = vmatmul.mubr.f32.gmra.mrb[0].mxu0 %v5977
    %v6132 = vpop.f32.mrb[0].mxu0
    %v6133 = vadd.f32 0.0, %v6132
    %v6134 = vpop.f32.mrb[0].mxu0
    %6135 = vmatprep.mubr.f32.mxu0 %v5986
    %6136 = vmatmul.mubr.f32.gmra.mrb[0].mxu0 %v5985
    %v6137 = vpop.f32.mrb[0].mxu0
    %v6138 = vadd.f32 0.0, %v6137
    %v6139 = vpop.f32.mrb[0].mxu0
    %6140 = vmatprep.mubr.f32.mxu0 %v5994
    %6141 = vmatmul.mubr.f32.gmra.mrb[0].mxu0 %v5993
    %v6142 = vpop.f32.mrb[0].mxu0
    %v6143 = vadd.f32 0.0, %v6142
    %v6144 = vpop.f32.mrb[0].mxu0
    %6145 = vdwg.mxu0
    %6146 = vmatprep.subr.mxu0 0.0
    %6147 = vmatpush1.msra.mxu0 %v5777
    %6148 = vmatprep.subr.mxu0 0.0
    %6149 = vmatpush1.msra.mxu0 %v5778
    %6150 = vmatprep.subr.mxu0 0.0
    %6151 = vmatpush1.msra.mxu0 %v5779
    %6152 = vmatprep.subr.mxu0 0.0
    %6153 = vmatpush1.msra.mxu0 %v5780
    %6154 = vmatprep.subr.mxu0 0.0
    %6155 = vmatpush1.msra.mxu0 %v5781
    %6156 = vmatprep.subr.mxu0 0.0
    %6157 = vmatpush1.msra.mxu0 %v5782
    %6158 = vmatprep.subr.mxu0 0.0
    %6159 = vmatpush1.msra.mxu0 %v5783
    %6160 = vmatprep.subr.mxu0 0.0
    %6161 = vmatpush1.msra.mxu0 %v5784
    %6162 = vmatprep.subr.mxu0 0.0
    %6163 = vmatpush1.msra.mxu0 %v5785
    %6164 = vmatprep.subr.mxu0 0.0
    %6165 = vmatpush1.msra.mxu0 %v5786
    %6166 = vmatprep.subr.mxu0 0.0
    %6167 = vmatpush1.msra.mxu0 %v5787
    %6168 = vmatprep.subr.mxu0 0.0
    %6169 = vmatpush1.msra.mxu0 %v5788
    %6170 = vmatprep.subr.mxu0 0.0
    %6171 = vmatpush1.msra.mxu0 %v5789
    %6172 = vmatprep.subr.mxu0 0.0
    %6173 = vmatpush1.msra.mxu0 %v5790
    %6174 = vmatprep.subr.mxu0 0.0
    %6175 = vmatpush1.msra.mxu0 %v5791
    %6176 = vmatprep.subr.mxu0 0.0
    %6177 = vmatpush1.msra.mxu0 %v5792
    %6178 = vmatprep.subr.mxu0 0.0
    %6179 = vmatpush1.msra.mxu0 %v5793
    %6180 = vmatprep.subr.mxu0 0.0
    %6181 = vmatpush1.msra.mxu0 %v5794
    %6182 = vmatprep.subr.mxu0 0.0
    %6183 = vmatpush1.msra.mxu0 %v5795
    %6184 = vmatprep.subr.mxu0 0.0
    %6185 = vmatpush1.msra.mxu0 %v5796
    %6186 = vmatprep.subr.mxu0 0.0
    %6187 = vmatpush1.msra.mxu0 %v5797
    %6188 = vmatprep.subr.mxu0 0.0
    %6189 = vmatpush1.msra.mxu0 %v5798
    %6190 = vmatprep.subr.mxu0 0.0
    %6191 = vmatpush1.msra.mxu0 %v5799
    %6192 = vmatprep.subr.mxu0 0.0
    %6193 = vmatpush1.msra.mxu0 %v5800
    %6194 = vmatprep.subr.mxu0 0.0
    %6195 = vmatpush1.msra.mxu0 %v5801
    %6196 = vmatprep.subr.mxu0 0.0
    %6197 = vmatpush1.msra.mxu0 %v5802
    %6198 = vmatprep.subr.mxu0 0.0
    %6199 = vmatpush1.msra.mxu0 %v5803
    %6200 = vmatprep.subr.mxu0 0.0
    %6201 = vmatpush1.msra.mxu0 %v5804
    %6202 = vmatprep.subr.mxu0 0.0
    %6203 = vmatpush1.msra.mxu0 %v5805
    %6204 = vmatprep.subr.mxu0 0.0
    %6205 = vmatpush1.msra.mxu0 %v5806
    %6206 = vmatprep.subr.mxu0 0.0
    %6207 = vmatpush1.msra.mxu0 %v5807
    %6208 = vmatprep.subr.mxu0 0.0
    %6209 = vmatpush1.msra.mxu0 %v5808
    %6210 = vmatprep.mubr.f32.mxu0 %v5876
    %6211 = vmatmul.mubr.f32.gmra.mrb[0].mxu0 %v5875
    %v6212 = vpop.f32.mrb[0].mxu0
    %v6213 = vadd.f32 %v6068, %v6212
    %v6214 = vpop.f32.mrb[0].mxu0
    %6215 = vmatprep.mubr.f32.mxu0 %v5884
    %6216 = vmatmul.mubr.f32.gmra.mrb[0].mxu0 %v5883
    %v6217 = vpop.f32.mrb[0].mxu0
    %v6218 = vadd.f32 %v6073, %v6217
    %v6219 = vpop.f32.mrb[0].mxu0
    %6220 = vmatprep.mubr.f32.mxu0 %v5892
    %6221 = vmatmul.mubr.f32.gmra.mrb[0].mxu0 %v5891
    %v6222 = vpop.f32.mrb[0].mxu0
    %v6223 = vadd.f32 %v6078, %v6222
    %v6224 = vpop.f32.mrb[0].mxu0
    %6225 = vmatprep.mubr.f32.mxu0 %v5900
    %6226 = vmatmul.mubr.f32.gmra.mrb[0].mxu0 %v5899
    %v6227 = vpop.f32.mrb[0].mxu0
    %v6228 = vadd.f32 %v6083, %v6227
    %v6229 = vpop.f32.mrb[0].mxu0
    %6230 = vmatprep.mubr.f32.mxu0 %v5908
    %6231 = vmatmul.mubr.f32.gmra.mrb[0].mxu0 %v5907
    %v6232 = vpop.f32.mrb[0].mxu0
    %v6233 = vadd.f32 %v6088, %v6232
    %v6234 = vpop.f32.mrb[0].mxu0
    %6235 = vmatprep.mubr.f32.mxu0 %v5916
    %6236 = vmatmul.mubr.f32.gmra.mrb[0].mxu0 %v5915
    %v6237 = vpop.f32.mrb[0].mxu0
    %v6238 = vadd.f32 %v6093, %v6237
    %v6239 = vpop.f32.mrb[0].mxu0
    %6240 = vmatprep.mubr.f32.mxu0 %v5924
    %6241 = vmatmul.mubr.f32.gmra.mrb[0].mxu0 %v5923
    %v6242 = vpop.f32.mrb[0].mxu0
    %v6243 = vadd.f32 %v6098, %v6242
    %v6244 = vpop.f32.mrb[0].mxu0
    %6245 = vmatprep.mubr.f32.mxu0 %v5932
    %6246 = vmatmul.mubr.f32.gmra.mrb[0].mxu0 %v5931
    %v6247 = vpop.f32.mrb[0].mxu0
    %v6248 = vadd.f32 %v6103, %v6247
    %v6249 = vpop.f32.mrb[0].mxu0
    %6250 = vmatprep.mubr.f32.mxu0 %v5940
    %6251 = vmatmul.mubr.f32.gmra.mrb[0].mxu0 %v5939
    %v6252 = vpop.f32.mrb[0].mxu0
    %v6253 = vadd.f32 %v6108, %v6252
    %v6254 = vpop.f32.mrb[0].mxu0
    %6255 = vmatprep.mubr.f32.mxu0 %v5948
    %6256 = vmatmul.mubr.f32.gmra.mrb[0].mxu0 %v5947
    %v6257 = vpop.f32.mrb[0].mxu0
    %v6258 = vadd.f32 %v6113, %v6257
    %v6259 = vpop.f32.mrb[0].mxu0
    %6260 = vmatprep.mubr.f32.mxu0 %v5956
    %6261 = vmatmul.mubr.f32.gmra.mrb[0].mxu0 %v5955
    %v6262 = vpop.f32.mrb[0].mxu0
    %v6263 = vadd.f32 %v6118, %v6262
    %v6264 = vpop.f32.mrb[0].mxu0
    %6265 = vmatprep.mubr.f32.mxu0 %v5964
    %6266 = vmatmul.mubr.f32.gmra.mrb[0].mxu0 %v5963
    %v6267 = vpop.f32.mrb[0].mxu0
    %v6268 = vadd.f32 %v6123, %v6267
    %v6269 = vpop.f32.mrb[0].mxu0
    %6270 = vmatprep.mubr.f32.mxu0 %v5972
    %6271 = vmatmul.mubr.f32.gmra.mrb[0].mxu0 %v5971
    %v6272 = vpop.f32.mrb[0].mxu0
    %v6273 = vadd.f32 %v6128, %v6272
    %v6274 = vpop.f32.mrb[0].mxu0
    %6275 = vmatprep.mubr.f32.mxu0 %v5980
    %6276 = vmatmul.mubr.f32.gmra.mrb[0].mxu0 %v5979
    %v6277 = vpop.f32.mrb[0].mxu0
    %v6278 = vadd.f32 %v6133, %v6277
    %v6279 = vpop.f32.mrb[0].mxu0
    %6280 = vmatprep.mubr.f32.mxu0 %v5988
    %6281 = vmatmul.mubr.f32.gmra.mrb[0].mxu0 %v5987
    %v6282 = vpop.f32.mrb[0].mxu0
    %v6283 = vadd.f32 %v6138, %v6282
    %v6284 = vpop.f32.mrb[0].mxu0
    %6285 = vmatprep.mubr.f32.mxu0 %v5996
    %6286 = vmatmul.mubr.f32.gmra.mrb[0].mxu0 %v5995
    %v6287 = vpop.f32.mrb[0].mxu0
    %v6288 = vadd.f32 %v6143, %v6287
    %v6289 = vpop.f32.mrb[0].mxu0
    %6290 = vdwg.mxu0
    %6291 = vmatprep.subr.mxu0 0.0
    %6292 = vmatpush1.msra.mxu0 %v5809
    %6293 = vmatprep.subr.mxu0 0.0
    %6294 = vmatpush1.msra.mxu0 %v5810
    %6295 = vmatprep.subr.mxu0 0.0
    %6296 = vmatpush1.msra.mxu0 %v5811
    %6297 = vmatprep.subr.mxu0 0.0
    %6298 = vmatpush1.msra.mxu0 %v5812
    %6299 = vmatprep.subr.mxu0 0.0
    %6300 = vmatpush1.msra.mxu0 %v5813
    %6301 = vmatprep.subr.mxu0 0.0
    %6302 = vmatpush1.msra.mxu0 %v5814
    %6303 = vmatprep.subr.mxu0 0.0
    %6304 = vmatpush1.msra.mxu0 %v5815
    %6305 = vmatprep.subr.mxu0 0.0
    %6306 = vmatpush1.msra.mxu0 %v5816
    %6307 = vmatprep.subr.mxu0 0.0
    %6308 = vmatpush1.msra.mxu0 %v5817
    %6309 = vmatprep.subr.mxu0 0.0
    %6310 = vmatpush1.msra.mxu0 %v5818
    %6311 = vmatprep.subr.mxu0 0.0
    %6312 = vmatpush1.msra.mxu0 %v5819
    %6313 = vmatprep.subr.mxu0 0.0
    %6314 = vmatpush1.msra.mxu0 %v5820
    %6315 = vmatprep.subr.mxu0 0.0
    %6316 = vmatpush1.msra.mxu0 %v5821
    %6317 = vmatprep.subr.mxu0 0.0
    %6318 = vmatpush1.msra.mxu0 %v5822
    %6319 = vmatprep.subr.mxu0 0.0
    %6320 = vmatpush1.msra.mxu0 %v5823
    %6321 = vmatprep.subr.mxu0 0.0
    %6322 = vmatpush1.msra.mxu0 %v5824
    %6323 = vmatprep.subr.mxu0 0.0
    %6324 = vmatpush1.msra.mxu0 %v5825
    %6325 = vmatprep.subr.mxu0 0.0
    %6326 = vmatpush1.msra.mxu0 %v5826
    %6327 = vmatprep.subr.mxu0 0.0
    %6328 = vmatpush1.msra.mxu0 %v5827
    %6329 = vmatprep.subr.mxu0 0.0
    %6330 = vmatpush1.msra.mxu0 %v5828
    %6331 = vmatprep.subr.mxu0 0.0
    %6332 = vmatpush1.msra.mxu0 %v5829
    %6333 = vmatprep.subr.mxu0 0.0
    %6334 = vmatpush1.msra.mxu0 %v5830
    %6335 = vmatprep.subr.mxu0 0.0
    %6336 = vmatpush1.msra.mxu0 %v5831
    %6337 = vmatprep.subr.mxu0 0.0
    %6338 = vmatpush1.msra.mxu0 %v5832
    %6339 = vmatprep.subr.mxu0 0.0
    %6340 = vmatpush1.msra.mxu0 %v5833
    %6341 = vmatprep.subr.mxu0 0.0
    %6342 = vmatpush1.msra.mxu0 %v5834
    %6343 = vmatprep.subr.mxu0 0.0
    %6344 = vmatpush1.msra.mxu0 %v5835
    %6345 = vmatprep.subr.mxu0 0.0
    %6346 = vmatpush1.msra.mxu0 %v5836
    %6347 = vmatprep.subr.mxu0 0.0
    %6348 = vmatpush1.msra.mxu0 %v5837
    %6349 = vmatprep.subr.mxu0 0.0
    %6350 = vmatpush1.msra.mxu0 %v5838
    %6351 = vmatprep.subr.mxu0 0.0
    %6352 = vmatpush1.msra.mxu0 %v5839
    %6353 = vmatprep.subr.mxu0 0.0
    %6354 = vmatpush1.msra.mxu0 %v5840
    %6355 = vmatprep.mubr.f32.mxu0 %v5878
    %6356 = vmatmul.mubr.f32.gmra.mrb[0].mxu0 %v5877
    %v6357 = vpop.f32.mrb[0].mxu0
    %v6358 = vadd.f32 %v6213, %v6357
    %v6359 = vpop.f32.mrb[0].mxu0
    %6360 = vmatprep.mubr.f32.mxu0 %v5886
    %6361 = vmatmul.mubr.f32.gmra.mrb[0].mxu0 %v5885
    %v6362 = vpop.f32.mrb[0].mxu0
    %v6363 = vadd.f32 %v6218, %v6362
    %v6364 = vpop.f32.mrb[0].mxu0
    %6365 = vmatprep.mubr.f32.mxu0 %v5894
    %6366 = vmatmul.mubr.f32.gmra.mrb[0].mxu0 %v5893
    %v6367 = vpop.f32.mrb[0].mxu0
    %v6368 = vadd.f32 %v6223, %v6367
    %v6369 = vpop.f32.mrb[0].mxu0
    %6370 = vmatprep.mubr.f32.mxu0 %v5902
    %6371 = vmatmul.mubr.f32.gmra.mrb[0].mxu0 %v5901
    %v6372 = vpop.f32.mrb[0].mxu0
    %v6373 = vadd.f32 %v6228, %v6372
    %v6374 = vpop.f32.mrb[0].mxu0
    %6375 = vmatprep.mubr.f32.mxu0 %v5910
    %6376 = vmatmul.mubr.f32.gmra.mrb[0].mxu0 %v5909
    %v6377 = vpop.f32.mrb[0].mxu0
    %v6378 = vadd.f32 %v6233, %v6377
    %v6379 = vpop.f32.mrb[0].mxu0
    %6380 = vmatprep.mubr.f32.mxu0 %v5918
    %6381 = vmatmul.mubr.f32.gmra.mrb[0].mxu0 %v5917
    %v6382 = vpop.f32.mrb[0].mxu0
    %v6383 = vadd.f32 %v6238, %v6382
    %v6384 = vpop.f32.mrb[0].mxu0
    %6385 = vmatprep.mubr.f32.mxu0 %v5926
    %6386 = vmatmul.mubr.f32.gmra.mrb[0].mxu0 %v5925
    %v6387 = vpop.f32.mrb[0].mxu0
    %v6388 = vadd.f32 %v6243, %v6387
    %v6389 = vpop.f32.mrb[0].mxu0
    %6390 = vmatprep.mubr.f32.mxu0 %v5934
    %6391 = vmatmul.mubr.f32.gmra.mrb[0].mxu0 %v5933
    %v6392 = vpop.f32.mrb[0].mxu0
    %v6393 = vadd.f32 %v6248, %v6392
    %v6394 = vpop.f32.mrb[0].mxu0
    %6395 = vmatprep.mubr.f32.mxu0 %v5942
    %6396 = vmatmul.mubr.f32.gmra.mrb[0].mxu0 %v5941
    %v6397 = vpop.f32.mrb[0].mxu0
    %v6398 = vadd.f32 %v6253, %v6397
    %v6399 = vpop.f32.mrb[0].mxu0
    %6400 = vmatprep.mubr.f32.mxu0 %v5950
    %6401 = vmatmul.mubr.f32.gmra.mrb[0].mxu0 %v5949
    %v6402 = vpop.f32.mrb[0].mxu0
    %v6403 = vadd.f32 %v6258, %v6402
    %v6404 = vpop.f32.mrb[0].mxu0
    %6405 = vmatprep.mubr.f32.mxu0 %v5958
    %6406 = vmatmul.mubr.f32.gmra.mrb[0].mxu0 %v5957
    %v6407 = vpop.f32.mrb[0].mxu0
    %v6408 = vadd.f32 %v6263, %v6407
    %v6409 = vpop.f32.mrb[0].mxu0
    %6410 = vmatprep.mubr.f32.mxu0 %v5966
    %6411 = vmatmul.mubr.f32.gmra.mrb[0].mxu0 %v5965
    %v6412 = vpop.f32.mrb[0].mxu0
    %v6413 = vadd.f32 %v6268, %v6412
    %v6414 = vpop.f32.mrb[0].mxu0
    %6415 = vmatprep.mubr.f32.mxu0 %v5974
    %6416 = vmatmul.mubr.f32.gmra.mrb[0].mxu0 %v5973
    %v6417 = vpop.f32.mrb[0].mxu0
    %v6418 = vadd.f32 %v6273, %v6417
    %v6419 = vpop.f32.mrb[0].mxu0
    %6420 = vmatprep.mubr.f32.mxu0 %v5982
    %6421 = vmatmul.mubr.f32.gmra.mrb[0].mxu0 %v5981
    %v6422 = vpop.f32.mrb[0].mxu0
    %v6423 = vadd.f32 %v6278, %v6422
    %v6424 = vpop.f32.mrb[0].mxu0
    %6425 = vmatprep.mubr.f32.mxu0 %v5990
    %6426 = vmatmul.mubr.f32.gmra.mrb[0].mxu0 %v5989
    %v6427 = vpop.f32.mrb[0].mxu0
    %v6428 = vadd.f32 %v6283, %v6427
    %v6429 = vpop.f32.mrb[0].mxu0
    %6430 = vmatprep.mubr.f32.mxu0 %v5998
    %6431 = vmatmul.mubr.f32.gmra.mrb[0].mxu0 %v5997
    %v6432 = vpop.f32.mrb[0].mxu0
    %v6433 = vadd.f32 %v6288, %v6432
    %v6434 = vpop.f32.mrb[0].mxu0
    %6435 = vdwg.mxu0
    %6436 = vmatprep.subr.mxu0 0.0
    %6437 = vmatpush1.msra.mxu0 %v5841
    %6438 = vmatprep.subr.mxu0 0.0
    %6439 = vmatpush1.msra.mxu0 %v5842
    %6440 = vmatprep.subr.mxu0 0.0
    %6441 = vmatpush1.msra.mxu0 %v5843
    %6442 = vmatprep.subr.mxu0 0.0
    %6443 = vmatpush1.msra.mxu0 %v5844
    %6444 = vmatprep.subr.mxu0 0.0
    %6445 = vmatpush1.msra.mxu0 %v5845
    %6446 = vmatprep.subr.mxu0 0.0
    %6447 = vmatpush1.msra.mxu0 %v5846
    %6448 = vmatprep.subr.mxu0 0.0
    %6449 = vmatpush1.msra.mxu0 %v5847
    %6450 = vmatprep.subr.mxu0 0.0
    %6451 = vmatpush1.msra.mxu0 %v5848
    %6452 = vmatprep.subr.mxu0 0.0
    %6453 = vmatpush1.msra.mxu0 %v5849
    %6454 = vmatprep.subr.mxu0 0.0
    %6455 = vmatpush1.msra.mxu0 %v5850
    %6456 = vmatprep.subr.mxu0 0.0
    %6457 = vmatpush1.msra.mxu0 %v5851
    %6458 = vmatprep.subr.mxu0 0.0
    %6459 = vmatpush1.msra.mxu0 %v5852
    %6460 = vmatprep.subr.mxu0 0.0
    %6461 = vmatpush1.msra.mxu0 %v5853
    %6462 = vmatprep.subr.mxu0 0.0
    %6463 = vmatpush1.msra.mxu0 %v5854
    %6464 = vmatprep.subr.mxu0 0.0
    %6465 = vmatpush1.msra.mxu0 %v5855
    %6466 = vmatprep.subr.mxu0 0.0
    %6467 = vmatpush1.msra.mxu0 %v5856
    %6468 = vmatprep.subr.mxu0 0.0
    %6469 = vmatpush1.msra.mxu0 %v5857
    %6470 = vmatprep.subr.mxu0 0.0
    %6471 = vmatpush1.msra.mxu0 %v5858
    %6472 = vmatprep.subr.mxu0 0.0
    %6473 = vmatpush1.msra.mxu0 %v5859
    %6474 = vmatprep.subr.mxu0 0.0
    %6475 = vmatpush1.msra.mxu0 %v5860
    %6476 = vmatprep.subr.mxu0 0.0
    %6477 = vmatpush1.msra.mxu0 %v5861
    %6478 = vmatprep.subr.mxu0 0.0
    %6479 = vmatpush1.msra.mxu0 %v5862
    %6480 = vmatprep.subr.mxu0 0.0
    %6481 = vmatpush1.msra.mxu0 %v5863
    %6482 = vmatprep.subr.mxu0 0.0
    %6483 = vmatpush1.msra.mxu0 %v5864
    %6484 = vmatprep.subr.mxu0 0.0
    %6485 = vmatpush1.msra.mxu0 %v5865
    %6486 = vmatprep.subr.mxu0 0.0
    %6487 = vmatpush1.msra.mxu0 %v5866
    %6488 = vmatprep.subr.mxu0 0.0
    %6489 = vmatpush1.msra.mxu0 %v5867
    %6490 = vmatprep.subr.mxu0 0.0
    %6491 = vmatpush1.msra.mxu0 %v5868
    %6492 = vmatprep.subr.mxu0 0.0
    %6493 = vmatpush1.msra.mxu0 %v5869
    %6494 = vmatprep.subr.mxu0 0.0
    %6495 = vmatpush1.msra.mxu0 %v5870
    %6496 = vmatprep.subr.mxu0 0.0
    %6497 = vmatpush1.msra.mxu0 %v5871
    %6498 = vmatprep.subr.mxu0 0.0
    %6499 = vmatpush1.msra.mxu0 %v5872
    %6500 = vmatprep.mubr.f32.mxu0 %v5880
    %6501 = vmatmul.mubr.f32.gmra.mrb[0].mxu0 %v5879
    %v6502 = vpop.f32.mrb[0].mxu0
    %v6503 = vadd.f32 %v6358, %v6502
    %v6504 = vpop.f32.mrb[0].mxu0
    %6505 = vmatprep.mubr.f32.mxu0 %v5888
    %6506 = vmatmul.mubr.f32.gmra.mrb[0].mxu0 %v5887
    %v6507 = vpop.f32.mrb[0].mxu0
    %v6508 = vadd.f32 %v6363, %v6507
    %v6509 = vpop.f32.mrb[0].mxu0
    %6510 = vmatprep.mubr.f32.mxu0 %v5896
    %6511 = vmatmul.mubr.f32.gmra.mrb[0].mxu0 %v5895
    %v6512 = vpop.f32.mrb[0].mxu0
    %v6513 = vadd.f32 %v6368, %v6512
    %v6514 = vpop.f32.mrb[0].mxu0
    %6515 = vmatprep.mubr.f32.mxu0 %v5904
    %6516 = vmatmul.mubr.f32.gmra.mrb[0].mxu0 %v5903
    %v6517 = vpop.f32.mrb[0].mxu0
    %v6518 = vadd.f32 %v6373, %v6517
    %v6519 = vpop.f32.mrb[0].mxu0
    %6520 = vmatprep.mubr.f32.mxu0 %v5912
    %6521 = vmatmul.mubr.f32.gmra.mrb[0].mxu0 %v5911
    %v6522 = vpop.f32.mrb[0].mxu0
    %v6523 = vadd.f32 %v6378, %v6522
    %v6524 = vpop.f32.mrb[0].mxu0
    %6525 = vmatprep.mubr.f32.mxu0 %v5920
    %6526 = vmatmul.mubr.f32.gmra.mrb[0].mxu0 %v5919
    %v6527 = vpop.f32.mrb[0].mxu0
    %v6528 = vadd.f32 %v6383, %v6527
    %v6529 = vpop.f32.mrb[0].mxu0
    %6530 = vmatprep.mubr.f32.mxu0 %v5928
    %6531 = vmatmul.mubr.f32.gmra.mrb[0].mxu0 %v5927
    %v6532 = vpop.f32.mrb[0].mxu0
    %v6533 = vadd.f32 %v6388, %v6532
    %v6534 = vpop.f32.mrb[0].mxu0
    %6535 = vmatprep.mubr.f32.mxu0 %v5936
    %6536 = vmatmul.mubr.f32.gmra.mrb[0].mxu0 %v5935
    %v6537 = vpop.f32.mrb[0].mxu0
    %v6538 = vadd.f32 %v6393, %v6537
    %v6539 = vpop.f32.mrb[0].mxu0
    %6540 = vmatprep.mubr.f32.mxu0 %v5944
    %6541 = vmatmul.mubr.f32.gmra.mrb[0].mxu0 %v5943
    %v6542 = vpop.f32.mrb[0].mxu0
    %v6543 = vadd.f32 %v6398, %v6542
    %v6544 = vpop.f32.mrb[0].mxu0
    %6545 = vmatprep.mubr.f32.mxu0 %v5952
    %6546 = vmatmul.mubr.f32.gmra.mrb[0].mxu0 %v5951
    %v6547 = vpop.f32.mrb[0].mxu0
    %v6548 = vadd.f32 %v6403, %v6547
    %v6549 = vpop.f32.mrb[0].mxu0
    %6550 = vmatprep.mubr.f32.mxu0 %v5960
    %6551 = vmatmul.mubr.f32.gmra.mrb[0].mxu0 %v5959
    %v6552 = vpop.f32.mrb[0].mxu0
    %v6553 = vadd.f32 %v6408, %v6552
    %v6554 = vpop.f32.mrb[0].mxu0
    %6555 = vmatprep.mubr.f32.mxu0 %v5968
    %6556 = vmatmul.mubr.f32.gmra.mrb[0].mxu0 %v5967
    %v6557 = vpop.f32.mrb[0].mxu0
    %v6558 = vadd.f32 %v6413, %v6557
    %v6559 = vpop.f32.mrb[0].mxu0
    %6560 = vmatprep.mubr.f32.mxu0 %v5976
    %6561 = vmatmul.mubr.f32.gmra.mrb[0].mxu0 %v5975
    %v6562 = vpop.f32.mrb[0].mxu0
    %v6563 = vadd.f32 %v6418, %v6562
    %v6564 = vpop.f32.mrb[0].mxu0
    %6565 = vmatprep.mubr.f32.mxu0 %v5984
    %6566 = vmatmul.mubr.f32.gmra.mrb[0].mxu0 %v5983
    %v6567 = vpop.f32.mrb[0].mxu0
    %v6568 = vadd.f32 %v6423, %v6567
    %v6569 = vpop.f32.mrb[0].mxu0
    %6570 = vmatprep.mubr.f32.mxu0 %v5992
    %6571 = vmatmul.mubr.f32.gmra.mrb[0].mxu0 %v5991
    %v6572 = vpop.f32.mrb[0].mxu0
    %v6573 = vadd.f32 %v6428, %v6572
    %v6574 = vpop.f32.mrb[0].mxu0
    %6575 = vmatprep.mubr.f32.mxu0 %v6000
    %6576 = vmatmul.mubr.f32.gmra.mrb[0].mxu0 %v5999
    %v6577 = vpop.f32.mrb[0].mxu0
    %v6578 = vadd.f32 %v6433, %v6577
    %v6579 = vpop.f32.mrb[0].mxu0
    %6580 = vdwg.mxu0
    %v6581 = vld [vmem:[%s11] sm:$0xff]
    %v6582 = vld [vmem:[%s11 + $0x8] sm:$0xff]
    %v6583 = vld [vmem:[%s11 + $0x10] sm:$0xff]
    %v6584 = vld [vmem:[%s11 + $0x18] sm:$0xff]
    %v6585 = vld [vmem:[%s12] sm:$0xff]
    %v6586 = vld [vmem:[%s12 + $0x8] sm:$0xff]
    %v6587 = vld [vmem:[%s12 + $0x10] sm:$0xff]
    %v6588 = vld [vmem:[%s12 + $0x18] sm:$0xff]
    %6590 = vset.pattern.permute.xlu0 0
    %6591 = vperm.xlu0 %6590, %v6585
    %v6592 = vpop.permute.xlu0 %6591
    %6595 = vset.pattern.permute.xlu0 0
    %6596 = vperm.xlu0 %6595, %v6586
    %v6597 = vpop.permute.xlu0 %6596
    %6600 = vset.pattern.permute.xlu0 0
    %6601 = vperm.xlu0 %6600, %v6587
    %v6602 = vpop.permute.xlu0 %6601
    %6605 = vset.pattern.permute.xlu0 0
    %6606 = vperm.xlu0 %6605, %v6588
    %v6607 = vpop.permute.xlu0 %6606
    %v6610 = vsel %vm1431, %v6581, 0
    %v6613 = vsel %vm1431, %v6582, 0
    %v6616 = vsel %vm1431, %v6583, 0
    %v6619 = vsel %vm1431, %v6584, 0
    %v6622 = vsel %vm1431, %v6503, 0
    %v6625 = vsel %vm1431, %v6508, 0
    %v6628 = vsel %vm1431, %v6513, 0
    %v6631 = vsel %vm1431, %v6518, 0
    %v6634 = vsel %vm1431, %v6523, 0
    %v6637 = vsel %vm1431, %v6528, 0
    %v6640 = vsel %vm1431, %v6533, 0
    %v6643 = vsel %vm1431, %v6538, 0
    %v6646 = vsel %vm1431, %v6543, 0
    %v6649 = vsel %vm1431, %v6548, 0
    %v6652 = vsel %vm1431, %v6553, 0
    %v6655 = vsel %vm1431, %v6558, 0
    %v6658 = vsel %vm1431, %v6563, 0
    %v6661 = vsel %vm1431, %v6568, 0
    %v6664 = vsel %vm1431, %v6573, 0
    %v6667 = vsel %vm1431, %v6578, 0
    %6669 = vmatprep.subr.mxu0 0.0
    %6670 = vmatpush1.xpose.msra.mxu0 %v6622
    %6671 = vmatprep.subr.mxu0 0.0
    %6672 = vmatpush1.xpose.msra.mxu0 %v6625
    %6673 = vmatprep.subr.mxu0 0.0
    %6674 = vmatpush1.xpose.msra.mxu0 %v6628
    %6675 = vmatprep.subr.mxu0 0.0
    %6676 = vmatpush1.xpose.msra.mxu0 %v6631
    %6677 = vmatprep.subr.mxu0 0.0
    %6678 = vmatpush1.xpose.msra.mxu0 %v6634
    %6679 = vmatprep.subr.mxu0 0.0
    %6680 = vmatpush1.xpose.msra.mxu0 %v6637
    %6681 = vmatprep.subr.mxu0 0.0
    %6682 = vmatpush1.xpose.msra.mxu0 %v6640
    %6683 = vmatprep.subr.mxu0 0.0
    %6684 = vmatpush1.xpose.msra.mxu0 %v6643
    %6685 = vmatprep.subr.mxu0 0.0
    %6686 = vmatpush1.xpose.msra.mxu0 %v6646
    %6687 = vmatprep.subr.mxu0 0.0
    %6688 = vmatpush1.xpose.msra.mxu0 %v6649
    %6689 = vmatprep.subr.mxu0 0.0
    %6690 = vmatpush1.xpose.msra.mxu0 %v6652
    %6691 = vmatprep.subr.mxu0 0.0
    %6692 = vmatpush1.xpose.msra.mxu0 %v6655
    %6693 = vmatprep.subr.mxu0 0.0
    %6694 = vmatpush1.xpose.msra.mxu0 %v6658
    %6695 = vmatprep.subr.mxu0 0.0
    %6696 = vmatpush1.xpose.msra.mxu0 %v6661
    %6697 = vmatprep.subr.mxu0 0.0
    %6698 = vmatpush1.xpose.msra.mxu0 %v6664
    %6699 = vmatprep.subr.mxu0 0.0
    %6700 = vmatpush1.xpose.msra.mxu0 %v6667
    %6701 = vmatprep.subr.mxu0 0.0
    %6702 = vmatpush1.xpose.msra.mxu0 0.0
    %6703 = vmatprep.subr.mxu0 0.0
    %6704 = vmatpush1.xpose.msra.mxu0 0.0
    %6705 = vmatprep.subr.mxu0 0.0
    %6706 = vmatpush1.xpose.msra.mxu0 0.0
    %6707 = vmatprep.subr.mxu0 0.0
    %6708 = vmatpush1.xpose.msra.mxu0 0.0
    %6709 = vmatprep.subr.mxu0 0.0
    %6710 = vmatpush1.xpose.msra.mxu0 0.0
    %6711 = vmatprep.subr.mxu0 0.0
    %6712 = vmatpush1.xpose.msra.mxu0 0.0
    %6713 = vmatprep.subr.mxu0 0.0
    %6714 = vmatpush1.xpose.msra.mxu0 0.0
    %6715 = vmatprep.subr.mxu0 0.0
    %6716 = vmatpush1.xpose.msra.mxu0 0.0
    %6717 = vmatprep.subr.mxu0 0.0
    %6718 = vmatpush1.xpose.msra.mxu0 0.0
    %6719 = vmatprep.subr.mxu0 0.0
    %6720 = vmatpush1.xpose.msra.mxu0 0.0
    %6721 = vmatprep.subr.mxu0 0.0
    %6722 = vmatpush1.xpose.msra.mxu0 0.0
    %6723 = vmatprep.subr.mxu0 0.0
    %6724 = vmatpush1.xpose.msra.mxu0 0.0
    %6725 = vmatprep.subr.mxu0 0.0
    %6726 = vmatpush1.xpose.msra.mxu0 0.0
    %6727 = vmatprep.subr.mxu0 0.0
    %6728 = vmatpush1.xpose.msra.mxu0 0.0
    %6729 = vmatprep.subr.mxu0 0.0
    %6730 = vmatpush1.xpose.msra.mxu0 0.0
    %6731 = vmatprep.subr.mxu0 0.0
    %6732 = vmatpush1.xpose.msra.mxu0 0.0
    %6733 = vmatprep.mubr.f32.mxu0 0.0
    %6734 = vmatmul.mubr.f32.gmra.mrb[0].mxu0 %v6610
    %v6735 = vpop.f32.mrb[0].mxu0
    %v6736 = vadd.f32 %v6592, %v6735
    %v6737 = vpop.f32.mrb[0].mxu0
    %6738 = vmatprep.mubr.f32.mxu0 0.0
    %6739 = vmatmul.mubr.f32.gmra.mrb[0].mxu0 %v6613
    %v6740 = vpop.f32.mrb[0].mxu0
    %v6741 = vadd.f32 %v6597, %v6740
    %v6742 = vpop.f32.mrb[0].mxu0
    %6743 = vmatprep.mubr.f32.mxu0 0.0
    %6744 = vmatmul.mubr.f32.gmra.mrb[0].mxu0 %v6616
    %v6745 = vpop.f32.mrb[0].mxu0
    %v6746 = vadd.f32 %v6602, %v6745
    %v6747 = vpop.f32.mrb[0].mxu0
    %6748 = vmatprep.mubr.f32.mxu0 0.0
    %6749 = vmatmul.mubr.f32.gmra.mrb[0].mxu0 %v6619
    %v6750 = vpop.f32.mrb[0].mxu0
    %v6751 = vadd.f32 %v6607, %v6750
    %v6752 = vpop.f32.mrb[0].mxu0
    %6753 = vdwg.mxu0
    %v6754 = vmax.f32 %v6736, 0.0
    %v6755 = vmax.f32 %v6741, 0.0
    %v6756 = vmax.f32 %v6746, 0.0
    %v6757 = vmax.f32 %v6751, 0.0
    %v6758 = vld [vmem:[%s13] sm:$0xff]
    %v6759 = vld [vmem:[%s13 + $0x8] sm:$0xff]
    %v6760 = vld [vmem:[%s13 + $0x10] sm:$0xff]
    %v6761 = vld [vmem:[%s13 + $0x18] sm:$0xff]
    %v6762 = vld [vmem:[%s14] sm:$0xff]
    %v6763 = vld [vmem:[%s14 + $0x8] sm:$0xff]
    %v6764 = vld [vmem:[%s14 + $0x10] sm:$0xff]
    %v6765 = vld [vmem:[%s14 + $0x18] sm:$0xff]
    %6767 = vset.pattern.permute.xlu0 0
    %6768 = vperm.xlu0 %6767, %v6762
    %v6769 = vpop.permute.xlu0 %6768
    %6772 = vset.pattern.permute.xlu0 0
    %6773 = vperm.xlu0 %6772, %v6763
    %v6774 = vpop.permute.xlu0 %6773
    %6777 = vset.pattern.permute.xlu0 0
    %6778 = vperm.xlu0 %6777, %v6764
    %v6779 = vpop.permute.xlu0 %6778
    %6782 = vset.pattern.permute.xlu0 0
    %6783 = vperm.xlu0 %6782, %v6765
    %v6784 = vpop.permute.xlu0 %6783
    %v6787 = vsel %vm1431, %v6758, 0
    %v6790 = vsel %vm1431, %v6759, 0
    %v6793 = vsel %vm1431, %v6760, 0
    %v6796 = vsel %vm1431, %v6761, 0
    %6798 = vmatprep.subr.mxu0 0.0
    %6799 = vmatpush1.msra.mxu0 %v6754
    %6800 = vmatprep.subr.mxu0 0.0
    %6801 = vmatpush1.msra.mxu0 %v6755
    %6802 = vmatprep.subr.mxu0 0.0
    %6803 = vmatpush1.msra.mxu0 %v6756
    %6804 = vmatprep.subr.mxu0 0.0
    %6805 = vmatpush1.msra.mxu0 %v6757
    %6806 = vmatprep.subr.mxu0 0.0
    %6807 = vmatpush1.msra.mxu0 0.0
    %6808 = vmatprep.subr.mxu0 0.0
    %6809 = vmatpush1.msra.mxu0 0.0
    %6810 = vmatprep.subr.mxu0 0.0
    %6811 = vmatpush1.msra.mxu0 0.0
    %6812 = vmatprep.subr.mxu0 0.0
    %6813 = vmatpush1.msra.mxu0 0.0
    %6814 = vmatprep.subr.mxu0 0.0
    %6815 = vmatpush1.msra.mxu0 0.0
    %6816 = vmatprep.subr.mxu0 0.0
    %6817 = vmatpush1.msra.mxu0 0.0
    %6818 = vmatprep.subr.mxu0 0.0
    %6819 = vmatpush1.msra.mxu0 0.0
    %6820 = vmatprep.subr.mxu0 0.0
    %6821 = vmatpush1.msra.mxu0 0.0
    %6822 = vmatprep.subr.mxu0 0.0
    %6823 = vmatpush1.msra.mxu0 0.0
    %6824 = vmatprep.subr.mxu0 0.0
    %6825 = vmatpush1.msra.mxu0 0.0
    %6826 = vmatprep.subr.mxu0 0.0
    %6827 = vmatpush1.msra.mxu0 0.0
    %6828 = vmatprep.subr.mxu0 0.0
    %6829 = vmatpush1.msra.mxu0 0.0
    %6830 = vmatprep.subr.mxu0 0.0
    %6831 = vmatpush1.msra.mxu0 0.0
    %6832 = vmatprep.subr.mxu0 0.0
    %6833 = vmatpush1.msra.mxu0 0.0
    %6834 = vmatprep.subr.mxu0 0.0
    %6835 = vmatpush1.msra.mxu0 0.0
    %6836 = vmatprep.subr.mxu0 0.0
    %6837 = vmatpush1.msra.mxu0 0.0
    %6838 = vmatprep.subr.mxu0 0.0
    %6839 = vmatpush1.msra.mxu0 0.0
    %6840 = vmatprep.subr.mxu0 0.0
    %6841 = vmatpush1.msra.mxu0 0.0
    %6842 = vmatprep.subr.mxu0 0.0
    %6843 = vmatpush1.msra.mxu0 0.0
    %6844 = vmatprep.subr.mxu0 0.0
    %6845 = vmatpush1.msra.mxu0 0.0
    %6846 = vmatprep.subr.mxu0 0.0
    %6847 = vmatpush1.msra.mxu0 0.0
    %6848 = vmatprep.subr.mxu0 0.0
    %6849 = vmatpush1.msra.mxu0 0.0
    %6850 = vmatprep.subr.mxu0 0.0
    %6851 = vmatpush1.msra.mxu0 0.0
    %6852 = vmatprep.subr.mxu0 0.0
    %6853 = vmatpush1.msra.mxu0 0.0
    %6854 = vmatprep.subr.mxu0 0.0
    %6855 = vmatpush1.msra.mxu0 0.0
    %6856 = vmatprep.subr.mxu0 0.0
    %6857 = vmatpush1.msra.mxu0 0.0
    %6858 = vmatprep.subr.mxu0 0.0
    %6859 = vmatpush1.msra.mxu0 0.0
    %6860 = vmatprep.subr.mxu0 0.0
    %6861 = vmatpush1.msra.mxu0 0.0
    %6862 = vmatprep.mubr.f32.mxu0 0.0
    %6863 = vmatmul.mubr.f32.gmra.mrb[0].mxu0 %v6787
    %v6864 = vpop.f32.mrb[0].mxu0
    %v6865 = vadd.f32 %v6769, %v6864
    %v6866 = vpop.f32.mrb[0].mxu0
    %6867 = vmatprep.mubr.f32.mxu0 0.0
    %6868 = vmatmul.mubr.f32.gmra.mrb[0].mxu0 %v6790
    %v6869 = vpop.f32.mrb[0].mxu0
    %v6870 = vadd.f32 %v6774, %v6869
    %v6871 = vpop.f32.mrb[0].mxu0
    %6872 = vmatprep.mubr.f32.mxu0 0.0
    %6873 = vmatmul.mubr.f32.gmra.mrb[0].mxu0 %v6793
    %v6874 = vpop.f32.mrb[0].mxu0
    %v6875 = vadd.f32 %v6779, %v6874
    %v6876 = vpop.f32.mrb[0].mxu0
    %6877 = vmatprep.mubr.f32.mxu0 0.0
    %6878 = vmatmul.mubr.f32.gmra.mrb[0].mxu0 %v6796
    %v6879 = vpop.f32.mrb[0].mxu0
    %v6880 = vadd.f32 %v6784, %v6879
    %v6881 = vpop.f32.mrb[0].mxu0
    %6882 = vdwg.mxu0
    %v6883 = vmax.f32 %v6865, 0.0
    %v6884 = vmax.f32 %v6870, 0.0
    %v6885 = vmax.f32 %v6875, 0.0
    %v6886 = vmax.f32 %v6880, 0.0
    %v6887 = vld [vmem:[%s15] sm:$0xff]
    %v6888 = vld [vmem:[%s15 + $0x8] sm:$0xff]
    %v6889 = vld [vmem:[%s15 + $0x10] sm:$0xff]
    %v6890 = vld [vmem:[%s15 + $0x18] sm:$0xff]
    %v6891 = vld [vmem:[%s16] sm:$0xff]
    %v6892 = vld [vmem:[%s16 + $0x8] sm:$0xff]
    %v6893 = vld [vmem:[%s16 + $0x10] sm:$0xff]
    %v6894 = vld [vmem:[%s16 + $0x18] sm:$0xff]
    %6896 = vset.pattern.permute.xlu0 0
    %6897 = vperm.xlu0 %6896, %v6891
    %v6898 = vpop.permute.xlu0 %6897
    %6901 = vset.pattern.permute.xlu0 0
    %6902 = vperm.xlu0 %6901, %v6892
    %v6903 = vpop.permute.xlu0 %6902
    %6906 = vset.pattern.permute.xlu0 0
    %6907 = vperm.xlu0 %6906, %v6893
    %v6908 = vpop.permute.xlu0 %6907
    %6911 = vset.pattern.permute.xlu0 0
    %6912 = vperm.xlu0 %6911, %v6894
    %v6913 = vpop.permute.xlu0 %6912
    %v6916 = vsel %vm1431, %v6887, 0
    %v6919 = vsel %vm1431, %v6888, 0
    %v6922 = vsel %vm1431, %v6889, 0
    %v6925 = vsel %vm1431, %v6890, 0
    %6927 = vmatprep.subr.mxu0 0.0
    %6928 = vmatpush1.msra.mxu0 %v6883
    %6929 = vmatprep.subr.mxu0 0.0
    %6930 = vmatpush1.msra.mxu0 %v6884
    %6931 = vmatprep.subr.mxu0 0.0
    %6932 = vmatpush1.msra.mxu0 %v6885
    %6933 = vmatprep.subr.mxu0 0.0
    %6934 = vmatpush1.msra.mxu0 %v6886
    %6935 = vmatprep.subr.mxu0 0.0
    %6936 = vmatpush1.msra.mxu0 0.0
    %6937 = vmatprep.subr.mxu0 0.0
    %6938 = vmatpush1.msra.mxu0 0.0
    %6939 = vmatprep.subr.mxu0 0.0
    %6940 = vmatpush1.msra.mxu0 0.0
    %6941 = vmatprep.subr.mxu0 0.0
    %6942 = vmatpush1.msra.mxu0 0.0
    %6943 = vmatprep.subr.mxu0 0.0
    %6944 = vmatpush1.msra.mxu0 0.0
    %6945 = vmatprep.subr.mxu0 0.0
    %6946 = vmatpush1.msra.mxu0 0.0
    %6947 = vmatprep.subr.mxu0 0.0
    %6948 = vmatpush1.msra.mxu0 0.0
    %6949 = vmatprep.subr.mxu0 0.0
    %6950 = vmatpush1.msra.mxu0 0.0
    %6951 = vmatprep.subr.mxu0 0.0
    %6952 = vmatpush1.msra.mxu0 0.0
    %6953 = vmatprep.subr.mxu0 0.0
    %6954 = vmatpush1.msra.mxu0 0.0
    %6955 = vmatprep.subr.mxu0 0.0
    %6956 = vmatpush1.msra.mxu0 0.0
    %6957 = vmatprep.subr.mxu0 0.0
    %6958 = vmatpush1.msra.mxu0 0.0
    %6959 = vmatprep.subr.mxu0 0.0
    %6960 = vmatpush1.msra.mxu0 0.0
    %6961 = vmatprep.subr.mxu0 0.0
    %6962 = vmatpush1.msra.mxu0 0.0
    %6963 = vmatprep.subr.mxu0 0.0
    %6964 = vmatpush1.msra.mxu0 0.0
    %6965 = vmatprep.subr.mxu0 0.0
    %6966 = vmatpush1.msra.mxu0 0.0
    %6967 = vmatprep.subr.mxu0 0.0
    %6968 = vmatpush1.msra.mxu0 0.0
    %6969 = vmatprep.subr.mxu0 0.0
    %6970 = vmatpush1.msra.mxu0 0.0
    %6971 = vmatprep.subr.mxu0 0.0
    %6972 = vmatpush1.msra.mxu0 0.0
    %6973 = vmatprep.subr.mxu0 0.0
    %6974 = vmatpush1.msra.mxu0 0.0
    %6975 = vmatprep.subr.mxu0 0.0
    %6976 = vmatpush1.msra.mxu0 0.0
    %6977 = vmatprep.subr.mxu0 0.0
    %6978 = vmatpush1.msra.mxu0 0.0
    %6979 = vmatprep.subr.mxu0 0.0
    %6980 = vmatpush1.msra.mxu0 0.0
    %6981 = vmatprep.subr.mxu0 0.0
    %6982 = vmatpush1.msra.mxu0 0.0
    %6983 = vmatprep.subr.mxu0 0.0
    %6984 = vmatpush1.msra.mxu0 0.0
    %6985 = vmatprep.subr.mxu0 0.0
    %6986 = vmatpush1.msra.mxu0 0.0
    %6987 = vmatprep.subr.mxu0 0.0
    %6988 = vmatpush1.msra.mxu0 0.0
    %6989 = vmatprep.subr.mxu0 0.0
    %6990 = vmatpush1.msra.mxu0 0.0
    %6991 = vmatprep.mubr.f32.mxu0 0.0
    %6992 = vmatmul.mubr.f32.gmra.mrb[0].mxu0 %v6916
    %v6993 = vpop.f32.mrb[0].mxu0
    %v6994 = vadd.f32 %v6898, %v6993
    %v6995 = vpop.f32.mrb[0].mxu0
    %6996 = vmatprep.mubr.f32.mxu0 0.0
    %6997 = vmatmul.mubr.f32.gmra.mrb[0].mxu0 %v6919
    %v6998 = vpop.f32.mrb[0].mxu0
    %v6999 = vadd.f32 %v6903, %v6998
    %v7000 = vpop.f32.mrb[0].mxu0
    %7001 = vmatprep.mubr.f32.mxu0 0.0
    %7002 = vmatmul.mubr.f32.gmra.mrb[0].mxu0 %v6922
    %v7003 = vpop.f32.mrb[0].mxu0
    %v7004 = vadd.f32 %v6908, %v7003
    %v7005 = vpop.f32.mrb[0].mxu0
    %7006 = vmatprep.mubr.f32.mxu0 0.0
    %7007 = vmatmul.mubr.f32.gmra.mrb[0].mxu0 %v6925
    %v7008 = vpop.f32.mrb[0].mxu0
    %v7009 = vadd.f32 %v6913, %v7008
    %v7010 = vpop.f32.mrb[0].mxu0
    %7011 = vdwg.mxu0
    %v7012 = vmax.f32 %v6994, 0.0
    %v7013 = vmax.f32 %v6999, 0.0
    %v7014 = vmax.f32 %v7004, 0.0
    %v7015 = vmax.f32 %v7009, 0.0
    %v7016 = vld [vmem:[%s17] sm:$0xff]
    %v7017 = vld [vmem:[%s17 + $0x8] sm:$0xff]
    %v7018 = vld [vmem:[%s17 + $0x10] sm:$0xff]
    %v7019 = vld [vmem:[%s17 + $0x18] sm:$0xff]
    %7021 = vset.pattern.permute.xlu0 0
    %7022 = vperm.xlu0 %7021, %v7016
    %v7023 = vpop.permute.xlu0 %7022
    %7026 = vset.pattern.permute.xlu0 0
    %7027 = vperm.xlu0 %7026, %v7017
    %v7028 = vpop.permute.xlu0 %7027
    %7031 = vset.pattern.permute.xlu0 0
    %7032 = vperm.xlu0 %7031, %v7018
    %v7033 = vpop.permute.xlu0 %7032
    %7036 = vset.pattern.permute.xlu0 0
    %7037 = vperm.xlu0 %7036, %v7019
    %v7038 = vpop.permute.xlu0 %7037
    %v7040 = vmul.f32 %v7012, %v7023
    %v7041 = vmul.f32 %v7013, %v7028
    %v7042 = vmul.f32 %v7014, %v7033
    %v7043 = vmul.f32 %v7015, %v7038
    %v7044 = vadd.f32 %v7040, %v7041
    %v7045 = vadd.f32 %v7044, %v7042
    %v7046 = vadd.f32 %v7045, %v7043
    %v7047 = vrot.slane %v7046, 4
    %v7048 = vadd.f32 %v7046, %v7047
    %v7049 = vrot.slane %v7048, 2
    %v7050 = vadd.f32 %v7048, %v7049
    %v7051 = vrot.slane %v7050, 1
    %v7052 = vadd.f32 %v7050, %v7051
    %v7053 = vld [vmem:[#allocation2] sm:$0x1]
    %7055 = vset.pattern.permute.xlu0 0
    %7056 = vperm.xlu0 %7055, %v7053
    %v7057 = vpop.permute.xlu0 %7056
    %v7059 = vlaneseq
    %v7060 = vshrl.u32 %v7059, 7
    %v7061 = vsub.s32 0, %v7060
    %v7062 = vrot.slane %v7057, %v7061
    %v7063 = vadd.f32 %v7052, %v7062
    %v7064 = vxor.u32 %v7063, 2147483648
    %v7065 = vmul.f32 %v7064, 1.442695
    %v7066 = vpow.pop %v7065
    %v7067 = vadd.f32 %v7066, 1.0
    %v7068 = vrcp.pop %v7067
    %v7069 = vmul.f32 1.0, %v7068
    %7070 = vst [vmem:[#allocation3] sm:$0x1] %v7069
    // Predicated region
    $region78: #{tpu_custom_call.1} parent=1 // pred_check
      _
    $region79: #{tpu_custom_call.1} parent=1 // pred_check_branch
      %7072 = sbr.rel (0) target = $region81
    $region80: #{tpu_custom_call.1} parent=1 // pred_region
      %s7074 = ssub.s32 16, 16
      %7075 = vsyncadd [#allocation4], %s7074
      %s7077 = sshll.u32 [#allocation3], 4
      %s7078 = int_to_ptr.vmem [resolvable:$true] %s7077
      %7080 = dma.vmem_to_hbm [thread:$0]  %s7078, 16, %s19, [#allocation4]
    $region81: #{tpu_custom_call.1} parent=1 // pred_fallthru
      _
    // Predicated region
    $region82: #{tpu_custom_call.1} parent=1 // pred_check
      _
    $region83: #{tpu_custom_call.1} parent=1 // pred_check_branch
      %7082 = sbr.rel (0) target = $region85
    $region84: #{tpu_custom_call.1} parent=1 // pred_region
      %7083 = dma.done [#allocation4], 16
    $region85: #{tpu_custom_call.1} parent=1 // pred_fallthru
      _
    %7084 = vsyncpa [#allocation4], 1

</llo_original>
